<compile_context>
chip_gen: v5e
topology: v5e:2x2
jax: 0.10.0
libtpu: 0.0.40
codegen_flags: <defaults>
</compile_context>

<pallas_src>
import functools
import math

import jax
import jax.numpy as jnp
from jax import lax
from jax.experimental import pallas as pl
from jax.experimental.pallas import tpu as pltpu

MM_DTYPE = jnp.bfloat16      # matmul operand dtype fed to the MXU
ACT_DTYPE = jnp.bfloat16     # activation slab dtype between fused kernels

CFG = dict(vocab_size=256, hidden_size=32, num_heads=2, num_layers=2,
           intermediate_size=64, max_position_embeddings=64, type_vocab_size=2,
           pad_idx=1, visual_embedding_dim=16, layer_norm_eps=1e-5)


# ----------------------------- small utilities --------------------------------

def _nbytes(shape, dtype):
    return math.prod(shape) * jnp.dtype(dtype).itemsize


def _vmem_ceiling():
    try:
        cap = int(pltpu.get_tpu_info().vmem_capacity_bytes)
    except Exception:
        cap = 64 << 20          # conservative (v7x) fallback
    return max(16 << 20, (cap * 3) // 4)


_VMEM_CEIL = _vmem_ceiling()


def _probe_single_buffer_weights():
    """Check that BlockSpec(pipeline_mode=pl.Buffered(1)) lowers on this jax/libtpu."""
    try:
        wspec = pl.BlockSpec((8, 128), lambda i: (0, 0), pipeline_mode=pl.Buffered(1))

        def k(w_ref, o_ref):
            o_ref[...] = w_ref[...] + 1.0

        fn = pl.pallas_call(
            k, grid=(2,),
            in_specs=[wspec],
            out_specs=pl.BlockSpec((8, 128), lambda i: (i, 0)),
            out_shape=jax.ShapeDtypeStruct((16, 128), jnp.float32))
        jax.jit(fn).lower(jax.ShapeDtypeStruct((8, 128), jnp.float32)).compile()
        return True
    except Exception:
        return False


_WEIGHT_SINGLE_BUFFER = _probe_single_buffer_weights()


def _wspec(shape, index_map):
    """BlockSpec for a grid-invariant operand: single-buffered when supported."""
    if _WEIGHT_SINGLE_BUFFER:
        return pl.BlockSpec(shape, index_map, pipeline_mode=pl.Buffered(1))
    return pl.BlockSpec(shape, index_map)


def _vmem_limit(stream_bytes, weight_bytes, extra_bytes):
    wbuf = 1 if _WEIGHT_SINGLE_BUFFER else 2
    need = 2 * stream_bytes + wbuf * weight_bytes + extra_bytes
    need = int(need * 1.25) + (4 << 20)
    return max(32 << 20, min(need, _VMEM_CEIL))


def _pick_tile(n, candidates):
    """Largest candidate tile (all multiples of 8/128) that divides n into >=2 tiles."""
    for c in candidates:
        if n % c == 0 and n // c >= 2:
            return c
    return n


# ----------------------------- in-kernel helpers -------------------------------

def _gelu(x):
    # exact (erf) gelu == HF `gelu`
    return 0.5 * x * (1.0 + lax.erf(x * (1.0 / math.sqrt(2.0))))


def _layernorm(x, g, b, eps):
    mean = jnp.mean(x, axis=-1, keepdims=True)
    var = jnp.mean(jnp.square(x - mean), axis=-1, keepdims=True)
    return (x - mean) * lax.rsqrt(var + eps) * g + b


# ------------------------------ Pallas kernels ---------------------------------

def _embed_kernel(text_ref, vis_ref, pw_ref, pb_ref, vadd_ref, g_ref, b_ref,
                  o_ref, *, eps, text_len):
    # One batch element per grid step.  LN is per-row, so text rows and visual rows are
    # normalized separately and written straight into their row slices (no concat copy).
    g = g_ref[...]
    b = b_ref[...]
    text = text_ref[0].astype(jnp.float32)                                   # (S, H)
    o_ref[0, :text_len, :] = _layernorm(text, g, b, eps).astype(o_ref.dtype)

    vproj = jnp.dot(vis_ref[0], pw_ref[...], preferred_element_type=jnp.float32)
    vemb = vproj + pb_ref[...] + vadd_ref[...]                               # (Nv, H)
    o_ref[0, text_len:, :] = _layernorm(vemb, g, b, eps).astype(o_ref.dtype)


def _encoder_layer_kernel(hq_ref, hk_ref, m_ref, wq_ref, bq_ref, wkv_ref, bkv_ref,
                          wo_ref, bo_ref, g1_ref, b1_ref, wi_ref, bi_ref,
                          wf_ref, bf_ref, g2_ref, b2_ref, o_ref,
                          *, num_heads, head_dim, eps):
    # Fused BERT layer for one (batch, query-row-tile) grid step; K/V resident per step.
    H = num_heads * head_dim
    scale = 1.0 / math.sqrt(head_dim)

    xq_bf = hq_ref[0]                                   # (tq, H) bf16 query rows
    xk_bf = hk_ref[0]                                   # (T,  H) bf16 full sequence
    bias = m_ref[0].astype(jnp.float32)                 # (1, T)  additive mask

    # projections: bf16 operands, f32 MXU accumulation; activations kept bf16.
    q = (jnp.dot(xq_bf, wq_ref[...], preferred_element_type=jnp.float32)
         + bq_ref[...]).astype(MM_DTYPE)                                     # (tq, H)
    kv = (jnp.dot(xk_bf, wkv_ref[...], preferred_element_type=jnp.float32)
          + bkv_ref[...]).astype(MM_DTYPE)                                   # (T, 2H)
    k = kv[:, :H]
    v = kv[:, H:]

    # TODO(synk): at head_dim=64 process heads in 128-lane pairs; at long T also tile K/V
    # with an online softmax (flash).  Not needed at these toy sizes.
    ctx_heads = []
    for hd in range(num_heads):
        sl = slice(hd * head_dim, (hd + 1) * head_dim)
        # contract both operands on their last dim -- no explicit k.T / XLU transpose.
        s = lax.dot_general(q[:, sl], k[:, sl], (((1,), (1,)), ((), ())),
                            preferred_element_type=jnp.float32)              # (tq, T)
        s = s * scale + bias
        s = s - jnp.max(s, axis=-1, keepdims=True)
        p = jnp.exp(s)
        p = p * pl.reciprocal(jnp.sum(p, axis=-1, keepdims=True), approx=True)
        ctx_heads.append(jnp.dot(p.astype(MM_DTYPE), v[:, sl],
                                 preferred_element_type=jnp.float32).astype(MM_DTYPE))
    ctx = jnp.concatenate(ctx_heads, axis=-1)                                # (tq, H) bf16
    # single full-contraction-depth output projection (was: per-head accumulated matmuls).
    attn = jnp.dot(ctx, wo_ref[...], preferred_element_type=jnp.float32) + bo_ref[...]

    h1 = _layernorm(attn + xq_bf.astype(jnp.float32), g1_ref[...], b1_ref[...], eps)
    inter = _gelu(jnp.dot(h1.astype(MM_DTYPE), wi_ref[...],
                          preferred_element_type=jnp.float32) + bi_ref[...])
    ffn = jnp.dot(inter.astype(MM_DTYPE), wf_ref[...],
                  preferred_element_type=jnp.float32) + bf_ref[...]
    out = _layernorm(ffn + h1, g2_ref[...], b2_ref[...], eps)
    o_ref[...] = out[None].astype(o_ref.dtype)


def _lm_head_ce_kernel(x_ref, lab_ref, wd_ref, bd_ref, g_ref, b_ref,
                       decT_ref, dbias_ref, out_ref,
                       h_s, m_s, l_s, pick_s, *, eps, vt):
    # RobertaLMHead (dense -> gelu -> LN -> tied decoder) + masked CE over a
    # (row-tile, vocab-tile) grid with an online logsumexp; logits never leave VMEM.
    v = pl.program_id(1)
    nv = pl.num_programs(1)

    @pl.when(v == 0)
    def _():
        h = jnp.dot(x_ref[...], wd_ref[...],
                    preferred_element_type=jnp.float32) + bd_ref[...]
        h = _layernorm(_gelu(h), g_ref[...], b_ref[...], eps)
        h_s[...] = h.astype(h_s.dtype)              # transform computed once per row tile
        m_s[...] = jnp.full_like(m_s, -jnp.inf)
        l_s[...] = jnp.zeros_like(l_s)
        pick_s[...] = jnp.zeros_like(pick_s)

    logits = jnp.dot(h_s[...], decT_ref[...],
                     preferred_element_type=jnp.float32) + dbias_ref[...]    # (Rt, Vt)

    labels = lab_ref[...]                                                    # (Rt, 1) i32
    col = lax.broadcasted_iota(jnp.int32, logits.shape, 1) + v * vt
    pick_s[...] += jnp.sum(jnp.where(col == labels, logits, 0.0),
                           axis=-1, keepdims=True)

    # online logsumexp across vocab tiles.
    m_prev = m_s[...]
    m_new = jnp.maximum(m_prev, jnp.max(logits, axis=-1, keepdims=True))
    l_s[...] = (jnp.exp(m_prev - m_new) * l_s[...]
                + jnp.sum(jnp.exp(logits - m_new), axis=-1, keepdims=True))
    m_s[...] = m_new

    @pl.when(v == nv - 1)
    def _():
        valid = labels != -1
        logz = m_s[...] + jnp.log(l_s[...])
        nll = jnp.where(valid, logz - pick_s[...], 0.0)
        nll_sum = jnp.sum(nll)
        cnt = jnp.sum(valid.astype(jnp.float32))
        # lane-dense (8,128) partial-reduction block: [0,0]=sum(nll), [0,1]=sum(valid).
        r_i = lax.broadcasted_iota(jnp.int32, (8, 128), 0)
        c_i = lax.broadcasted_iota(jnp.int32, (8, 128), 1)
        blk = jnp.where((r_i == 0) & (c_i == 0), nll_sum,
                        jnp.where((r_i == 0) & (c_i == 1), cnt, 0.0))
        out_ref[...] = blk[None]


# ------------------------------ kernel wrappers ---------------------------------

def fused_embeddings(text_emb, visual_feats, vis_add, params, cfg):
    B, S, H = text_emb.shape
    Nv, Dv = visual_feats.shape[1], visual_feats.shape[2]
    T = S + Nv
    stream = (_nbytes((1, S, H), ACT_DTYPE) + _nbytes((1, Nv, Dv), MM_DTYPE)
              + _nbytes((1, T, H), ACT_DTYPE))
    weights = _nbytes((Dv, H), MM_DTYPE) + 4 * _nbytes((1, H), jnp.float32)
    extra = 4 * T * H * 4
    return pl.pallas_call(
        functools.partial(_embed_kernel, eps=cfg["layer_norm_eps"], text_len=S),
        grid=(B,),
        in_specs=[
            pl.BlockSpec((1, S, H), lambda b: (b, 0, 0)),
            pl.BlockSpec((1, Nv, Dv), lambda b: (b, 0, 0)),
            _wspec((Dv, H), lambda b: (0, 0)),
            _wspec((1, H), lambda b: (0, 0)),
            _wspec((1, H), lambda b: (0, 0)),
            _wspec((1, H), lambda b: (0, 0)),
            _wspec((1, H), lambda b: (0, 0)),
        ],
        out_specs=pl.BlockSpec((1, T, H), lambda b: (b, 0, 0)),
        out_shape=jax.ShapeDtypeStruct((B, T, H), ACT_DTYPE),
        compiler_params=pltpu.CompilerParams(
            dimension_semantics=("parallel",),
            vmem_limit_bytes=_vmem_limit(stream, weights, extra)),
    )(text_emb, visual_feats, params["proj_w"], params["proj_b"], vis_add,
      params["emb_ln_g"], params["emb_ln_b"])


def fused_encoder_layer(h, ext_bias, L, cfg):
    B, T, H = h.shape
    nh = cfg["num_heads"]
    dh = H // nh
    I = cfg["intermediate_size"]
    tq = _pick_tile(T, (256, 128, 64, 32, 16, 8))
    stream = (2 * _nbytes((1, tq, H), ACT_DTYPE) + _nbytes((1, T, H), ACT_DTYPE)
              + _nbytes((1, 1, T), ACT_DTYPE))
    weights = (2 * _nbytes((H, H), MM_DTYPE) + _nbytes((H, 2 * H), MM_DTYPE)
               + _nbytes((H, I), MM_DTYPE) + _nbytes((I, H), MM_DTYPE)
               + _nbytes((1, 3 * H), jnp.float32) + _nbytes((1, I), jnp.float32)
               + 6 * _nbytes((1, H), jnp.float32))
    extra = 4 * (tq * T + 3 * tq * H + 2 * T * H + tq * I)   # f32 in-kernel temporaries
    full = lambda shp: _wspec(shp, lambda b, r: (0, 0))
    return pl.pallas_call(
        functools.partial(_encoder_layer_kernel, num_heads=nh, head_dim=dh,
                          eps=cfg["layer_norm_eps"]),
        grid=(B, T // tq),
        in_specs=[
            pl.BlockSpec((1, tq, H), lambda b, r: (b, r, 0)),   # query-row tile
            pl.BlockSpec((1, T, H), lambda b, r: (b, 0, 0)),    # resident K/V source
            pl.BlockSpec((1, 1, T), lambda b, r: (b, 0, 0)),    # additive mask bias
            full((H, H)), full((1, H)),                          # Wq, bq
            full((H, 2 * H)), full((1, 2 * H)),                  # Wkv, bkv
            full((H, H)), full((1, H)),                          # Wo, bo
            full((1, H)), full((1, H)),                          # LN1
            full((H, I)), full((1, I)),                          # Wi, bi
            full((I, H)), full((1, H)),                          # Wf, bf
            full((1, H)), full((1, H)),                          # LN2
        ],
        out_specs=pl.BlockSpec((1, tq, H), lambda b, r: (b, r, 0)),
        out_shape=jax.ShapeDtypeStruct((B, T, H), ACT_DTYPE),
        compiler_params=pltpu.CompilerParams(
            dimension_semantics=("parallel", "parallel"),
            vmem_limit_bytes=_vmem_limit(stream, weights, extra)),
    )(h, h, ext_bias, L["wq"], L["bq"], L["wkv"], L["bkv"], L["wo"], L["bo"],
      L["ln1_g"], L["ln1_b"], L["wi"], L["bi"], L["wf"], L["bf"],
      L["ln2_g"], L["ln2_b"])


def fused_lm_head_ce(seq_flat, labels_flat, params, cfg):
    R, H = seq_flat.shape
    V = cfg["vocab_size"]
    Rt = _pick_tile(R, (256, 128, 64, 32, 16, 8))
    Vt = _pick_tile(V, (2048, 1024, 512, 256, 128))
    nrt, nvt = R // Rt, V // Vt
    stream = (_nbytes((Rt, H), ACT_DTYPE) + _nbytes((Rt, 1), jnp.int32)
              + _nbytes((H, Vt), MM_DTYPE) + _nbytes((1, Vt), jnp.float32)
              + _nbytes((1, 8, 128), jnp.float32))
    weights = _nbytes((H, H), MM_DTYPE) + 3 * _nbytes((1, H), jnp.float32)
    scratch = _nbytes((Rt, H), MM_DTYPE) + 3 * _nbytes((Rt, 1), jnp.float32)
    extra = scratch + 4 * Rt * Vt + 4 * Rt * H               # logits tile + transform temp
    parts = pl.pallas_call(
        functools.partial(_lm_head_ce_kernel, eps=cfg["layer_norm_eps"], vt=Vt),
        grid=(nrt, nvt),
        in_specs=[
            pl.BlockSpec((Rt, H), lambda r, v: (r, 0)),
            pl.BlockSpec((Rt, 1), lambda r, v: (r, 0)),
            _wspec((H, H), lambda r, v: (0, 0)),
            _wspec((1, H), lambda r, v: (0, 0)),
            _wspec((1, H), lambda r, v: (0, 0)),
            _wspec((1, H), lambda r, v: (0, 0)),
            pl.BlockSpec((H, Vt), lambda r, v: (0, v)),
            pl.BlockSpec((1, Vt), lambda r, v: (0, v)),
        ],
        out_specs=pl.BlockSpec((1, 8, 128), lambda r, v: (r, 0, 0)),
        out_shape=jax.ShapeDtypeStruct((nrt, 8, 128), jnp.float32),
        scratch_shapes=[pltpu.VMEM((Rt, H), MM_DTYPE),
                        pltpu.VMEM((Rt, 1), jnp.float32),
                        pltpu.VMEM((Rt, 1), jnp.float32),
                        pltpu.VMEM((Rt, 1), jnp.float32)],
        compiler_params=pltpu.CompilerParams(
            dimension_semantics=("parallel", "arbitrary"),
            vmem_limit_bytes=_vmem_limit(stream, weights, extra)),
    )(seq_flat, labels_flat.reshape(R, 1), params["lm_dense_w"], params["lm_dense_b"],
      params["lm_ln_g"], params["lm_ln_b"], params["dec_wT"], params["lm_bias"])
    nll_sum = jnp.sum(parts[:, 0, 0])
    valid_sum = jnp.sum(parts[:, 0, 1])
    return nll_sum / jnp.maximum(valid_sum, 1.0)


# -------------------------------- parameters ------------------------------------

def init_params(key, cfg):
    H = cfg["hidden_size"]; V = cfg["vocab_size"]; I = cfg["intermediate_size"]
    Dv = cfg["visual_embedding_dim"]; P = cfg["max_position_embeddings"]
    Tv = cfg["type_vocab_size"]
    keys = iter(jax.random.split(key, 128))

    def nrm(shape):
        return 0.02 * jax.random.normal(next(keys), shape, jnp.float32)

    p = {}
    p["word_emb"] = nrm((V, H)).at[cfg["pad_idx"]].set(0.0)      # padding_idx row zero
    p["pos_emb"] = nrm((P, H)).at[cfg["pad_idx"]].set(0.0)
    p["tok_type_emb"] = nrm((Tv, H))
    p["pos_emb_visual"] = nrm((P, H))
    p["tok_type_emb_visual"] = nrm((Tv, H))
    p["proj_w"] = nrm((Dv, H)).astype(MM_DTYPE)
    p["proj_b"] = jnp.zeros((1, H), jnp.float32)
    p["emb_ln_g"] = jnp.ones((1, H), jnp.float32)
    p["emb_ln_b"] = jnp.zeros((1, H), jnp.float32)
    p["layers"] = []
    for _ in range(cfg["num_layers"]):
        wk, wv = nrm((H, H)), nrm((H, H))
        p["layers"].append({
            "wq": nrm((H, H)).astype(MM_DTYPE), "bq": jnp.zeros((1, H), jnp.float32),
            "wkv": jnp.concatenate([wk, wv], axis=1).astype(MM_DTYPE),
            "bkv": jnp.zeros((1, 2 * H), jnp.float32),
            "wo": nrm((H, H)).astype(MM_DTYPE), "bo": jnp.zeros((1, H), jnp.float32),
            "ln1_g": jnp.ones((1, H), jnp.float32), "ln1_b": jnp.zeros((1, H), jnp.float32),
            "wi": nrm((H, I)).astype(MM_DTYPE), "bi": jnp.zeros((1, I), jnp.float32),
            "wf": nrm((I, H)).astype(MM_DTYPE), "bf": jnp.zeros((1, H), jnp.float32),
            "ln2_g": jnp.ones((1, H), jnp.float32), "ln2_b": jnp.zeros((1, H), jnp.float32),
        })
    p["lm_dense_w"] = nrm((H, H)).astype(MM_DTYPE)
    p["lm_dense_b"] = jnp.zeros((1, H), jnp.float32)
    p["lm_ln_g"] = jnp.ones((1, H), jnp.float32)
    p["lm_ln_b"] = jnp.zeros((1, H), jnp.float32)
    # decoder weight tied to word embeddings: pre-transposed bf16 copy made ONCE at init
    # (frozen forward only; live tying would need re-transposition per update).
    p["dec_wT"] = p["word_emb"].T.astype(MM_DTYPE)
    p["lm_bias"] = jnp.zeros((1, V), jnp.float32)
    p["cls_w"] = nrm((H, 2))
    p["cls_b"] = jnp.zeros((2,), jnp.float32)
    return p


# -------------------------------- forward pass -----------------------------------

def _ce_ignore_index(logits, labels):
    valid = labels != -1
    safe = jnp.where(valid, labels, 0)
    logz = jax.nn.logsumexp(logits, axis=-1)
    picked = jnp.take_along_axis(logits, safe[:, None], axis=-1)[:, 0]
    nll = jnp.where(valid, logz - picked, 0.0)
    return jnp.sum(nll) / jnp.maximum(jnp.sum(valid.astype(jnp.float32)), 1.0)


def roberta_v_pretraining_forward(params, input_ids, attention_mask,
                                  visual_embeddings, masked_lm_labels, vl_label, cfg):
    B, S = input_ids.shape
    Nv = visual_embeddings.shape[1]
    H = cfg["hidden_size"]
    pad = cfg["pad_idx"]
    T = S + Nv

    # --- BertVisioLinguisticEmbeddings: gathers / position ids in plain XLA ---
    tok_mask = (input_ids != pad).astype(jnp.int32)
    position_ids = jnp.cumsum(tok_mask, axis=1) * tok_mask + pad   # create_position_ids_from_input_ids
    text_emb = (jnp.take(params["word_emb"], input_ids, axis=0)
                + jnp.take(params["pos_emb"], position_ids, axis=0)
                + jnp.take(params["tok_type_emb"], jnp.zeros_like(input_ids), axis=0))
    text_emb = text_emb.astype(ACT_DTYPE)                          # halve streamed HBM bytes
    vis_bf = visual_embeddings.astype(MM_DTYPE)
    # visual_embeddings_type == 0 and position_ids_visual == 0 -> single (1, H) row
    vis_add = (params["pos_emb_visual"][0] + params["tok_type_emb_visual"][0]).reshape(1, H)

    emb = fused_embeddings(text_emb, vis_bf, vis_add, params, cfg)  # (B,T,H) bf16

    # --- extended attention mask (text mask ++ all-ones image mask), streamed as bf16 ---
    full_mask = jnp.concatenate(
        [attention_mask.astype(jnp.float32), jnp.ones((B, Nv), jnp.float32)], axis=1)
    ext_bias = ((1.0 - full_mask) * -10000.0).reshape(B, 1, T).astype(ACT_DTYPE)

    # --- BertEncoder: one fused Pallas kernel per layer (query-row tiled grid) ---
    h = emb
    for L in params["layers"]:
        h = fused_encoder_layer(h, ext_bias, L, cfg)
    sequence_output = h                                             # (B,T,H) bf16

    # TODO(synk): pooler + seq_relationship head are computed by the PyTorch module but
    # their results are discarded (task_matched=False, matched_label=None); skipped here.

    # --- RobertaLMHead + masked-LM CE fused and reduced entirely in one kernel ---
    mlm_loss = fused_lm_head_ce(sequence_output.reshape(B * T, H),
                                masked_lm_labels.reshape(B * T), params, cfg)

    # --- task_hm classifier (2-class head in plain XLA; high_dropout is identity in eval
    #     so the 5-pass average equals a single pass) ---
    cls_in = sequence_output[:, 0, :].astype(jnp.float32)
    hm_logits = cls_in @ params["cls_w"] + params["cls_b"]
    hm_loss = _ce_ignore_index(hm_logits, vl_label.reshape(-1))

    total_loss = mlm_loss + hm_loss
    losses = jnp.stack([mlm_loss, hm_loss])[None, :]
    return total_loss, losses, None


# ------------------------------------ main ----------------------------------------

if __name__ == "__main__":
    cfg = CFG
    B, S, Nv = 2, 8, 8
    key = jax.random.PRNGKey(0)
    kp, kid, kvis, klbl, kvl = jax.random.split(key, 5)

    params = init_params(kp, cfg)

    input_ids = jax.random.randint(kid, (B, S), 3, cfg["vocab_size"], dtype=jnp.int32)
    input_ids = input_ids.at[1, -2:].set(cfg["pad_idx"])            # add some padding
    attention_mask = (input_ids != cfg["pad_idx"]).astype(jnp.int32)
    visual_embeddings = jax.random.normal(
        kvis, (B, Nv, cfg["visual_embedding_dim"]), jnp.float32)

    text_labels = jax.random.randint(klbl, (B, S), 0, cfg["vocab_size"], dtype=jnp.int32)
    text_labels = text_labels.at[:, 0].set(-1)                      # ignored positions
    masked_lm_labels = jnp.concatenate(
        [text_labels, -jnp.ones((B, Nv), dtype=jnp.int32)], axis=1)     # (B, S+Nv)
    vl_label = jax.random.randint(kvl, (B,), 0, 2, dtype=jnp.int32)

    fwd = jax.jit(functools.partial(roberta_v_pretraining_forward, cfg=cfg))
    total_loss, losses, _ = fwd(params, input_ids, attention_mask, visual_embeddings,
                                masked_lm_labels, vl_label)

    jax.block_until_ready((total_loss, losses))
    assert bool(jnp.isfinite(total_loss)), "loss is not finite"
    assert losses.shape == (1, 2)
    print("KERNEL_OK")
</pallas_src>

<mosaic_0001>
module attributes {stable_mosaic.version = 11 : i64} {
  func.func @_embed_kernel(%arg0: i32, %arg1: memref<1x8x32xbf16, #tpu.memory_space<vmem>>, %arg2: memref<1x8x16xbf16, #tpu.memory_space<vmem>>, %arg3: memref<16x32xbf16, #tpu.memory_space<vmem>>, %arg4: memref<1x32xf32, #tpu.memory_space<vmem>>, %arg5: memref<1x32xf32, #tpu.memory_space<vmem>>, %arg6: memref<1x32xf32, #tpu.memory_space<vmem>>, %arg7: memref<1x32xf32, #tpu.memory_space<vmem>>, %arg8: memref<1x16x32xbf16, #tpu.memory_space<vmem>>) attributes {dimension_semantics = [#tpu.dimension_semantics<parallel>], iteration_bounds = array<i64: 2>, scalar_prefetch = 0 : i64, scratch_operands = 0 : i64, tpu.core_type = #tpu.core_type<tc>, window_params = [{transform_indices = @transform_0, window_bounds = array<i64: 1, 8, 32>}, {transform_indices = @transform_1, window_bounds = array<i64: 1, 8, 16>}, {pipeline_mode = #tpu.pipeline_mode<synchronous>, transform_indices = @transform_2, window_bounds = array<i64: 16, 32>}, {pipeline_mode = #tpu.pipeline_mode<synchronous>, transform_indices = @transform_3, window_bounds = array<i64: 1, 32>}, {pipeline_mode = #tpu.pipeline_mode<synchronous>, transform_indices = @transform_4, window_bounds = array<i64: 1, 32>}, {pipeline_mode = #tpu.pipeline_mode<synchronous>, transform_indices = @transform_5, window_bounds = array<i64: 1, 32>}, {pipeline_mode = #tpu.pipeline_mode<synchronous>, transform_indices = @transform_6, window_bounds = array<i64: 1, 32>}, {transform_indices = @transform_7, window_bounds = array<i64: 1, 16, 32>}]} {
    %c0 = arith.constant 0 : index
    %c0_0 = arith.constant 0 : index
    %0 = vector.load %arg6[%c0, %c0_0] : memref<1x32xf32, #tpu.memory_space<vmem>>, vector<1x32xf32>
    %c0_1 = arith.constant 0 : index
    %c0_2 = arith.constant 0 : index
    %1 = vector.load %arg7[%c0_1, %c0_2] : memref<1x32xf32, #tpu.memory_space<vmem>>, vector<1x32xf32>
    %c0_3 = arith.constant 0 : index
    %c0_4 = arith.constant 0 : index
    %c0_5 = arith.constant 0 : index
    %2 = vector.load %arg1[%c0_3, %c0_4, %c0_5] : memref<1x8x32xbf16, #tpu.memory_space<vmem>>, vector<1x8x32xbf16>
    %3 = vector.shape_cast %2 : vector<1x8x32xbf16> to vector<8x32xbf16>
    %4 = arith.extf %3 : vector<8x32xbf16> to vector<8x32xf32>
    %cst = arith.constant dense<0.000000e+00> : vector<8xf32>
    %5 = vector.multi_reduction <add>, %4, %cst [1] : vector<8x32xf32> to vector<8xf32>
    %6 = vector.shape_cast %5 : vector<8xf32> to vector<8x1xf32>
    %cst_6 = arith.constant 3.200000e+01 : f32
    %7 = vector.broadcast %cst_6 : f32 to vector<8x1xf32>
    %8 = arith.divf %6, %7 : vector<8x1xf32>
    %9 = vector.broadcast %8 : vector<8x1xf32> to vector<8x32xf32>
    %10 = arith.subf %4, %9 : vector<8x32xf32>
    %11 = arith.mulf %10, %10 : vector<8x32xf32>
    %cst_7 = arith.constant dense<0.000000e+00> : vector<8xf32>
    %12 = vector.multi_reduction <add>, %11, %cst_7 [1] : vector<8x32xf32> to vector<8xf32>
    %13 = vector.shape_cast %12 : vector<8xf32> to vector<8x1xf32>
    %cst_8 = arith.constant 3.200000e+01 : f32
    %14 = vector.broadcast %cst_8 : f32 to vector<8x1xf32>
    %15 = arith.divf %13, %14 : vector<8x1xf32>
    %16 = vector.broadcast %8 : vector<8x1xf32> to vector<8x32xf32>
    %17 = arith.subf %4, %16 : vector<8x32xf32>
    %cst_9 = arith.constant 9.99999974E-6 : f32
    %18 = vector.broadcast %cst_9 : f32 to vector<8x1xf32>
    %19 = arith.addf %15, %18 : vector<8x1xf32>
    %20 = math.rsqrt %19 : vector<8x1xf32>
    %21 = vector.broadcast %20 : vector<8x1xf32> to vector<8x32xf32>
    %22 = arith.mulf %17, %21 : vector<8x32xf32>
    %23 = vector.broadcast %0 : vector<1x32xf32> to vector<8x32xf32>
    %24 = arith.mulf %22, %23 : vector<8x32xf32>
    %25 = vector.broadcast %1 : vector<1x32xf32> to vector<8x32xf32>
    %26 = arith.addf %24, %25 : vector<8x32xf32>
    %27 = arith.truncf %26 : vector<8x32xf32> to vector<8x32xbf16>
    %c0_10 = arith.constant 0 : index
    %c0_11 = arith.constant 0 : index
    %c0_12 = arith.constant 0 : index
    %28 = vector.load %arg8[%c0_10, %c0_11, %c0_12] : memref<1x16x32xbf16, #tpu.memory_space<vmem>>, vector<1x8x32xbf16>
    %29 = vector.shape_cast %28 : vector<1x8x32xbf16> to vector<8x32xbf16>
    %30 = vector.shape_cast %27 : vector<8x32xbf16> to vector<1x8x32xbf16>
    tpu.vector_store %arg8[%c0_10, %c0_11, %c0_12], %30 {strides = array<i32>} : memref<1x16x32xbf16, #tpu.memory_space<vmem>>, vector<1x8x32xbf16>,
    %c0_13 = arith.constant 0 : index
    %c0_14 = arith.constant 0 : index
    %c0_15 = arith.constant 0 : index
    %31 = vector.load %arg2[%c0_13, %c0_14, %c0_15] : memref<1x8x16xbf16, #tpu.memory_space<vmem>>, vector<1x8x16xbf16>
    %32 = vector.shape_cast %31 : vector<1x8x16xbf16> to vector<8x16xbf16>
    %c0_16 = arith.constant 0 : index
    %c0_17 = arith.constant 0 : index
    %33 = vector.load %arg3[%c0_16, %c0_17] : memref<16x32xbf16, #tpu.memory_space<vmem>>, vector<16x32xbf16>
    %cst_18 = arith.constant dense<0.000000e+00> : vector<8x32xf32>
    %34 = tpu.matmul %32, %33, %cst_18 {dimension_numbers = #tpu.dot_dimension_numbers<[1], [0], [0], [1], [0, 0, 1, 1], [], []>} : vector<8x16xbf16>, vector<16x32xbf16>, vector<8x32xf32> -> vector<8x32xf32>
    %c0_19 = arith.constant 0 : index
    %c0_20 = arith.constant 0 : index
    %35 = vector.load %arg4[%c0_19, %c0_20] : memref<1x32xf32, #tpu.memory_space<vmem>>, vector<1x32xf32>
    %36 = vector.broadcast %35 : vector<1x32xf32> to vector<8x32xf32>
    %37 = arith.addf %34, %36 : vector<8x32xf32>
    %c0_21 = arith.constant 0 : index
    %c0_22 = arith.constant 0 : index
    %38 = vector.load %arg5[%c0_21, %c0_22] : memref<1x32xf32, #tpu.memory_space<vmem>>, vector<1x32xf32>
    %39 = vector.broadcast %38 : vector<1x32xf32> to vector<8x32xf32>
    %40 = arith.addf %37, %39 : vector<8x32xf32>
    %cst_23 = arith.constant dense<0.000000e+00> : vector<8xf32>
    %41 = vector.multi_reduction <add>, %40, %cst_23 [1] : vector<8x32xf32> to vector<8xf32>
    %42 = vector.shape_cast %41 : vector<8xf32> to vector<8x1xf32>
    %cst_24 = arith.constant 3.200000e+01 : f32
    %43 = vector.broadcast %cst_24 : f32 to vector<8x1xf32>
    %44 = arith.divf %42, %43 : vector<8x1xf32>
    %45 = vector.broadcast %44 : vector<8x1xf32> to vector<8x32xf32>
    %46 = arith.subf %40, %45 : vector<8x32xf32>
    %47 = arith.mulf %46, %46 : vector<8x32xf32>
    %cst_25 = arith.constant dense<0.000000e+00> : vector<8xf32>
    %48 = vector.multi_reduction <add>, %47, %cst_25 [1] : vector<8x32xf32> to vector<8xf32>
    %49 = vector.shape_cast %48 : vector<8xf32> to vector<8x1xf32>
    %cst_26 = arith.constant 3.200000e+01 : f32
    %50 = vector.broadcast %cst_26 : f32 to vector<8x1xf32>
    %51 = arith.divf %49, %50 : vector<8x1xf32>
    %52 = vector.broadcast %44 : vector<8x1xf32> to vector<8x32xf32>
    %53 = arith.subf %40, %52 : vector<8x32xf32>
    %cst_27 = arith.constant 9.99999974E-6 : f32
    %54 = vector.broadcast %cst_27 : f32 to vector<8x1xf32>
    %55 = arith.addf %51, %54 : vector<8x1xf32>
    %56 = math.rsqrt %55 : vector<8x1xf32>
    %57 = vector.broadcast %56 : vector<8x1xf32> to vector<8x32xf32>
    %58 = arith.mulf %53, %57 : vector<8x32xf32>
    %59 = vector.broadcast %0 : vector<1x32xf32> to vector<8x32xf32>
    %60 = arith.mulf %58, %59 : vector<8x32xf32>
    %61 = vector.broadcast %1 : vector<1x32xf32> to vector<8x32xf32>
    %62 = arith.addf %60, %61 : vector<8x32xf32>
    %63 = arith.truncf %62 : vector<8x32xf32> to vector<8x32xbf16>
    %c0_28 = arith.constant 0 : index
    %c8 = arith.constant 8 : index
    %c0_29 = arith.constant 0 : index
    %64 = vector.load %arg8[%c0_28, %c8, %c0_29] : memref<1x16x32xbf16, #tpu.memory_space<vmem>>, vector<1x8x32xbf16>
    %65 = vector.shape_cast %64 : vector<1x8x32xbf16> to vector<8x32xbf16>
    %66 = vector.shape_cast %63 : vector<8x32xbf16> to vector<1x8x32xbf16>
    tpu.vector_store %arg8[%c0_28, %c8, %c0_29], %66 {strides = array<i32>} : memref<1x16x32xbf16, #tpu.memory_space<vmem>>, vector<1x8x32xbf16>,
    return
  }
  func.func @transform_0(%arg0: i32) -> (i32, i32, i32) {
    %c0_i32 = arith.constant 0 : i32
    %c0_i32_0 = arith.constant 0 : i32
    %c0_i32_1 = arith.constant 0 : i32
    return %arg0, %c0_i32, %c0_i32_0 : i32, i32, i32
  }
  func.func @transform_1(%arg0: i32) -> (i32, i32, i32) {
    %c0_i32 = arith.constant 0 : i32
    %c0_i32_0 = arith.constant 0 : i32
    %c0_i32_1 = arith.constant 0 : i32
    return %arg0, %c0_i32, %c0_i32_0 : i32, i32, i32
  }
  func.func @transform_2(%arg0: i32) -> (i32, i32) {
    %c0_i32 = arith.constant 0 : i32
    %c0_i32_0 = arith.constant 0 : i32
    %c0_i32_1 = arith.constant 0 : i32
    return %c0_i32, %c0_i32_0 : i32, i32
  }
  func.func @transform_3(%arg0: i32) -> (i32, i32) {
    %c0_i32 = arith.constant 0 : i32
    %c0_i32_0 = arith.constant 0 : i32
    %c0_i32_1 = arith.constant 0 : i32
    return %c0_i32, %c0_i32_0 : i32, i32
  }
  func.func @transform_4(%arg0: i32) -> (i32, i32) {
    %c0_i32 = arith.constant 0 : i32
    %c0_i32_0 = arith.constant 0 : i32
    %c0_i32_1 = arith.constant 0 : i32
    return %c0_i32, %c0_i32_0 : i32, i32
  }
  func.func @transform_5(%arg0: i32) -> (i32, i32) {
    %c0_i32 = arith.constant 0 : i32
    %c0_i32_0 = arith.constant 0 : i32
    %c0_i32_1 = arith.constant 0 : i32
    return %c0_i32, %c0_i32_0 : i32, i32
  }
  func.func @transform_6(%arg0: i32) -> (i32, i32) {
    %c0_i32 = arith.constant 0 : i32
    %c0_i32_0 = arith.constant 0 : i32
    %c0_i32_1 = arith.constant 0 : i32
    return %c0_i32, %c0_i32_0 : i32, i32
  }
  func.func @transform_7(%arg0: i32) -> (i32, i32, i32) {
    %c0_i32 = arith.constant 0 : i32
    %c0_i32_0 = arith.constant 0 : i32
    %c0_i32_1 = arith.constant 0 : i32
    return %arg0, %c0_i32, %c0_i32_0 : i32, i32, i32
  }
}

module attributes {stable_mosaic.version = 11 : i64} {
  func.func @_encoder_layer_kernel(%arg0: i32, %arg1: i32, %arg2: memref<1x8x32xbf16, #tpu.memory_space<vmem>>, %arg3: memref<1x16x32xbf16, #tpu.memory_space<vmem>>, %arg4: memref<1x1x16xbf16, #tpu.memory_space<vmem>>, %arg5: memref<32x32xbf16, #tpu.memory_space<vmem>>, %arg6: memref<1x32xf32, #tpu.memory_space<vmem>>, %arg7: memref<32x64xbf16, #tpu.memory_space<vmem>>, %arg8: memref<1x64xf32, #tpu.memory_space<vmem>>, %arg9: memref<32x32xbf16, #tpu.memory_space<vmem>>, %arg10: memref<1x32xf32, #tpu.memory_space<vmem>>, %arg11: memref<1x32xf32, #tpu.memory_space<vmem>>, %arg12: memref<1x32xf32, #tpu.memory_space<vmem>>, %arg13: memref<32x64xbf16, #tpu.memory_space<vmem>>, %arg14: memref<1x64xf32, #tpu.memory_space<vmem>>, %arg15: memref<64x32xbf16, #tpu.memory_space<vmem>>, %arg16: memref<1x32xf32, #tpu.memory_space<vmem>>, %arg17: memref<1x32xf32, #tpu.memory_space<vmem>>, %arg18: memref<1x32xf32, #tpu.memory_space<vmem>>, %arg19: memref<1x8x32xbf16, #tpu.memory_space<vmem>>) attributes {dimension_semantics = [#tpu.dimension_semantics<parallel>, #tpu.dimension_semantics<parallel>], iteration_bounds = array<i64: 2, 2>, scalar_prefetch = 0 : i64, scratch_operands = 0 : i64, tpu.core_type = #tpu.core_type<tc>, window_params = [{transform_indices = @transform_0, window_bounds = array<i64: 1, 8, 32>}, {transform_indices = @transform_1, window_bounds = array<i64: 1, 16, 32>}, {transform_indices = @transform_2, window_bounds = array<i64: 1, 1, 16>}, {pipeline_mode = #tpu.pipeline_mode<synchronous>, transform_indices = @transform_3, window_bounds = array<i64: 32, 32>}, {pipeline_mode = #tpu.pipeline_mode<synchronous>, transform_indices = @transform_4, window_bounds = array<i64: 1, 32>}, {pipeline_mode = #tpu.pipeline_mode<synchronous>, transform_indices = @transform_5, window_bounds = array<i64: 32, 64>}, {pipeline_mode = #tpu.pipeline_mode<synchronous>, transform_indices = @transform_6, window_bounds = array<i64: 1, 64>}, {pipeline_mode = #tpu.pipeline_mode<synchronous>, transform_indices = @transform_7, window_bounds = array<i64: 32, 32>}, {pipeline_mode = #tpu.pipeline_mode<synchronous>, transform_indices = @transform_8, window_bounds = array<i64: 1, 32>}, {pipeline_mode = #tpu.pipeline_mode<synchronous>, transform_indices = @transform_9, window_bounds = array<i64: 1, 32>}, {pipeline_mode = #tpu.pipeline_mode<synchronous>, transform_indices = @transform_10, window_bounds = array<i64: 1, 32>}, {pipeline_mode = #tpu.pipeline_mode<synchronous>, transform_indices = @transform_11, window_bounds = array<i64: 32, 64>}, {pipeline_mode = #tpu.pipeline_mode<synchronous>, transform_indices = @transform_12, window_bounds = array<i64: 1, 64>}, {pipeline_mode = #tpu.pipeline_mode<synchronous>, transform_indices = @transform_13, window_bounds = array<i64: 64, 32>}, {pipeline_mode = #tpu.pipeline_mode<synchronous>, transform_indices = @transform_14, window_bounds = array<i64: 1, 32>}, {pipeline_mode = #tpu.pipeline_mode<synchronous>, transform_indices = @transform_15, window_bounds = array<i64: 1, 32>}, {pipeline_mode = #tpu.pipeline_mode<synchronous>, transform_indices = @transform_16, window_bounds = array<i64: 1, 32>}, {transform_indices = @transform_17, window_bounds = array<i64: 1, 8, 32>}]} {
    %c0 = arith.constant 0 : index
    %c0_0 = arith.constant 0 : index
    %c0_1 = arith.constant 0 : index
    %0 = vector.load %arg2[%c0, %c0_0, %c0_1] : memref<1x8x32xbf16, #tpu.memory_space<vmem>>, vector<1x8x32xbf16>
    %1 = vector.shape_cast %0 : vector<1x8x32xbf16> to vector<8x32xbf16>
    %c0_2 = arith.constant 0 : index
    %c0_3 = arith.constant 0 : index
    %c0_4 = arith.constant 0 : index
    %2 = vector.load %arg3[%c0_2, %c0_3, %c0_4] : memref<1x16x32xbf16, #tpu.memory_space<vmem>>, vector<1x16x32xbf16>
    %3 = vector.shape_cast %2 : vector<1x16x32xbf16> to vector<16x32xbf16>
    %c0_5 = arith.constant 0 : index
    %c0_6 = arith.constant 0 : index
    %c0_7 = arith.constant 0 : index
    %4 = vector.load %arg4[%c0_5, %c0_6, %c0_7] : memref<1x1x16xbf16, #tpu.memory_space<vmem>>, vector<1x1x16xbf16>
    %5 = vector.shape_cast %4 : vector<1x1x16xbf16> to vector<1x16xbf16>
    %6 = arith.extf %5 : vector<1x16xbf16> to vector<1x16xf32>
    %c0_8 = arith.constant 0 : index
    %c0_9 = arith.constant 0 : index
    %7 = vector.load %arg5[%c0_8, %c0_9] : memref<32x32xbf16, #tpu.memory_space<vmem>>, vector<32x32xbf16>
    %cst = arith.constant dense<0.000000e+00> : vector<8x32xf32>
    %8 = tpu.matmul %1, %7, %cst {dimension_numbers = #tpu.dot_dimension_numbers<[1], [0], [0], [1], [0, 0, 1, 1], [], []>} : vector<8x32xbf16>, vector<32x32xbf16>, vector<8x32xf32> -> vector<8x32xf32>
    %c0_10 = arith.constant 0 : index
    %c0_11 = arith.constant 0 : index
    %9 = vector.load %arg6[%c0_10, %c0_11] : memref<1x32xf32, #tpu.memory_space<vmem>>, vector<1x32xf32>
    %10 = vector.broadcast %9 : vector<1x32xf32> to vector<8x32xf32>
    %11 = arith.addf %8, %10 : vector<8x32xf32>
    %12 = arith.truncf %11 : vector<8x32xf32> to vector<8x32xbf16>
    %c0_12 = arith.constant 0 : index
    %c0_13 = arith.constant 0 : index
    %13 = vector.load %arg7[%c0_12, %c0_13] : memref<32x64xbf16, #tpu.memory_space<vmem>>, vector<32x64xbf16>
    %cst_14 = arith.constant dense<0.000000e+00> : vector<16x64xf32>
    %14 = tpu.matmul %3, %13, %cst_14 {dimension_numbers = #tpu.dot_dimension_numbers<[1], [0], [0], [1], [0, 0, 1, 1], [], []>} : vector<16x32xbf16>, vector<32x64xbf16>, vector<16x64xf32> -> vector<16x64xf32>
    %c0_15 = arith.constant 0 : index
    %c0_16 = arith.constant 0 : index
    %15 = vector.load %arg8[%c0_15, %c0_16] : memref<1x64xf32, #tpu.memory_space<vmem>>, vector<1x64xf32>
    %16 = vector.broadcast %15 : vector<1x64xf32> to vector<16x64xf32>
    %17 = arith.addf %14, %16 : vector<16x64xf32>
    %18 = arith.truncf %17 : vector<16x64xf32> to vector<16x64xbf16>
    %19 = vector.extract_strided_slice %18 {offsets = [0, 0], sizes = [16, 32], strides = [1, 1]} : vector<16x64xbf16> to vector<16x32xbf16>
    %20 = vector.extract_strided_slice %18 {offsets = [0, 32], sizes = [16, 32], strides = [1, 1]} : vector<16x64xbf16> to vector<16x32xbf16>
    %21 = vector.extract_strided_slice %12 {offsets = [0, 0], sizes = [8, 16], strides = [1, 1]} : vector<8x32xbf16> to vector<8x16xbf16>
    %22 = vector.extract_strided_slice %19 {offsets = [0, 0], sizes = [16, 16], strides = [1, 1]} : vector<16x32xbf16> to vector<16x16xbf16>
    %cst_17 = arith.constant dense<0.000000e+00> : vector<8x16xf32>
    %23 = tpu.matmul %21, %22, %cst_17 {dimension_numbers = #tpu.dot_dimension_numbers<[1], [1], [0], [0], [0, 0, 1, 0], [], []>} : vector<8x16xbf16>, vector<16x16xbf16>, vector<8x16xf32> -> vector<8x16xf32>
    %cst_18 = arith.constant 2.500000e-01 : f32
    %24 = vector.broadcast %cst_18 : f32 to vector<8x16xf32>
    %25 = arith.mulf %23, %24 : vector<8x16xf32>
    %26 = vector.broadcast %6 : vector<1x16xf32> to vector<8x16xf32>
    %27 = arith.addf %25, %26 : vector<8x16xf32>
    %cst_19 = arith.constant dense<0xFF800000> : vector<8xf32>
    %28 = vector.multi_reduction <maximumf>, %27, %cst_19 [1] : vector<8x16xf32> to vector<8xf32>
    %29 = vector.shape_cast %28 : vector<8xf32> to vector<8x1xf32>
    %30 = vector.broadcast %29 : vector<8x1xf32> to vector<8x16xf32>
    %31 = arith.subf %27, %30 : vector<8x16xf32>
    %32 = math.exp %31 : vector<8x16xf32>
    %cst_20 = arith.constant dense<0.000000e+00> : vector<8xf32>
    %33 = vector.multi_reduction <add>, %32, %cst_20 [1] : vector<8x16xf32> to vector<8xf32>
    %34 = vector.shape_cast %33 : vector<8xf32> to vector<8x1xf32>
    %35 = tpu.reciprocal %34 {approx = true} : vector<8x1xf32> -> vector<8x1xf32>
    %36 = vector.broadcast %35 : vector<8x1xf32> to vector<8x16xf32>
    %37 = arith.mulf %32, %36 : vector<8x16xf32>
    %38 = arith.truncf %37 : vector<8x16xf32> to vector<8x16xbf16>
    %39 = vector.extract_strided_slice %20 {offsets = [0, 0], sizes = [16, 16], strides = [1, 1]} : vector<16x32xbf16> to vector<16x16xbf16>
    %cst_21 = arith.constant dense<0.000000e+00> : vector<8x16xf32>
    %40 = tpu.matmul %38, %39, %cst_21 {dimension_numbers = #tpu.dot_dimension_numbers<[1], [0], [0], [1], [0, 0, 1, 1], [], []>} : vector<8x16xbf16>, vector<16x16xbf16>, vector<8x16xf32> -> vector<8x16xf32>
    %41 = arith.truncf %40 : vector<8x16xf32> to vector<8x16xbf16>
    %42 = vector.extract_strided_slice %12 {offsets = [0, 16], sizes = [8, 16], strides = [1, 1]} : vector<8x32xbf16> to vector<8x16xbf16>
    %43 = vector.extract_strided_slice %19 {offsets = [0, 16], sizes = [16, 16], strides = [1, 1]} : vector<16x32xbf16> to vector<16x16xbf16>
    %cst_22 = arith.constant dense<0.000000e+00> : vector<8x16xf32>
    %44 = tpu.matmul %42, %43, %cst_22 {dimension_numbers = #tpu.dot_dimension_numbers<[1], [1], [0], [0], [0, 0, 1, 0], [], []>} : vector<8x16xbf16>, vector<16x16xbf16>, vector<8x16xf32> -> vector<8x16xf32>
    %cst_23 = arith.constant 2.500000e-01 : f32
    %45 = vector.broadcast %cst_23 : f32 to vector<8x16xf32>
    %46 = arith.mulf %44, %45 : vector<8x16xf32>
    %47 = vector.broadcast %6 : vector<1x16xf32> to vector<8x16xf32>
    %48 = arith.addf %46, %47 : vector<8x16xf32>
    %cst_24 = arith.constant dense<0xFF800000> : vector<8xf32>
    %49 = vector.multi_reduction <maximumf>, %48, %cst_24 [1] : vector<8x16xf32> to vector<8xf32>
    %50 = vector.shape_cast %49 : vector<8xf32> to vector<8x1xf32>
    %51 = vector.broadcast %50 : vector<8x1xf32> to vector<8x16xf32>
    %52 = arith.subf %48, %51 : vector<8x16xf32>
    %53 = math.exp %52 : vector<8x16xf32>
    %cst_25 = arith.constant dense<0.000000e+00> : vector<8xf32>
    %54 = vector.multi_reduction <add>, %53, %cst_25 [1] : vector<8x16xf32> to vector<8xf32>
    %55 = vector.shape_cast %54 : vector<8xf32> to vector<8x1xf32>
    %56 = tpu.reciprocal %55 {approx = true} : vector<8x1xf32> -> vector<8x1xf32>
    %57 = vector.broadcast %56 : vector<8x1xf32> to vector<8x16xf32>
    %58 = arith.mulf %53, %57 : vector<8x16xf32>
    %59 = arith.truncf %58 : vector<8x16xf32> to vector<8x16xbf16>
    %60 = vector.extract_strided_slice %20 {offsets = [0, 16], sizes = [16, 16], strides = [1, 1]} : vector<16x32xbf16> to vector<16x16xbf16>
    %cst_26 = arith.constant dense<0.000000e+00> : vector<8x16xf32>
    %61 = tpu.matmul %59, %60, %cst_26 {dimension_numbers = #tpu.dot_dimension_numbers<[1], [0], [0], [1], [0, 0, 1, 1], [], []>} : vector<8x16xbf16>, vector<16x16xbf16>, vector<8x16xf32> -> vector<8x16xf32>
    %62 = arith.truncf %61 : vector<8x16xf32> to vector<8x16xbf16>
    %63 = tpu.concatenate %41, %62 in 1 : vector<8x16xbf16>, vector<8x16xbf16> -> vector<8x32xbf16>
    %c0_27 = arith.constant 0 : index
    %c0_28 = arith.constant 0 : index
    %64 = vector.load %arg9[%c0_27, %c0_28] : memref<32x32xbf16, #tpu.memory_space<vmem>>, vector<32x32xbf16>
    %cst_29 = arith.constant dense<0.000000e+00> : vector<8x32xf32>
    %65 = tpu.matmul %63, %64, %cst_29 {dimension_numbers = #tpu.dot_dimension_numbers<[1], [0], [0], [1], [0, 0, 1, 1], [], []>} : vector<8x32xbf16>, vector<32x32xbf16>, vector<8x32xf32> -> vector<8x32xf32>
    %c0_30 = arith.constant 0 : index
    %c0_31 = arith.constant 0 : index
    %66 = vector.load %arg10[%c0_30, %c0_31] : memref<1x32xf32, #tpu.memory_space<vmem>>, vector<1x32xf32>
    %67 = vector.broadcast %66 : vector<1x32xf32> to vector<8x32xf32>
    %68 = arith.addf %65, %67 : vector<8x32xf32>
    %69 = arith.extf %1 : vector<8x32xbf16> to vector<8x32xf32>
    %70 = arith.addf %68, %69 : vector<8x32xf32>
    %c0_32 = arith.constant 0 : index
    %c0_33 = arith.constant 0 : index
    %71 = vector.load %arg11[%c0_32, %c0_33] : memref<1x32xf32, #tpu.memory_space<vmem>>, vector<1x32xf32>
    %c0_34 = arith.constant 0 : index
    %c0_35 = arith.constant 0 : index
    %72 = vector.load %arg12[%c0_34, %c0_35] : memref<1x32xf32, #tpu.memory_space<vmem>>, vector<1x32xf32>
    %cst_36 = arith.constant dense<0.000000e+00> : vector<8xf32>
    %73 = vector.multi_reduction <add>, %70, %cst_36 [1] : vector<8x32xf32> to vector<8xf32>
    %74 = vector.shape_cast %73 : vector<8xf32> to vector<8x1xf32>
    %cst_37 = arith.constant 3.200000e+01 : f32
    %75 = vector.broadcast %cst_37 : f32 to vector<8x1xf32>
    %76 = arith.divf %74, %75 : vector<8x1xf32>
    %77 = vector.broadcast %76 : vector<8x1xf32> to vector<8x32xf32>
    %78 = arith.subf %70, %77 : vector<8x32xf32>
    %79 = arith.mulf %78, %78 : vector<8x32xf32>
    %cst_38 = arith.constant dense<0.000000e+00> : vector<8xf32>
    %80 = vector.multi_reduction <add>, %79, %cst_38 [1] : vector<8x32xf32> to vector<8xf32>
    %81 = vector.shape_cast %80 : vector<8xf32> to vector<8x1xf32>
    %cst_39 = arith.constant 3.200000e+01 : f32
    %82 = vector.broadcast %cst_39 : f32 to vector<8x1xf32>
    %83 = arith.divf %81, %82 : vector<8x1xf32>
    %84 = vector.broadcast %76 : vector<8x1xf32> to vector<8x32xf32>
    %85 = arith.subf %70, %84 : vector<8x32xf32>
    %cst_40 = arith.constant 9.99999974E-6 : f32
    %86 = vector.broadcast %cst_40 : f32 to vector<8x1xf32>
    %87 = arith.addf %83, %86 : vector<8x1xf32>
    %88 = math.rsqrt %87 : vector<8x1xf32>
    %89 = vector.broadcast %88 : vector<8x1xf32> to vector<8x32xf32>
    %90 = arith.mulf %85, %89 : vector<8x32xf32>
    %91 = vector.broadcast %71 : vector<1x32xf32> to vector<8x32xf32>
    %92 = arith.mulf %90, %91 : vector<8x32xf32>
    %93 = vector.broadcast %72 : vector<1x32xf32> to vector<8x32xf32>
    %94 = arith.addf %92, %93 : vector<8x32xf32>
    %95 = arith.truncf %94 : vector<8x32xf32> to vector<8x32xbf16>
    %c0_41 = arith.constant 0 : index
    %c0_42 = arith.constant 0 : index
    %96 = vector.load %arg13[%c0_41, %c0_42] : memref<32x64xbf16, #tpu.memory_space<vmem>>, vector<32x64xbf16>
    %cst_43 = arith.constant dense<0.000000e+00> : vector<8x64xf32>
    %97 = tpu.matmul %95, %96, %cst_43 {dimension_numbers = #tpu.dot_dimension_numbers<[1], [0], [0], [1], [0, 0, 1, 1], [], []>} : vector<8x32xbf16>, vector<32x64xbf16>, vector<8x64xf32> -> vector<8x64xf32>
    %c0_44 = arith.constant 0 : index
    %c0_45 = arith.constant 0 : index
    %98 = vector.load %arg14[%c0_44, %c0_45] : memref<1x64xf32, #tpu.memory_space<vmem>>, vector<1x64xf32>
    %99 = vector.broadcast %98 : vector<1x64xf32> to vector<8x64xf32>
    %100 = arith.addf %97, %99 : vector<8x64xf32>
    %cst_46 = arith.constant 5.000000e-01 : f32
    %101 = vector.broadcast %cst_46 : f32 to vector<8x64xf32>
    %102 = arith.mulf %101, %100 : vector<8x64xf32>
    %cst_47 = arith.constant 0.707106769 : f32
    %103 = vector.broadcast %cst_47 : f32 to vector<8x64xf32>
    %104 = arith.mulf %100, %103 : vector<8x64xf32>
    %105 = math.erf %104 : vector<8x64xf32>
    %cst_48 = arith.constant 1.000000e+00 : f32
    %106 = vector.broadcast %cst_48 : f32 to vector<8x64xf32>
    %107 = arith.addf %106, %105 : vector<8x64xf32>
    %108 = arith.mulf %102, %107 : vector<8x64xf32>
    %109 = arith.truncf %108 : vector<8x64xf32> to vector<8x64xbf16>
    %c0_49 = arith.constant 0 : index
    %c0_50 = arith.constant 0 : index
    %110 = vector.load %arg15[%c0_49, %c0_50] : memref<64x32xbf16, #tpu.memory_space<vmem>>, vector<64x32xbf16>
    %cst_51 = arith.constant dense<0.000000e+00> : vector<8x32xf32>
    %111 = tpu.matmul %109, %110, %cst_51 {dimension_numbers = #tpu.dot_dimension_numbers<[1], [0], [0], [1], [0, 0, 1, 1], [], []>} : vector<8x64xbf16>, vector<64x32xbf16>, vector<8x32xf32> -> vector<8x32xf32>
    %c0_52 = arith.constant 0 : index
    %c0_53 = arith.constant 0 : index
    %112 = vector.load %arg16[%c0_52, %c0_53] : memref<1x32xf32, #tpu.memory_space<vmem>>, vector<1x32xf32>
    %113 = vector.broadcast %112 : vector<1x32xf32> to vector<8x32xf32>
    %114 = arith.addf %111, %113 : vector<8x32xf32>
    %115 = arith.addf %114, %94 : vector<8x32xf32>
    %c0_54 = arith.constant 0 : index
    %c0_55 = arith.constant 0 : index
    %116 = vector.load %arg17[%c0_54, %c0_55] : memref<1x32xf32, #tpu.memory_space<vmem>>, vector<1x32xf32>
    %c0_56 = arith.constant 0 : index
    %c0_57 = arith.constant 0 : index
    %117 = vector.load %arg18[%c0_56, %c0_57] : memref<1x32xf32, #tpu.memory_space<vmem>>, vector<1x32xf32>
    %cst_58 = arith.constant dense<0.000000e+00> : vector<8xf32>
    %118 = vector.multi_reduction <add>, %115, %cst_58 [1] : vector<8x32xf32> to vector<8xf32>
    %119 = vector.shape_cast %118 : vector<8xf32> to vector<8x1xf32>
    %cst_59 = arith.constant 3.200000e+01 : f32
    %120 = vector.broadcast %cst_59 : f32 to vector<8x1xf32>
    %121 = arith.divf %119, %120 : vector<8x1xf32>
    %122 = vector.broadcast %121 : vector<8x1xf32> to vector<8x32xf32>
    %123 = arith.subf %115, %122 : vector<8x32xf32>
    %124 = arith.mulf %123, %123 : vector<8x32xf32>
    %cst_60 = arith.constant dense<0.000000e+00> : vector<8xf32>
    %125 = vector.multi_reduction <add>, %124, %cst_60 [1] : vector<8x32xf32> to vector<8xf32>
    %126 = vector.shape_cast %125 : vector<8xf32> to vector<8x1xf32>
    %cst_61 = arith.constant 3.200000e+01 : f32
    %127 = vector.broadcast %cst_61 : f32 to vector<8x1xf32>
    %128 = arith.divf %126, %127 : vector<8x1xf32>
    %129 = vector.broadcast %121 : vector<8x1xf32> to vector<8x32xf32>
    %130 = arith.subf %115, %129 : vector<8x32xf32>
    %cst_62 = arith.constant 9.99999974E-6 : f32
    %131 = vector.broadcast %cst_62 : f32 to vector<8x1xf32>
    %132 = arith.addf %128, %131 : vector<8x1xf32>
    %133 = math.rsqrt %132 : vector<8x1xf32>
    %134 = vector.broadcast %133 : vector<8x1xf32> to vector<8x32xf32>
    %135 = arith.mulf %130, %134 : vector<8x32xf32>
    %136 = vector.broadcast %116 : vector<1x32xf32> to vector<8x32xf32>
    %137 = arith.mulf %135, %136 : vector<8x32xf32>
    %138 = vector.broadcast %117 : vector<1x32xf32> to vector<8x32xf32>
    %139 = arith.addf %137, %138 : vector<8x32xf32>
    %140 = vector.shape_cast %139 : vector<8x32xf32> to vector<1x8x32xf32>
    %141 = arith.truncf %140 : vector<1x8x32xf32> to vector<1x8x32xbf16>
    %c0_63 = arith.constant 0 : index
    %c0_64 = arith.constant 0 : index
    %c0_65 = arith.constant 0 : index
    %142 = vector.load %arg19[%c0_63, %c0_64, %c0_65] : memref<1x8x32xbf16, #tpu.memory_space<vmem>>, vector<1x8x32xbf16>
    tpu.vector_store %arg19[%c0_63, %c0_64, %c0_65], %141 {strides = array<i32>} : memref<1x8x32xbf16, #tpu.memory_space<vmem>>, vector<1x8x32xbf16>,
    return
  }
  func.func @transform_0(%arg0: i32, %arg1: i32) -> (i32, i32, i32) {
    %c0_i32 = arith.constant 0 : i32
    %c0_i32_0 = arith.constant 0 : i32
    return %arg0, %arg1, %c0_i32 : i32, i32, i32
  }
  func.func @transform_1(%arg0: i32, %arg1: i32) -> (i32, i32, i32) {
    %c0_i32 = arith.constant 0 : i32
    %c0_i32_0 = arith.constant 0 : i32
    %c0_i32_1 = arith.constant 0 : i32
    return %arg0, %c0_i32, %c0_i32_0 : i32, i32, i32
  }
  func.func @transform_2(%arg0: i32, %arg1: i32) -> (i32, i32, i32) {
    %c0_i32 = arith.constant 0 : i32
    %c0_i32_0 = arith.constant 0 : i32
    %c0_i32_1 = arith.constant 0 : i32
    return %arg0, %c0_i32, %c0_i32_0 : i32, i32, i32
  }
  func.func @transform_3(%arg0: i32, %arg1: i32) -> (i32, i32) {
    %c0_i32 = arith.constant 0 : i32
    %c0_i32_0 = arith.constant 0 : i32
    %c0_i32_1 = arith.constant 0 : i32
    return %c0_i32, %c0_i32_0 : i32, i32
  }
  func.func @transform_4(%arg0: i32, %arg1: i32) -> (i32, i32) {
    %c0_i32 = arith.constant 0 : i32
    %c0_i32_0 = arith.constant 0 : i32
    %c0_i32_1 = arith.constant 0 : i32
    return %c0_i32, %c0_i32_0 : i32, i32
  }
  func.func @transform_5(%arg0: i32, %arg1: i32) -> (i32, i32) {
    %c0_i32 = arith.constant 0 : i32
    %c0_i32_0 = arith.constant 0 : i32
    %c0_i32_1 = arith.constant 0 : i32
    return %c0_i32, %c0_i32_0 : i32, i32
  }
  func.func @transform_6(%arg0: i32, %arg1: i32) -> (i32, i32) {
    %c0_i32 = arith.constant 0 : i32
    %c0_i32_0 = arith.constant 0 : i32
    %c0_i32_1 = arith.constant 0 : i32
    return %c0_i32, %c0_i32_0 : i32, i32
  }
  func.func @transform_7(%arg0: i32, %arg1: i32) -> (i32, i32) {
    %c0_i32 = arith.constant 0 : i32
    %c0_i32_0 = arith.constant 0 : i32
    %c0_i32_1 = arith.constant 0 : i32
    return %c0_i32, %c0_i32_0 : i32, i32
  }
  func.func @transform_8(%arg0: i32, %arg1: i32) -> (i32, i32) {
    %c0_i32 = arith.constant 0 : i32
    %c0_i32_0 = arith.constant 0 : i32
    %c0_i32_1 = arith.constant 0 : i32
    return %c0_i32, %c0_i32_0 : i32, i32
  }
  func.func @transform_9(%arg0: i32, %arg1: i32) -> (i32, i32) {
    %c0_i32 = arith.constant 0 : i32
    %c0_i32_0 = arith.constant 0 : i32
    %c0_i32_1 = arith.constant 0 : i32
    return %c0_i32, %c0_i32_0 : i32, i32
  }
  func.func @transform_10(%arg0: i32, %arg1: i32) -> (i32, i32) {
    %c0_i32 = arith.constant 0 : i32
    %c0_i32_0 = arith.constant 0 : i32
    %c0_i32_1 = arith.constant 0 : i32
    return %c0_i32, %c0_i32_0 : i32, i32
  }
  func.func @transform_11(%arg0: i32, %arg1: i32) -> (i32, i32) {
    %c0_i32 = arith.constant 0 : i32
    %c0_i32_0 = arith.constant 0 : i32
    %c0_i32_1 = arith.constant 0 : i32
    return %c0_i32, %c0_i32_0 : i32, i32
  }
  func.func @transform_12(%arg0: i32, %arg1: i32) -> (i32, i32) {
    %c0_i32 = arith.constant 0 : i32
    %c0_i32_0 = arith.constant 0 : i32
    %c0_i32_1 = arith.constant 0 : i32
    return %c0_i32, %c0_i32_0 : i32, i32
  }
  func.func @transform_13(%arg0: i32, %arg1: i32) -> (i32, i32) {
    %c0_i32 = arith.constant 0 : i32
    %c0_i32_0 = arith.constant 0 : i32
    %c0_i32_1 = arith.constant 0 : i32
    return %c0_i32, %c0_i32_0 : i32, i32
  }
  func.func @transform_14(%arg0: i32, %arg1: i32) -> (i32, i32) {
    %c0_i32 = arith.constant 0 : i32
    %c0_i32_0 = arith.constant 0 : i32
    %c0_i32_1 = arith.constant 0 : i32
    return %c0_i32, %c0_i32_0 : i32, i32
  }
  func.func @transform_15(%arg0: i32, %arg1: i32) -> (i32, i32) {
    %c0_i32 = arith.constant 0 : i32
    %c0_i32_0 = arith.constant 0 : i32
    %c0_i32_1 = arith.constant 0 : i32
    return %c0_i32, %c0_i32_0 : i32, i32
  }
  func.func @transform_16(%arg0: i32, %arg1: i32) -> (i32, i32) {
    %c0_i32 = arith.constant 0 : i32
    %c0_i32_0 = arith.constant 0 : i32
    %c0_i32_1 = arith.constant 0 : i32
    return %c0_i32, %c0_i32_0 : i32, i32
  }
  func.func @transform_17(%arg0: i32, %arg1: i32) -> (i32, i32, i32) {
    %c0_i32 = arith.constant 0 : i32
    %c0_i32_0 = arith.constant 0 : i32
    return %arg0, %arg1, %c0_i32 : i32, i32, i32
  }
}

module attributes {stable_mosaic.version = 11 : i64} {
  func.func @_lm_head_ce_kernel(%arg0: i32, %arg1: i32, %arg2: memref<16x32xbf16, #tpu.memory_space<vmem>>, %arg3: memref<16x1xi32, #tpu.memory_space<vmem>>, %arg4: memref<32x32xbf16, #tpu.memory_space<vmem>>, %arg5: memref<1x32xf32, #tpu.memory_space<vmem>>, %arg6: memref<1x32xf32, #tpu.memory_space<vmem>>, %arg7: memref<1x32xf32, #tpu.memory_space<vmem>>, %arg8: memref<32x128xbf16, #tpu.memory_space<vmem>>, %arg9: memref<1x128xf32, #tpu.memory_space<vmem>>, %arg10: memref<1x8x128xf32, #tpu.memory_space<vmem>>, %arg11: memref<16x32xbf16, #tpu.memory_space<vmem>>, %arg12: memref<16x1xf32, #tpu.memory_space<vmem>>, %arg13: memref<16x1xf32, #tpu.memory_space<vmem>>, %arg14: memref<16x1xf32, #tpu.memory_space<vmem>>) attributes {dimension_semantics = [#tpu.dimension_semantics<parallel>, #tpu.dimension_semantics<arbitrary>], iteration_bounds = array<i64: 2, 2>, scalar_prefetch = 0 : i64, scratch_operands = 4 : i64, tpu.core_type = #tpu.core_type<tc>, window_params = [{transform_indices = @transform_0, window_bounds = array<i64: 16, 32>}, {transform_indices = @transform_1, window_bounds = array<i64: 16, 1>}, {pipeline_mode = #tpu.pipeline_mode<synchronous>, transform_indices = @transform_2, window_bounds = array<i64: 32, 32>}, {pipeline_mode = #tpu.pipeline_mode<synchronous>, transform_indices = @transform_3, window_bounds = array<i64: 1, 32>}, {pipeline_mode = #tpu.pipeline_mode<synchronous>, transform_indices = @transform_4, window_bounds = array<i64: 1, 32>}, {pipeline_mode = #tpu.pipeline_mode<synchronous>, transform_indices = @transform_5, window_bounds = array<i64: 1, 32>}, {transform_indices = @transform_6, window_bounds = array<i64: 32, 128>}, {transform_indices = @transform_7, window_bounds = array<i64: 1, 128>}, {transform_indices = @transform_8, window_bounds = array<i64: 1, 8, 128>}]} {
    %c0_i32 = arith.constant 0 : i32
    %0 = arith.cmpi eq, %arg1, %c0_i32 : i32
    %1 = arith.extui %0 : i1 to i32
    %c0_i32_0 = arith.constant 0 : i32
    %2 = arith.cmpi ne, %1, %c0_i32_0 : i32
    scf.if %2 {
      %c0_25 = arith.constant 0 : index
      %c0_26 = arith.constant 0 : index
      %42 = vector.load %arg2[%c0_25, %c0_26] : memref<16x32xbf16, #tpu.memory_space<vmem>>, vector<16x32xbf16>
      %c0_27 = arith.constant 0 : index
      %c0_28 = arith.constant 0 : index
      %43 = vector.load %arg4[%c0_27, %c0_28] : memref<32x32xbf16, #tpu.memory_space<vmem>>, vector<32x32xbf16>
      %cst_29 = arith.constant dense<0.000000e+00> : vector<16x32xf32>
      %44 = tpu.matmul %42, %43, %cst_29 {dimension_numbers = #tpu.dot_dimension_numbers<[1], [0], [0], [1], [0, 0, 1, 1], [], []>} : vector<16x32xbf16>, vector<32x32xbf16>, vector<16x32xf32> -> vector<16x32xf32>
      %c0_30 = arith.constant 0 : index
      %c0_31 = arith.constant 0 : index
      %45 = vector.load %arg5[%c0_30, %c0_31] : memref<1x32xf32, #tpu.memory_space<vmem>>, vector<1x32xf32>
      %46 = vector.broadcast %45 : vector<1x32xf32> to vector<16x32xf32>
      %47 = arith.addf %44, %46 : vector<16x32xf32>
      %cst_32 = arith.constant 5.000000e-01 : f32
      %48 = vector.broadcast %cst_32 : f32 to vector<16x32xf32>
      %49 = arith.mulf %48, %47 : vector<16x32xf32>
      %cst_33 = arith.constant 0.707106769 : f32
      %50 = vector.broadcast %cst_33 : f32 to vector<16x32xf32>
      %51 = arith.mulf %47, %50 : vector<16x32xf32>
      %52 = math.erf %51 : vector<16x32xf32>
      %cst_34 = arith.constant 1.000000e+00 : f32
      %53 = vector.broadcast %cst_34 : f32 to vector<16x32xf32>
      %54 = arith.addf %53, %52 : vector<16x32xf32>
      %55 = arith.mulf %49, %54 : vector<16x32xf32>
      %c0_35 = arith.constant 0 : index
      %c0_36 = arith.constant 0 : index
      %56 = vector.load %arg6[%c0_35, %c0_36] : memref<1x32xf32, #tpu.memory_space<vmem>>, vector<1x32xf32>
      %c0_37 = arith.constant 0 : index
      %c0_38 = arith.constant 0 : index
      %57 = vector.load %arg7[%c0_37, %c0_38] : memref<1x32xf32, #tpu.memory_space<vmem>>, vector<1x32xf32>
      %cst_39 = arith.constant dense<0.000000e+00> : vector<16xf32>
      %58 = vector.multi_reduction <add>, %55, %cst_39 [1] : vector<16x32xf32> to vector<16xf32>
      %59 = vector.shape_cast %58 : vector<16xf32> to vector<16x1xf32>
      %cst_40 = arith.constant 3.200000e+01 : f32
      %60 = vector.broadcast %cst_40 : f32 to vector<16x1xf32>
      %61 = arith.divf %59, %60 : vector<16x1xf32>
      %62 = vector.broadcast %61 : vector<16x1xf32> to vector<16x32xf32>
      %63 = arith.subf %55, %62 : vector<16x32xf32>
      %64 = arith.mulf %63, %63 : vector<16x32xf32>
      %cst_41 = arith.constant dense<0.000000e+00> : vector<16xf32>
      %65 = vector.multi_reduction <add>, %64, %cst_41 [1] : vector<16x32xf32> to vector<16xf32>
      %66 = vector.shape_cast %65 : vector<16xf32> to vector<16x1xf32>
      %cst_42 = arith.constant 3.200000e+01 : f32
      %67 = vector.broadcast %cst_42 : f32 to vector<16x1xf32>
      %68 = arith.divf %66, %67 : vector<16x1xf32>
      %69 = vector.broadcast %61 : vector<16x1xf32> to vector<16x32xf32>
      %70 = arith.subf %55, %69 : vector<16x32xf32>
      %cst_43 = arith.constant 9.99999974E-6 : f32
      %71 = vector.broadcast %cst_43 : f32 to vector<16x1xf32>
      %72 = arith.addf %68, %71 : vector<16x1xf32>
      %73 = math.rsqrt %72 : vector<16x1xf32>
      %74 = vector.broadcast %73 : vector<16x1xf32> to vector<16x32xf32>
      %75 = arith.mulf %70, %74 : vector<16x32xf32>
      %76 = vector.broadcast %56 : vector<1x32xf32> to vector<16x32xf32>
      %77 = arith.mulf %75, %76 : vector<16x32xf32>
      %78 = vector.broadcast %57 : vector<1x32xf32> to vector<16x32xf32>
      %79 = arith.addf %77, %78 : vector<16x32xf32>
      %80 = arith.truncf %79 : vector<16x32xf32> to vector<16x32xbf16>
      %c0_44 = arith.constant 0 : index
      %c0_45 = arith.constant 0 : index
      %81 = vector.load %arg11[%c0_44, %c0_45] : memref<16x32xbf16, #tpu.memory_space<vmem>>, vector<16x32xbf16>
      tpu.vector_store %arg11[%c0_44, %c0_45], %80 {strides = array<i32>} : memref<16x32xbf16, #tpu.memory_space<vmem>>, vector<16x32xbf16>,
      %cst_46 = arith.constant 0xFF800000 : f32
      %82 = vector.broadcast %cst_46 : f32 to vector<16x1xf32>
      %c0_47 = arith.constant 0 : index
      %c0_48 = arith.constant 0 : index
      %83 = vector.load %arg12[%c0_47, %c0_48] : memref<16x1xf32, #tpu.memory_space<vmem>>, vector<16x1xf32>
      tpu.vector_store %arg12[%c0_47, %c0_48], %82 {strides = array<i32>} : memref<16x1xf32, #tpu.memory_space<vmem>>, vector<16x1xf32>,
      %cst_49 = arith.constant 0.000000e+00 : f32
      %84 = vector.broadcast %cst_49 : f32 to vector<16x1xf32>
      %c0_50 = arith.constant 0 : index
      %c0_51 = arith.constant 0 : index
      %85 = vector.load %arg13[%c0_50, %c0_51] : memref<16x1xf32, #tpu.memory_space<vmem>>, vector<16x1xf32>
      tpu.vector_store %arg13[%c0_50, %c0_51], %84 {strides = array<i32>} : memref<16x1xf32, #tpu.memory_space<vmem>>, vector<16x1xf32>,
      %cst_52 = arith.constant 0.000000e+00 : f32
      %86 = vector.broadcast %cst_52 : f32 to vector<16x1xf32>
      %c0_53 = arith.constant 0 : index
      %c0_54 = arith.constant 0 : index
      %87 = vector.load %arg14[%c0_53, %c0_54] : memref<16x1xf32, #tpu.memory_space<vmem>>, vector<16x1xf32>
      tpu.vector_store %arg14[%c0_53, %c0_54], %86 {strides = array<i32>} : memref<16x1xf32, #tpu.memory_space<vmem>>, vector<16x1xf32>,
    } else {
    }
    %c0 = arith.constant 0 : index
    %c0_1 = arith.constant 0 : index
    %3 = vector.load %arg11[%c0, %c0_1] : memref<16x32xbf16, #tpu.memory_space<vmem>>, vector<16x32xbf16>
    %c0_2 = arith.constant 0 : index
    %c0_3 = arith.constant 0 : index
    %4 = vector.load %arg8[%c0_2, %c0_3] : memref<32x128xbf16, #tpu.memory_space<vmem>>, vector<32x128xbf16>
    %cst = arith.constant dense<0.000000e+00> : vector<16x128xf32>
    %5 = tpu.matmul %3, %4, %cst {dimension_numbers = #tpu.dot_dimension_numbers<[1], [0], [0], [1], [0, 0, 1, 1], [], []>} : vector<16x32xbf16>, vector<32x128xbf16>, vector<16x128xf32> -> vector<16x128xf32>
    %c0_4 = arith.constant 0 : index
    %c0_5 = arith.constant 0 : index
    %6 = vector.load %arg9[%c0_4, %c0_5] : memref<1x128xf32, #tpu.memory_space<vmem>>, vector<1x128xf32>
    %7 = vector.broadcast %6 : vector<1x128xf32> to vector<16x128xf32>
    %8 = arith.addf %5, %7 : vector<16x128xf32>
    %c0_6 = arith.constant 0 : index
    %c0_7 = arith.constant 0 : index
    %9 = vector.load %arg3[%c0_6, %c0_7] : memref<16x1xi32, #tpu.memory_space<vmem>>, vector<16x1xi32>
    %10 = tpu.iota {dimensions = array<i32: 1>} : vector<16x128xi32>
    %c128_i32 = arith.constant 128 : i32
    %11 = arith.muli %arg1, %c128_i32 : i32
    %12 = vector.broadcast %11 : i32 to vector<16x128xi32>
    %13 = arith.addi %10, %12 : vector<16x128xi32>
    %c0_8 = arith.constant 0 : index
    %c0_9 = arith.constant 0 : index
    %14 = vector.load %arg14[%c0_8, %c0_9] : memref<16x1xf32, #tpu.memory_space<vmem>>, vector<16x1xf32>
    %15 = vector.broadcast %9 : vector<16x1xi32> to vector<16x128xi32>
    %16 = arith.cmpi eq, %13, %15 : vector<16x128xi32>
    %cst_10 = arith.constant 0.000000e+00 : f32
    %17 = vector.broadcast %cst_10 : f32 to vector<16x128xf32>
    %18 = arith.select %16, %8, %17 : vector<16x128xi1>, vector<16x128xf32>
    %cst_11 = arith.constant dense<0.000000e+00> : vector<16xf32>
    %19 = vector.multi_reduction <add>, %18, %cst_11 [1] : vector<16x128xf32> to vector<16xf32>
    %20 = vector.shape_cast %19 : vector<16xf32> to vector<16x1xf32>
    %21 = arith.addf %14, %20 : vector<16x1xf32>
    %c0_12 = arith.constant 0 : index
    %c0_13 = arith.constant 0 : index
    %22 = vector.load %arg14[%c0_12, %c0_13] : memref<16x1xf32, #tpu.memory_space<vmem>>, vector<16x1xf32>
    tpu.vector_store %arg14[%c0_12, %c0_13], %21 {strides = array<i32>} : memref<16x1xf32, #tpu.memory_space<vmem>>, vector<16x1xf32>,
    %c0_14 = arith.constant 0 : index
    %c0_15 = arith.constant 0 : index
    %23 = vector.load %arg12[%c0_14, %c0_15] : memref<16x1xf32, #tpu.memory_space<vmem>>, vector<16x1xf32>
    %cst_16 = arith.constant dense<0xFF800000> : vector<16xf32>
    %24 = vector.multi_reduction <maximumf>, %8, %cst_16 [1] : vector<16x128xf32> to vector<16xf32>
    %25 = vector.shape_cast %24 : vector<16xf32> to vector<16x1xf32>
    %26 = arith.maximumf %23, %25 : vector<16x1xf32>
    %27 = arith.subf %23, %26 : vector<16x1xf32>
    %28 = math.exp %27 : vector<16x1xf32>
    %c0_17 = arith.constant 0 : index
    %c0_18 = arith.constant 0 : index
    %29 = vector.load %arg13[%c0_17, %c0_18] : memref<16x1xf32, #tpu.memory_space<vmem>>, vector<16x1xf32>
    %30 = arith.mulf %28, %29 : vector<16x1xf32>
    %31 = vector.broadcast %26 : vector<16x1xf32> to vector<16x128xf32>
    %32 = arith.subf %8, %31 : vector<16x128xf32>
    %33 = math.exp %32 : vector<16x128xf32>
    %cst_19 = arith.constant dense<0.000000e+00> : vector<16xf32>
    %34 = vector.multi_reduction <add>, %33, %cst_19 [1] : vector<16x128xf32> to vector<16xf32>
    %35 = vector.shape_cast %34 : vector<16xf32> to vector<16x1xf32>
    %36 = arith.addf %30, %35 : vector<16x1xf32>
    %c0_20 = arith.constant 0 : index
    %c0_21 = arith.constant 0 : index
    %37 = vector.load %arg13[%c0_20, %c0_21] : memref<16x1xf32, #tpu.memory_space<vmem>>, vector<16x1xf32>
    tpu.vector_store %arg13[%c0_20, %c0_21], %36 {strides = array<i32>} : memref<16x1xf32, #tpu.memory_space<vmem>>, vector<16x1xf32>,
    %c0_22 = arith.constant 0 : index
    %c0_23 = arith.constant 0 : index
    %38 = vector.load %arg12[%c0_22, %c0_23] : memref<16x1xf32, #tpu.memory_space<vmem>>, vector<16x1xf32>
    tpu.vector_store %arg12[%c0_22, %c0_23], %26 {strides = array<i32>} : memref<16x1xf32, #tpu.memory_space<vmem>>, vector<16x1xf32>,
    %c1_i32 = arith.constant 1 : i32
    %39 = arith.cmpi eq, %arg1, %c1_i32 : i32
    %40 = arith.extui %39 : i1 to i32
    %c0_i32_24 = arith.constant 0 : i32
    %41 = arith.cmpi ne, %40, %c0_i32_24 : i32
    scf.if %41 {
      %c-1_i32 = arith.constant -1 : i32
      %42 = vector.broadcast %c-1_i32 : i32 to vector<16x1xi32>
      %43 = arith.cmpi ne, %9, %42 : vector<16x1xi32>
      %c0_25 = arith.constant 0 : index
      %c0_26 = arith.constant 0 : index
      %44 = vector.load %arg12[%c0_25, %c0_26] : memref<16x1xf32, #tpu.memory_space<vmem>>, vector<16x1xf32>
      %c0_27 = arith.constant 0 : index
      %c0_28 = arith.constant 0 : index
      %45 = vector.load %arg13[%c0_27, %c0_28] : memref<16x1xf32, #tpu.memory_space<vmem>>, vector<16x1xf32>
      %46 = math.log %45 : vector<16x1xf32>
      %47 = arith.addf %44, %46 : vector<16x1xf32>
      %c0_29 = arith.constant 0 : index
      %c0_30 = arith.constant 0 : index
      %48 = vector.load %arg14[%c0_29, %c0_30] : memref<16x1xf32, #tpu.memory_space<vmem>>, vector<16x1xf32>
      %49 = arith.subf %47, %48 : vector<16x1xf32>
      %cst_31 = arith.constant 0.000000e+00 : f32
      %50 = vector.broadcast %cst_31 : f32 to vector<16x1xf32>
      %51 = arith.select %43, %49, %50 : vector<16x1xi1>, vector<16x1xf32>
      %52 = vector.shape_cast %51 : vector<16x1xf32> to vector<1x16x1xf32>
      %cst_32 = arith.constant dense<0.000000e+00> : vector<1xf32>
      %53 = vector.multi_reduction <add>, %52, %cst_32 [1, 2] : vector<1x16x1xf32> to vector<1xf32>
      %54 = vector.shape_cast %53 : vector<1xf32> to vector<1x1x1xf32>
      %55 = vector.extract %54[0, 0, 0] : f32 from vector<1x1x1xf32>
      %56 = arith.extui %43 : vector<16x1xi1> to vector<16x1xi32>
      %57 = arith.sitofp %56 : vector<16x1xi32> to vector<16x1xf32>
      %58 = vector.shape_cast %57 : vector<16x1xf32> to vector<1x16x1xf32>
      %cst_33 = arith.constant dense<0.000000e+00> : vector<1xf32>
      %59 = vector.multi_reduction <add>, %58, %cst_33 [1, 2] : vector<1x16x1xf32> to vector<1xf32>
      %60 = vector.shape_cast %59 : vector<1xf32> to vector<1x1x1xf32>
      %61 = vector.extract %60[0, 0, 0] : f32 from vector<1x1x1xf32>
      %62 = tpu.iota {dimensions = array<i32: 0>} : vector<8x128xi32>
      %63 = tpu.iota {dimensions = array<i32: 1>} : vector<8x128xi32>
      %c0_i32_34 = arith.constant 0 : i32
      %64 = vector.broadcast %c0_i32_34 : i32 to vector<8x128xi32>
      %65 = arith.cmpi eq, %62, %64 : vector<8x128xi32>
      %c0_i32_35 = arith.constant 0 : i32
      %66 = vector.broadcast %c0_i32_35 : i32 to vector<8x128xi32>
      %67 = arith.cmpi eq, %63, %66 : vector<8x128xi32>
      %68 = arith.andi %65, %67 : vector<8x128xi1>
      %c0_i32_36 = arith.constant 0 : i32
      %69 = vector.broadcast %c0_i32_36 : i32 to vector<8x128xi32>
      %70 = arith.cmpi eq, %62, %69 : vector<8x128xi32>
      %c1_i32_37 = arith.constant 1 : i32
      %71 = vector.broadcast %c1_i32_37 : i32 to vector<8x128xi32>
      %72 = arith.cmpi eq, %63, %71 : vector<8x128xi32>
      %73 = arith.andi %70, %72 : vector<8x128xi1>
      %cst_38 = arith.constant 0.000000e+00 : f32
      %74 = vector.broadcast %61 : f32 to vector<8x128xf32>
      %75 = vector.broadcast %cst_38 : f32 to vector<8x128xf32>
      %76 = arith.select %73, %74, %75 : vector<8x128xi1>, vector<8x128xf32>
      %77 = vector.broadcast %55 : f32 to vector<8x128xf32>
      %78 = arith.select %68, %77, %76 : vector<8x128xi1>, vector<8x128xf32>
      %79 = vector.shape_cast %78 : vector<8x128xf32> to vector<1x8x128xf32>
      %c0_39 = arith.constant 0 : index
      %c0_40 = arith.constant 0 : index
      %c0_41 = arith.constant 0 : index
      %80 = vector.load %arg10[%c0_39, %c0_40, %c0_41] : memref<1x8x128xf32, #tpu.memory_space<vmem>>, vector<1x8x128xf32>
      tpu.vector_store %arg10[%c0_39, %c0_40, %c0_41], %79 {strides = array<i32>} : memref<1x8x128xf32, #tpu.memory_space<vmem>>, vector<1x8x128xf32>,
    } else {
    }
    return
  }
  func.func @transform_0(%arg0: i32, %arg1: i32) -> (i32, i32) {
    %c0_i32 = arith.constant 0 : i32
    %c0_i32_0 = arith.constant 0 : i32
    return %arg0, %c0_i32 : i32, i32
  }
  func.func @transform_1(%arg0: i32, %arg1: i32) -> (i32, i32) {
    %c0_i32 = arith.constant 0 : i32
    %c0_i32_0 = arith.constant 0 : i32
    return %arg0, %c0_i32 : i32, i32
  }
  func.func @transform_2(%arg0: i32, %arg1: i32) -> (i32, i32) {
    %c0_i32 = arith.constant 0 : i32
    %c0_i32_0 = arith.constant 0 : i32
    %c0_i32_1 = arith.constant 0 : i32
    return %c0_i32, %c0_i32_0 : i32, i32
  }
  func.func @transform_3(%arg0: i32, %arg1: i32) -> (i32, i32) {
    %c0_i32 = arith.constant 0 : i32
    %c0_i32_0 = arith.constant 0 : i32
    %c0_i32_1 = arith.constant 0 : i32
    return %c0_i32, %c0_i32_0 : i32, i32
  }
  func.func @transform_4(%arg0: i32, %arg1: i32) -> (i32, i32) {
    %c0_i32 = arith.constant 0 : i32
    %c0_i32_0 = arith.constant 0 : i32
    %c0_i32_1 = arith.constant 0 : i32
    return %c0_i32, %c0_i32_0 : i32, i32
  }
  func.func @transform_5(%arg0: i32, %arg1: i32) -> (i32, i32) {
    %c0_i32 = arith.constant 0 : i32
    %c0_i32_0 = arith.constant 0 : i32
    %c0_i32_1 = arith.constant 0 : i32
    return %c0_i32, %c0_i32_0 : i32, i32
  }
  func.func @transform_6(%arg0: i32, %arg1: i32) -> (i32, i32) {
    %c0_i32 = arith.constant 0 : i32
    %c0_i32_0 = arith.constant 0 : i32
    return %c0_i32, %arg1 : i32, i32
  }
  func.func @transform_7(%arg0: i32, %arg1: i32) -> (i32, i32) {
    %c0_i32 = arith.constant 0 : i32
    %c0_i32_0 = arith.constant 0 : i32
    return %c0_i32, %arg1 : i32, i32
  }
  func.func @transform_8(%arg0: i32, %arg1: i32) -> (i32, i32, i32) {
    %c0_i32 = arith.constant 0 : i32
    %c0_i32_0 = arith.constant 0 : i32
    %c0_i32_1 = arith.constant 0 : i32
    return %arg0, %c0_i32, %c0_i32_0 : i32, i32, i32
  }
}

</mosaic_0001>

<llo_original>
// kernel: roberta_v_pretraining_forward.4
$region0: #{roberta_v_pretraining_forward.4}
  #allocation0 [shape = 'u32[]', space=smem, size = 0x4, offset = 0x4, fixed_abs, tag = 'smem constant byte address 0x4 - core index']
  #allocation1 [shape = 'u32[72,128]{1,0:T(1,128)}', space=vmem, size = 0x9000, scoped, tag = 'internal scratch']
  %s0 = inlined_call_operand.vmem [shape: bf16[2,8,32], index: 0, kind: input, shape index: {}]
  %s1 = inlined_call_operand.vmem [shape: bf16[2,8,16], index: 1, kind: input, shape index: {}]
  %s2 = inlined_call_operand.vmem [shape: bf16[16,32], index: 2, kind: input, shape index: {}]
  %s3 = inlined_call_operand.vmem [shape: f32[1,32], index: 3, kind: input, shape index: {}]
  %s4 = inlined_call_operand.vmem [shape: f32[1,32], index: 4, kind: input, shape index: {}]
  %s5 = inlined_call_operand.vmem [shape: f32[1,32], index: 5, kind: input, shape index: {}]
  %s6 = inlined_call_operand.vmem [shape: f32[1,32], index: 6, kind: input, shape index: {}]
  %s7 = inlined_call_operand.vmem [shape: bf16[2,16,32], index: 7, kind: output, shape index: {}]
  %s8 = sld [smem:[#allocation0]]
  $region61: #{roberta_v_pretraining_forward.4} parent=0
    _
  %s10 = ssub.s32 1, %s8
  %s11 = scalar_select 0, %s10, %s8
  loop: start=0, step=1, limit=4
  $region2: #{roberta_v_pretraining_forward.4} parent=0 // loop_pre_header
    _
  $region3: #{roberta_v_pretraining_forward.4} parent=0 // loop_header
    %s13 = sphi 0, %s17
    %p14 = scmp.ge.s32.totalorder %s13, 4
    %s23 = sphi 0, %s25
    %s26 = sphi 0, %s23
    %s27 = sphi 0, %s26
    %s43 = sphi 0, %s27
    %s49 = sphi 0, %s51
    %s52 = sphi 0, %s49
    %s53 = sphi 0, %s52
    %s69 = sphi 0, %s53
    %s73 = sphi 0, %s73
    %s75 = sphi 0, %s73
    %s76 = sphi 0, %s75
    %s90 = sphi 0, %s76
    %s94 = sphi 0, %s94
    %s96 = sphi 0, %s94
    %s97 = sphi 0, %s96
    %s111 = sphi 0, %s97
    %s115 = sphi 0, %s115
    %s117 = sphi 0, %s115
    %s118 = sphi 0, %s117
    %s132 = sphi 0, %s118
    %s136 = sphi 0, %s136
    %s138 = sphi 0, %s136
    %s139 = sphi 0, %s138
    %s153 = sphi 0, %s139
    %s157 = sphi 0, %s157
    %s159 = sphi 0, %s157
    %s160 = sphi 0, %s159
    %s174 = sphi 0, %s160
    %s180 = sphi 0, %s182
    %s183 = sphi 0, %s180
    %s184 = sphi 0, %s183
    %s200 = sphi 0, %s184
  $region4: #{roberta_v_pretraining_forward.4} parent=0 // loop_header_branch
    %16 = sbr.rel (%p14) target = $region8
  $region5: #{roberta_v_pretraining_forward.4} parent=0 // loop_body
    %s18 = ssub.s32 %s13, 1
    %s19 = ssub.s32 %s13, 2
    %s20 = sadd.s32 %s13, 1
    %s21 = ssub.s32 %s13, %s20
    %p22 = scmp.eq.s32.totalorder %s21, 0
    %s24 = sadd.s32 %s23, 1
    %s25 = scalar_select %p22, %s23, %s24
    %p28 = pneg %p22
    %p29 = scmp.eq.s32.totalorder %s13, 1
    %p30 = por %p28, %p29
    %p31 = scmp.ne.s32.totalorder %s23, %s26
    %p32 = scmp.eq.s32.totalorder %s13, 0
    %p33 = por %p31, %p32
    %p34 = scmp.ne.s32.totalorder %s23, %s26
    %p35 = scmp.eq.s32.totalorder %s18, 1
    %p36 = por %p34, %p35
    %p37 = scmp.ne.s32.totalorder %s26, %s27
    %p38 = scmp.eq.s32.totalorder %s18, 0
    %p39 = por %p37, %p38
    %p40 = scmp.ne.s32.totalorder %s26, %s27
    %p41 = scmp.eq.s32.totalorder %s19, 1
    %p42 = por %p40, %p41
    %p44 = scmp.ne.s32.totalorder %s27, %s43
    %p45 = scmp.eq.s32.totalorder %s19, 0
    %p46 = por %p44, %p45
    %s47 = ssub.s32 %s13, %s20
    %p48 = scmp.eq.s32.totalorder %s47, 0
    %s50 = sadd.s32 %s49, 1
    %s51 = scalar_select %p48, %s49, %s50
    %p54 = pneg %p48
    %p55 = scmp.eq.s32.totalorder %s13, 1
    %p56 = por %p54, %p55
    %p57 = scmp.ne.s32.totalorder %s49, %s52
    %p58 = scmp.eq.s32.totalorder %s13, 0
    %p59 = por %p57, %p58
    %p60 = scmp.ne.s32.totalorder %s49, %s52
    %p61 = scmp.eq.s32.totalorder %s18, 1
    %p62 = por %p60, %p61
    %p63 = scmp.ne.s32.totalorder %s52, %s53
    %p64 = scmp.eq.s32.totalorder %s18, 0
    %p65 = por %p63, %p64
    %p66 = scmp.ne.s32.totalorder %s52, %s53
    %p67 = scmp.eq.s32.totalorder %s19, 1
    %p68 = por %p66, %p67
    %p70 = scmp.ne.s32.totalorder %s53, %s69
    %p71 = scmp.eq.s32.totalorder %s19, 0
    %p72 = por %p70, %p71
    %s74 = sadd.s32 %s73, 1
    %p77 = scmp.eq.s32.totalorder %s13, 1
    %p78 = scmp.ne.s32.totalorder %s73, %s75
    %p79 = scmp.eq.s32.totalorder %s13, 0
    %p80 = por %p78, %p79
    %p81 = scmp.ne.s32.totalorder %s73, %s75
    %p82 = scmp.eq.s32.totalorder %s18, 1
    %p83 = por %p81, %p82
    %p84 = scmp.ne.s32.totalorder %s75, %s76
    %p85 = scmp.eq.s32.totalorder %s18, 0
    %p86 = por %p84, %p85
    %p87 = scmp.ne.s32.totalorder %s75, %s76
    %p88 = scmp.eq.s32.totalorder %s19, 1
    %p89 = por %p87, %p88
    %p91 = scmp.ne.s32.totalorder %s76, %s90
    %p92 = scmp.eq.s32.totalorder %s19, 0
    %p93 = por %p91, %p92
    %s95 = sadd.s32 %s94, 1
    %p98 = scmp.eq.s32.totalorder %s13, 1
    %p99 = scmp.ne.s32.totalorder %s94, %s96
    %p100 = scmp.eq.s32.totalorder %s13, 0
    %p101 = por %p99, %p100
    %p102 = scmp.ne.s32.totalorder %s94, %s96
    %p103 = scmp.eq.s32.totalorder %s18, 1
    %p104 = por %p102, %p103
    %p105 = scmp.ne.s32.totalorder %s96, %s97
    %p106 = scmp.eq.s32.totalorder %s18, 0
    %p107 = por %p105, %p106
    %p108 = scmp.ne.s32.totalorder %s96, %s97
    %p109 = scmp.eq.s32.totalorder %s19, 1
    %p110 = por %p108, %p109
    %p112 = scmp.ne.s32.totalorder %s97, %s111
    %p113 = scmp.eq.s32.totalorder %s19, 0
    %p114 = por %p112, %p113
    %s116 = sadd.s32 %s115, 1
    %p119 = scmp.eq.s32.totalorder %s13, 1
    %p120 = scmp.ne.s32.totalorder %s115, %s117
    %p121 = scmp.eq.s32.totalorder %s13, 0
    %p122 = por %p120, %p121
    %p123 = scmp.ne.s32.totalorder %s115, %s117
    %p124 = scmp.eq.s32.totalorder %s18, 1
    %p125 = por %p123, %p124
    %p126 = scmp.ne.s32.totalorder %s117, %s118
    %p127 = scmp.eq.s32.totalorder %s18, 0
    %p128 = por %p126, %p127
    %p129 = scmp.ne.s32.totalorder %s117, %s118
    %p130 = scmp.eq.s32.totalorder %s19, 1
    %p131 = por %p129, %p130
    %p133 = scmp.ne.s32.totalorder %s118, %s132
    %p134 = scmp.eq.s32.totalorder %s19, 0
    %p135 = por %p133, %p134
    %s137 = sadd.s32 %s136, 1
    %p140 = scmp.eq.s32.totalorder %s13, 1
    %p141 = scmp.ne.s32.totalorder %s136, %s138
    %p142 = scmp.eq.s32.totalorder %s13, 0
    %p143 = por %p141, %p142
    %p144 = scmp.ne.s32.totalorder %s136, %s138
    %p145 = scmp.eq.s32.totalorder %s18, 1
    %p146 = por %p144, %p145
    %p147 = scmp.ne.s32.totalorder %s138, %s139
    %p148 = scmp.eq.s32.totalorder %s18, 0
    %p149 = por %p147, %p148
    %p150 = scmp.ne.s32.totalorder %s138, %s139
    %p151 = scmp.eq.s32.totalorder %s19, 1
    %p152 = por %p150, %p151
    %p154 = scmp.ne.s32.totalorder %s139, %s153
    %p155 = scmp.eq.s32.totalorder %s19, 0
    %p156 = por %p154, %p155
    %s158 = sadd.s32 %s157, 1
    %p161 = scmp.eq.s32.totalorder %s13, 1
    %p162 = scmp.ne.s32.totalorder %s157, %s159
    %p163 = scmp.eq.s32.totalorder %s13, 0
    %p164 = por %p162, %p163
    %p165 = scmp.ne.s32.totalorder %s157, %s159
    %p166 = scmp.eq.s32.totalorder %s18, 1
    %p167 = por %p165, %p166
    %p168 = scmp.ne.s32.totalorder %s159, %s160
    %p169 = scmp.eq.s32.totalorder %s18, 0
    %p170 = por %p168, %p169
    %p171 = scmp.ne.s32.totalorder %s159, %s160
    %p172 = scmp.eq.s32.totalorder %s19, 1
    %p173 = por %p171, %p172
    %p175 = scmp.ne.s32.totalorder %s160, %s174
    %p176 = scmp.eq.s32.totalorder %s19, 0
    %p177 = por %p175, %p176
    %s178 = ssub.s32 %s13, %s20
    %p179 = scmp.eq.s32.totalorder %s178, 0
    %s181 = sadd.s32 %s180, 1
    %s182 = scalar_select %p179, %s180, %s181
    %p185 = pneg %p179
    %p186 = scmp.eq.s32.totalorder %s13, 1
    %p187 = por %p185, %p186
    %p188 = scmp.ne.s32.totalorder %s180, %s183
    %p189 = scmp.eq.s32.totalorder %s13, 0
    %p190 = por %p188, %p189
    %p191 = scmp.ne.s32.totalorder %s180, %s183
    %p192 = scmp.eq.s32.totalorder %s18, 1
    %p193 = por %p191, %p192
    %p194 = scmp.ne.s32.totalorder %s183, %s184
    %p195 = scmp.eq.s32.totalorder %s18, 0
    %p196 = por %p194, %p195
    %p197 = scmp.ne.s32.totalorder %s183, %s184
    %p198 = scmp.eq.s32.totalorder %s19, 1
    %p199 = por %p197, %p198
    %p201 = scmp.ne.s32.totalorder %s184, %s200
    %p202 = scmp.eq.s32.totalorder %s19, 0
    %p203 = por %p201, %p202
    %p204 = scmp.le.s32.totalorder 1, %s13
    %p205 = scmp.lt.s32.totalorder %s13, 3
    %p206 = pnand %p204, %p205
    %p207 = pneg %p206
    // Predicated region
    $region9: #{roberta_v_pretraining_forward.4} parent=5 // pred_check
      _
    $region10: #{roberta_v_pretraining_forward.4} parent=5 // pred_check_branch
      %209 = sbr.rel (%p206) target = $region12
    $region11: #{roberta_v_pretraining_forward.4} parent=5 // pred_region
      %s210 = ssub.s32 %s13, 1
      // Predicated region
      $region13: #{roberta_v_pretraining_forward.4} parent=11 // pred_check
        %p211 = pneg %p86
      $region14: #{roberta_v_pretraining_forward.4} parent=11 // pred_check_branch
        %213 = sbr.rel (%p211) target = $region16
      $region15: #{roberta_v_pretraining_forward.4} parent=11 // pred_region
        _
      $region16: #{roberta_v_pretraining_forward.4} parent=11 // pred_fallthru
        _
      // Predicated region
      $region17: #{roberta_v_pretraining_forward.4} parent=11 // pred_check
        %p214 = pneg %p107
      $region18: #{roberta_v_pretraining_forward.4} parent=11 // pred_check_branch
        %216 = sbr.rel (%p214) target = $region20
      $region19: #{roberta_v_pretraining_forward.4} parent=11 // pred_region
        _
      $region20: #{roberta_v_pretraining_forward.4} parent=11 // pred_fallthru
        _
      // Predicated region
      $region21: #{roberta_v_pretraining_forward.4} parent=11 // pred_check
        %p217 = pneg %p128
      $region22: #{roberta_v_pretraining_forward.4} parent=11 // pred_check_branch
        %219 = sbr.rel (%p217) target = $region24
      $region23: #{roberta_v_pretraining_forward.4} parent=11 // pred_region
        _
      $region24: #{roberta_v_pretraining_forward.4} parent=11 // pred_fallthru
        _
      // Predicated region
      $region25: #{roberta_v_pretraining_forward.4} parent=11 // pred_check
        %p220 = pneg %p149
      $region26: #{roberta_v_pretraining_forward.4} parent=11 // pred_check_branch
        %222 = sbr.rel (%p220) target = $region28
      $region27: #{roberta_v_pretraining_forward.4} parent=11 // pred_region
        _
      $region28: #{roberta_v_pretraining_forward.4} parent=11 // pred_fallthru
        _
      // Predicated region
      $region29: #{roberta_v_pretraining_forward.4} parent=11 // pred_check
        %p223 = pneg %p170
      $region30: #{roberta_v_pretraining_forward.4} parent=11 // pred_check_branch
        %225 = sbr.rel (%p223) target = $region32
      $region31: #{roberta_v_pretraining_forward.4} parent=11 // pred_region
        _
      $region32: #{roberta_v_pretraining_forward.4} parent=11 // pred_fallthru
        _
    $region12: #{roberta_v_pretraining_forward.4} parent=5 // pred_fallthru
      _
    %p226 = scmp.lt.s32.totalorder %s13, 2
    // Predicated region
    $region33: #{roberta_v_pretraining_forward.4} parent=5 // pred_check
      %p227 = pneg %p226
    $region34: #{roberta_v_pretraining_forward.4} parent=5 // pred_check_branch
      %229 = sbr.rel (%p227) target = $region36
    $region35: #{roberta_v_pretraining_forward.4} parent=5 // pred_region
      // Predicated region
      $region37: #{roberta_v_pretraining_forward.4} parent=35 // pred_check
        %p230 = pneg %p33
      $region38: #{roberta_v_pretraining_forward.4} parent=35 // pred_check_branch
        %232 = sbr.rel (%p230) target = $region40
      $region39: #{roberta_v_pretraining_forward.4} parent=35 // pred_region
        %p233 = scmp.lt.s32.totalorder %s13, 1
        %s234 = scalar_select %p233, %s13, 1
        %s235 = smul.addr %s234, 4
        %s236 = scalar_lea.vmem %s0, %s235
      $region40: #{roberta_v_pretraining_forward.4} parent=35 // pred_fallthru
        _
      // Predicated region
      $region41: #{roberta_v_pretraining_forward.4} parent=35 // pred_check
        %p237 = pneg %p59
      $region42: #{roberta_v_pretraining_forward.4} parent=35 // pred_check_branch
        %239 = sbr.rel (%p237) target = $region44
      $region43: #{roberta_v_pretraining_forward.4} parent=35 // pred_region
        %p240 = scmp.lt.s32.totalorder %s13, 1
        %s241 = scalar_select %p240, %s13, 1
        %s242 = smul.addr %s241, 4
        %s243 = scalar_lea.vmem %s1, %s242
      $region44: #{roberta_v_pretraining_forward.4} parent=35 // pred_fallthru
        _
    $region36: #{roberta_v_pretraining_forward.4} parent=5 // pred_fallthru
      _
    %p244 = scmp.le.s32.totalorder 1, %s13
    %p245 = scmp.lt.s32.totalorder %s13, 3
    %p246 = pnand %p244, %p245
    %p247 = pneg %p246
    // Predicated region
    $region45: #{roberta_v_pretraining_forward.4} parent=5 // pred_check
      _
    $region46: #{roberta_v_pretraining_forward.4} parent=5 // pred_check_branch
      %249 = sbr.rel (%p246) target = $region48
    $region47: #{roberta_v_pretraining_forward.4} parent=5 // pred_region
      %s250 = ssub.s32 %s13, 1
      %p251 = scmp.lt.s32.totalorder %s18, 1
      %s252 = scalar_select %p251, %s18, 1
      %s253 = smul.addr %s252, 4
      %s254 = scalar_lea.vmem %s0, %s253
      %p255 = pneg %p39
      %p256 = pneg %p36
      %p257 = scmp.lt.s32.totalorder %s18, 1
      %s258 = scalar_select %p257, %s18, 1
      %s259 = smul.addr %s258, 4
      %s260 = scalar_lea.vmem %s1, %s259
      %p261 = pneg %p65
      %p262 = pneg %p62
      %p263 = pneg %p86
      %p264 = pneg %p83
      %p265 = pneg %p107
      %p266 = pneg %p104
      %p267 = pneg %p128
      %p268 = pneg %p125
      %p269 = pneg %p149
      %p270 = pneg %p146
      %p271 = pneg %p170
      %p272 = pneg %p167
      %p273 = pneg %p196
      %p274 = pneg %p193
      %p275 = scmp.lt.s32.totalorder %s18, 1
      %s276 = scalar_select %p275, %s18, 1
      %s277 = smul.addr %s276, 2
      %s278 = smul.addr %s277, 4
      %s279 = scalar_lea.vmem %s7, %s278
      %p280 = scmp.lt.s32.totalorder %s18, 1
      %s281 = scalar_select %p280, %s18, 1
      %s282 = smul.addr %s281, 4
      %s283 = scalar_lea.vmem %s0, %s282
      %p284 = scmp.lt.s32.totalorder %s18, 1
      %s285 = scalar_select %p284, %s18, 1
      %s286 = smul.addr %s285, 4
      %s287 = scalar_lea.vmem %s1, %s286
      %p288 = scmp.lt.s32.totalorder %s18, 1
      %s289 = scalar_select %p288, %s18, 1
      %s290 = smul.addr %s289, 2
      %s291 = smul.addr %s290, 4
      %s292 = scalar_lea.vmem %s7, %s291
      %v294 = vld [vmem:[%s5] sm:$0x1]
      %v295 = vld [vmem:[%s6] sm:$0x1]
      %v296 = vld [vmem:[%s283] sm:$0xf]
      %v297 = vunpack.c.l.bf16 %v296
      %vm298 = vcmask 261120
      %v299 = vsel %vm298, %v297, 0.0
      %300 = vadd.xlane.f32.xlu0 %v299
      %v301 = vpop.xlane.xlu0 %300
      %v302 = vrcp.pop 32.0
      %v303 = vmul.f32 32.0, %v302
      %v304 = vsub.f32 1.0, %v303
      %v305 = vmul.f32 %v302, %v304
      %v306 = vadd.f32 %v302, %v305
      %vm307 = vweird.f32 %v302
      %v308 = vsel %vm307, %v302, %v306
      %v309 = vmul.f32 %v301, %v308
      %v310 = vsub.f32 %v297, %v309
      %v311 = vmul.f32 %v310, %v310
      %v312 = vsel %vm298, %v311, 0.0
      %313 = vadd.xlane.f32.xlu0 %v312
      %v314 = vpop.xlane.xlu0 %313
      %v315 = vmul.f32 %v314, %v308
      %v316 = vadd.f32 %v315, 1e-05
      %v317 = vrsqrt.pop %v316
      %v318 = vmul.f32 %v317, %v316
      %v319 = vmul.f32 %v318, %v317
      %v320 = vmul.f32 0.5, %v319
      %v321 = vsub.f32 1.5, %v320
      %v322 = vmul.f32 %v317, %v321
      %vm323 = vweird.f32 %v316
      %vm324 = vweird.f32 %v317
      %vm325 = vmor %vm323, %vm324
      %v326 = vsel %vm325, %v317, %v322
      %v327 = vmul.f32 %v310, %v326
      %v329 = vperm.slane %v294, 0
      %v331 = vmul.f32 %v327, %v329
      %v333 = vperm.slane %v295, 0
      %v335 = vadd.f32 %v331, %v333
      %v336 = vpack.c.bf16 %v335, %v335
      %vm337 = vcmask 257024
      %338 = vst.msk [vmem:[%s292] sm:$0xf] %vm337, %v336
      %v339 = vld [vmem:[%s287] sm:$0xf]
      %v340 = vld [vmem:[%s2] sm:$0xf]
      %v341 = vld [vmem:[%s2 + $0x4] sm:$0xf]
      %v342 = vld [vmem:[%s3] sm:$0x1]
      %v344 = vperm.slane %v342, 0
      %v348 = vunpack.c.l.b16 %v340
      %v349 = vunpack.c.l.b16 %v341
      %v350 = vpack.c.b16 %v349, %v348
      %vm352 = vcmask 130048
      %v354 = vsel %vm352, %v339, 0
      %356 = vmatpush.bf16.msra.mxu0 0
      %357 = vmatpush.bf16.msra.mxu0 0
      %358 = vmatpush.bf16.msra.mxu0 0
      %359 = vmatpush.bf16.msra.mxu0 0
      %360 = vmatpush.bf16.msra.mxu0 0
      %361 = vmatpush.bf16.msra.mxu0 0
      %362 = vmatpush.bf16.msra.mxu0 0
      %363 = vmatpush.bf16.msra.mxu0 %v350
      %364 = vmatmul.bf16.gmra.mxu0 %v354
      %v365 = vpop.f32.mrf.mxu0
      %v366 = vadd.f32 %v344, %v365
      %v367 = vpop.f32.mrf.mxu0
      %368 = vdwg.mxu0
      %v369 = vld [vmem:[%s4] sm:$0x1]
      %v371 = vperm.slane %v369, 0
      %v373 = vadd.f32 %v366, %v371
      %v374 = vsel %vm298, %v373, 0.0
      %375 = vadd.xlane.f32.xlu0 %v374
      %v376 = vpop.xlane.xlu0 %375
      %v377 = vmul.f32 %v376, %v308
      %v378 = vsub.f32 %v373, %v377
      %v379 = vmul.f32 %v378, %v378
      %v380 = vsel %vm298, %v379, 0.0
      %381 = vadd.xlane.f32.xlu0 %v380
      %v382 = vpop.xlane.xlu0 %381
      %v383 = vmul.f32 %v382, %v308
      %v384 = vadd.f32 %v383, 1e-05
      %v385 = vrsqrt.pop %v384
      %v386 = vmul.f32 %v385, %v384
      %v387 = vmul.f32 %v386, %v385
      %v388 = vmul.f32 0.5, %v387
      %v389 = vsub.f32 1.5, %v388
      %v390 = vmul.f32 %v385, %v389
      %vm391 = vweird.f32 %v384
      %vm392 = vweird.f32 %v385
      %vm393 = vmor %vm391, %vm392
      %v394 = vsel %vm393, %v385, %v390
      %v395 = vmul.f32 %v378, %v394
      %v396 = vmul.f32 %v395, %v329
      %v397 = vadd.f32 %v396, %v333
      %v398 = vpack.c.bf16 %v397, %v397
      %399 = vst.msk [vmem:[%s292 + $0x4] sm:$0xf] %vm337, %v398
      %p400 = scmp.lt.s32.totalorder %s18, 1
      %s401 = scalar_select %p400, %s18, 1
      %s402 = smul.addr %s401, 2
      %s403 = smul.addr %s402, 4
      %s404 = scalar_lea.vmem %s7, %s403
      // Predicated region
      $region49: #{roberta_v_pretraining_forward.4} parent=47 // pred_check
        %p405 = pneg %p193
      $region50: #{roberta_v_pretraining_forward.4} parent=47 // pred_check_branch
        %407 = sbr.rel (%p405) target = $region52
      $region51: #{roberta_v_pretraining_forward.4} parent=47 // pred_region
        _
      $region52: #{roberta_v_pretraining_forward.4} parent=47 // pred_fallthru
        _
    $region48: #{roberta_v_pretraining_forward.4} parent=5 // pred_fallthru
      _
    %p408 = scmp.le.s32.totalorder 2, %s13
    // Predicated region
    $region53: #{roberta_v_pretraining_forward.4} parent=5 // pred_check
      %p409 = pneg %p408
    $region54: #{roberta_v_pretraining_forward.4} parent=5 // pred_check_branch
      %411 = sbr.rel (%p409) target = $region56
    $region55: #{roberta_v_pretraining_forward.4} parent=5 // pred_region
      %s412 = ssub.s32 %s13, 2
      // Predicated region
      $region57: #{roberta_v_pretraining_forward.4} parent=55 // pred_check
        %p413 = pneg %p199
      $region58: #{roberta_v_pretraining_forward.4} parent=55 // pred_check_branch
        %415 = sbr.rel (%p413) target = $region60
      $region59: #{roberta_v_pretraining_forward.4} parent=55 // pred_region
        %p416 = scmp.lt.s32.totalorder %s19, 1
        %s417 = scalar_select %p416, %s19, 1
        %s418 = smul.addr %s417, 2
        %s419 = smul.addr %s418, 4
        %s420 = scalar_lea.vmem %s7, %s419
      $region60: #{roberta_v_pretraining_forward.4} parent=55 // pred_fallthru
        _
    $region56: #{roberta_v_pretraining_forward.4} parent=5 // pred_fallthru
      _
  $region6: #{roberta_v_pretraining_forward.4} parent=0 // loop_footer
    %s17 = sadd.s32 1, %s13
  $region7: #{roberta_v_pretraining_forward.4} parent=0 // loop_footer_branch
    %12 = sbr.rel target = $region3
  $region8: #{roberta_v_pretraining_forward.4} parent=0 // loop_exit
    _

// kernel: roberta_v_pretraining_forward.5
$region0: #{roberta_v_pretraining_forward.5}
  #allocation0 [shape = 'u32[]', space=smem, size = 0x4, offset = 0x4, fixed_abs, tag = 'smem constant byte address 0x4 - core index']
  #allocation1 [shape = 'u32[72,128]{1,0:T(1,128)}', space=vmem, size = 0x9000, scoped, tag = 'internal scratch']
  %s0 = inlined_call_operand.vmem [shape: bf16[2,16,32], index: 0, kind: input, shape index: {}, may-alias: {0,1}]
  %s1 = inlined_call_operand.vmem [shape: bf16[2,16,32], index: 1, kind: input, shape index: {}, may-alias: {0,1}]
  %s2 = inlined_call_operand.vmem [shape: bf16[2,1,16], index: 2, kind: input, shape index: {}]
  %s3 = inlined_call_operand.vmem [shape: bf16[32,32], index: 3, kind: input, shape index: {}]
  %s4 = inlined_call_operand.vmem [shape: f32[1,32], index: 4, kind: input, shape index: {}]
  %s5 = inlined_call_operand.vmem [shape: bf16[32,64], index: 5, kind: input, shape index: {}]
  %s6 = inlined_call_operand.vmem [shape: f32[1,64], index: 6, kind: input, shape index: {}]
  %s7 = inlined_call_operand.vmem [shape: bf16[32,32], index: 7, kind: input, shape index: {}]
  %s8 = inlined_call_operand.vmem [shape: f32[1,32], index: 8, kind: input, shape index: {}]
  %s9 = inlined_call_operand.vmem [shape: f32[1,32], index: 9, kind: input, shape index: {}]
  %s10 = inlined_call_operand.vmem [shape: f32[1,32], index: 10, kind: input, shape index: {}]
  %s11 = inlined_call_operand.vmem [shape: bf16[32,64], index: 11, kind: input, shape index: {}]
  %s12 = inlined_call_operand.vmem [shape: f32[1,64], index: 12, kind: input, shape index: {}]
  %s13 = inlined_call_operand.vmem [shape: bf16[64,32], index: 13, kind: input, shape index: {}]
  %s14 = inlined_call_operand.vmem [shape: f32[1,32], index: 14, kind: input, shape index: {}]
  %s15 = inlined_call_operand.vmem [shape: f32[1,32], index: 15, kind: input, shape index: {}]
  %s16 = inlined_call_operand.vmem [shape: f32[1,32], index: 16, kind: input, shape index: {}]
  %s17 = inlined_call_operand.vmem [shape: bf16[2,16,32], index: 17, kind: output, shape index: {}]
  %s18 = sld [smem:[#allocation0]]
  $region101: #{roberta_v_pretraining_forward.5} parent=0
    _
  %s20 = ssub.s32 1, %s18
  %s21 = scalar_select 0, %s20, %s18
  loop: start=0, step=1, limit=6
  $region2: #{roberta_v_pretraining_forward.5} parent=0 // loop_pre_header
    _
  $region3: #{roberta_v_pretraining_forward.5} parent=0 // loop_header
    %s23 = sphi 0, %s27
    %p24 = scmp.ge.s32.totalorder %s23, 6
    %s30 = sphi 0, %s42
    %s31 = sphi 0, %s38
    %s32 = sphi 0, %s30
    %s33 = sphi 0, %s31
    %s34 = sphi 0, %s32
    %s35 = sphi 0, %s33
    %s47 = sphi 0, %s49
    %s50 = sphi 0, %s47
    %s51 = sphi 0, %s50
    %s67 = sphi 0, %s51
    %s73 = sphi 0, %s75
    %s76 = sphi 0, %s73
    %s77 = sphi 0, %s76
    %s93 = sphi 0, %s77
    %s99 = sphi 0, %s101
    %s102 = sphi 0, %s99
    %s103 = sphi 0, %s102
    %s119 = sphi 0, %s103
    %s123 = sphi 0, %s123
    %s125 = sphi 0, %s123
    %s126 = sphi 0, %s125
    %s140 = sphi 0, %s126
    %s144 = sphi 0, %s144
    %s146 = sphi 0, %s144
    %s147 = sphi 0, %s146
    %s161 = sphi 0, %s147
    %s165 = sphi 0, %s165
    %s167 = sphi 0, %s165
    %s168 = sphi 0, %s167
    %s182 = sphi 0, %s168
    %s186 = sphi 0, %s186
    %s188 = sphi 0, %s186
    %s189 = sphi 0, %s188
    %s203 = sphi 0, %s189
    %s207 = sphi 0, %s207
    %s209 = sphi 0, %s207
    %s210 = sphi 0, %s209
    %s224 = sphi 0, %s210
    %s228 = sphi 0, %s228
    %s230 = sphi 0, %s228
    %s231 = sphi 0, %s230
    %s245 = sphi 0, %s231
    %s249 = sphi 0, %s249
    %s251 = sphi 0, %s249
    %s252 = sphi 0, %s251
    %s266 = sphi 0, %s252
    %s270 = sphi 0, %s270
    %s272 = sphi 0, %s270
    %s273 = sphi 0, %s272
    %s287 = sphi 0, %s273
    %s291 = sphi 0, %s291
    %s293 = sphi 0, %s291
    %s294 = sphi 0, %s293
    %s308 = sphi 0, %s294
    %s312 = sphi 0, %s312
    %s314 = sphi 0, %s312
    %s315 = sphi 0, %s314
    %s329 = sphi 0, %s315
    %s333 = sphi 0, %s333
    %s335 = sphi 0, %s333
    %s336 = sphi 0, %s335
    %s350 = sphi 0, %s336
    %s354 = sphi 0, %s354
    %s356 = sphi 0, %s354
    %s357 = sphi 0, %s356
    %s371 = sphi 0, %s357
    %s375 = sphi 0, %s375
    %s377 = sphi 0, %s375
    %s378 = sphi 0, %s377
    %s392 = sphi 0, %s378
    %s396 = sphi 0, %s396
    %s398 = sphi 0, %s396
    %s399 = sphi 0, %s398
    %s413 = sphi 0, %s399
    %s421 = sphi 0, %s423
    %s424 = sphi 0, %s421
    %s425 = sphi 0, %s424
    %s441 = sphi 0, %s425
  $region4: #{roberta_v_pretraining_forward.5} parent=0 // loop_header_branch
    %26 = sbr.rel (%p24) target = $region8
  $region5: #{roberta_v_pretraining_forward.5} parent=0 // loop_body
    %s28 = ssub.s32 %s23, 1
    %s29 = ssub.s32 %s23, 2
    %s36 = sadd.s32 1, %s31
    %p37 = scmp.ge.s32.totalorder %s36, 2
    %s38 = scalar_select %p37, 0, %s36
    %s39 = sadd.s32 1, %s30
    %s40 = scalar_select %p37, %s39, %s30
    %p41 = scmp.ge.s32.totalorder %s40, 2
    %s42 = scalar_select %p41, 0, %s40
    %s43 = ssub.s32 %s30, %s42
    %s44 = ssub.s32 %s31, %s38
    %s45 = sor.u32 %s43, %s44
    %p46 = scmp.eq.s32.totalorder %s45, 0
    %s48 = sadd.s32 %s47, 1
    %s49 = scalar_select %p46, %s47, %s48
    %p52 = pneg %p46
    %p53 = scmp.eq.s32.totalorder %s23, 3
    %p54 = por %p52, %p53
    %p55 = scmp.ne.s32.totalorder %s47, %s50
    %p56 = scmp.eq.s32.totalorder %s23, 0
    %p57 = por %p55, %p56
    %p58 = scmp.ne.s32.totalorder %s47, %s50
    %p59 = scmp.eq.s32.totalorder %s28, 3
    %p60 = por %p58, %p59
    %p61 = scmp.ne.s32.totalorder %s50, %s51
    %p62 = scmp.eq.s32.totalorder %s28, 0
    %p63 = por %p61, %p62
    %p64 = scmp.ne.s32.totalorder %s50, %s51
    %p65 = scmp.eq.s32.totalorder %s29, 3
    %p66 = por %p64, %p65
    %p68 = scmp.ne.s32.totalorder %s51, %s67
    %p69 = scmp.eq.s32.totalorder %s29, 0
    %p70 = por %p68, %p69
    %s71 = ssub.s32 %s30, %s42
    %p72 = scmp.eq.s32.totalorder %s71, 0
    %s74 = sadd.s32 %s73, 1
    %s75 = scalar_select %p72, %s73, %s74
    %p78 = pneg %p72
    %p79 = scmp.eq.s32.totalorder %s23, 3
    %p80 = por %p78, %p79
    %p81 = scmp.ne.s32.totalorder %s73, %s76
    %p82 = scmp.eq.s32.totalorder %s23, 0
    %p83 = por %p81, %p82
    %p84 = scmp.ne.s32.totalorder %s73, %s76
    %p85 = scmp.eq.s32.totalorder %s28, 3
    %p86 = por %p84, %p85
    %p87 = scmp.ne.s32.totalorder %s76, %s77
    %p88 = scmp.eq.s32.totalorder %s28, 0
    %p89 = por %p87, %p88
    %p90 = scmp.ne.s32.totalorder %s76, %s77
    %p91 = scmp.eq.s32.totalorder %s29, 3
    %p92 = por %p90, %p91
    %p94 = scmp.ne.s32.totalorder %s77, %s93
    %p95 = scmp.eq.s32.totalorder %s29, 0
    %p96 = por %p94, %p95
    %s97 = ssub.s32 %s30, %s42
    %p98 = scmp.eq.s32.totalorder %s97, 0
    %s100 = sadd.s32 %s99, 1
    %s101 = scalar_select %p98, %s99, %s100
    %p104 = pneg %p98
    %p105 = scmp.eq.s32.totalorder %s23, 3
    %p106 = por %p104, %p105
    %p107 = scmp.ne.s32.totalorder %s99, %s102
    %p108 = scmp.eq.s32.totalorder %s23, 0
    %p109 = por %p107, %p108
    %p110 = scmp.ne.s32.totalorder %s99, %s102
    %p111 = scmp.eq.s32.totalorder %s28, 3
    %p112 = por %p110, %p111
    %p113 = scmp.ne.s32.totalorder %s102, %s103
    %p114 = scmp.eq.s32.totalorder %s28, 0
    %p115 = por %p113, %p114
    %p116 = scmp.ne.s32.totalorder %s102, %s103
    %p117 = scmp.eq.s32.totalorder %s29, 3
    %p118 = por %p116, %p117
    %p120 = scmp.ne.s32.totalorder %s103, %s119
    %p121 = scmp.eq.s32.totalorder %s29, 0
    %p122 = por %p120, %p121
    %s124 = sadd.s32 %s123, 1
    %p127 = scmp.eq.s32.totalorder %s23, 3
    %p128 = scmp.ne.s32.totalorder %s123, %s125
    %p129 = scmp.eq.s32.totalorder %s23, 0
    %p130 = por %p128, %p129
    %p131 = scmp.ne.s32.totalorder %s123, %s125
    %p132 = scmp.eq.s32.totalorder %s28, 3
    %p133 = por %p131, %p132
    %p134 = scmp.ne.s32.totalorder %s125, %s126
    %p135 = scmp.eq.s32.totalorder %s28, 0
    %p136 = por %p134, %p135
    %p137 = scmp.ne.s32.totalorder %s125, %s126
    %p138 = scmp.eq.s32.totalorder %s29, 3
    %p139 = por %p137, %p138
    %p141 = scmp.ne.s32.totalorder %s126, %s140
    %p142 = scmp.eq.s32.totalorder %s29, 0
    %p143 = por %p141, %p142
    %s145 = sadd.s32 %s144, 1
    %p148 = scmp.eq.s32.totalorder %s23, 3
    %p149 = scmp.ne.s32.totalorder %s144, %s146
    %p150 = scmp.eq.s32.totalorder %s23, 0
    %p151 = por %p149, %p150
    %p152 = scmp.ne.s32.totalorder %s144, %s146
    %p153 = scmp.eq.s32.totalorder %s28, 3
    %p154 = por %p152, %p153
    %p155 = scmp.ne.s32.totalorder %s146, %s147
    %p156 = scmp.eq.s32.totalorder %s28, 0
    %p157 = por %p155, %p156
    %p158 = scmp.ne.s32.totalorder %s146, %s147
    %p159 = scmp.eq.s32.totalorder %s29, 3
    %p160 = por %p158, %p159
    %p162 = scmp.ne.s32.totalorder %s147, %s161
    %p163 = scmp.eq.s32.totalorder %s29, 0
    %p164 = por %p162, %p163
    %s166 = sadd.s32 %s165, 1
    %p169 = scmp.eq.s32.totalorder %s23, 3
    %p170 = scmp.ne.s32.totalorder %s165, %s167
    %p171 = scmp.eq.s32.totalorder %s23, 0
    %p172 = por %p170, %p171
    %p173 = scmp.ne.s32.totalorder %s165, %s167
    %p174 = scmp.eq.s32.totalorder %s28, 3
    %p175 = por %p173, %p174
    %p176 = scmp.ne.s32.totalorder %s167, %s168
    %p177 = scmp.eq.s32.totalorder %s28, 0
    %p178 = por %p176, %p177
    %p179 = scmp.ne.s32.totalorder %s167, %s168
    %p180 = scmp.eq.s32.totalorder %s29, 3
    %p181 = por %p179, %p180
    %p183 = scmp.ne.s32.totalorder %s168, %s182
    %p184 = scmp.eq.s32.totalorder %s29, 0
    %p185 = por %p183, %p184
    %s187 = sadd.s32 %s186, 1
    %p190 = scmp.eq.s32.totalorder %s23, 3
    %p191 = scmp.ne.s32.totalorder %s186, %s188
    %p192 = scmp.eq.s32.totalorder %s23, 0
    %p193 = por %p191, %p192
    %p194 = scmp.ne.s32.totalorder %s186, %s188
    %p195 = scmp.eq.s32.totalorder %s28, 3
    %p196 = por %p194, %p195
    %p197 = scmp.ne.s32.totalorder %s188, %s189
    %p198 = scmp.eq.s32.totalorder %s28, 0
    %p199 = por %p197, %p198
    %p200 = scmp.ne.s32.totalorder %s188, %s189
    %p201 = scmp.eq.s32.totalorder %s29, 3
    %p202 = por %p200, %p201
    %p204 = scmp.ne.s32.totalorder %s189, %s203
    %p205 = scmp.eq.s32.totalorder %s29, 0
    %p206 = por %p204, %p205
    %s208 = sadd.s32 %s207, 1
    %p211 = scmp.eq.s32.totalorder %s23, 3
    %p212 = scmp.ne.s32.totalorder %s207, %s209
    %p213 = scmp.eq.s32.totalorder %s23, 0
    %p214 = por %p212, %p213
    %p215 = scmp.ne.s32.totalorder %s207, %s209
    %p216 = scmp.eq.s32.totalorder %s28, 3
    %p217 = por %p215, %p216
    %p218 = scmp.ne.s32.totalorder %s209, %s210
    %p219 = scmp.eq.s32.totalorder %s28, 0
    %p220 = por %p218, %p219
    %p221 = scmp.ne.s32.totalorder %s209, %s210
    %p222 = scmp.eq.s32.totalorder %s29, 3
    %p223 = por %p221, %p222
    %p225 = scmp.ne.s32.totalorder %s210, %s224
    %p226 = scmp.eq.s32.totalorder %s29, 0
    %p227 = por %p225, %p226
    %s229 = sadd.s32 %s228, 1
    %p232 = scmp.eq.s32.totalorder %s23, 3
    %p233 = scmp.ne.s32.totalorder %s228, %s230
    %p234 = scmp.eq.s32.totalorder %s23, 0
    %p235 = por %p233, %p234
    %p236 = scmp.ne.s32.totalorder %s228, %s230
    %p237 = scmp.eq.s32.totalorder %s28, 3
    %p238 = por %p236, %p237
    %p239 = scmp.ne.s32.totalorder %s230, %s231
    %p240 = scmp.eq.s32.totalorder %s28, 0
    %p241 = por %p239, %p240
    %p242 = scmp.ne.s32.totalorder %s230, %s231
    %p243 = scmp.eq.s32.totalorder %s29, 3
    %p244 = por %p242, %p243
    %p246 = scmp.ne.s32.totalorder %s231, %s245
    %p247 = scmp.eq.s32.totalorder %s29, 0
    %p248 = por %p246, %p247
    %s250 = sadd.s32 %s249, 1
    %p253 = scmp.eq.s32.totalorder %s23, 3
    %p254 = scmp.ne.s32.totalorder %s249, %s251
    %p255 = scmp.eq.s32.totalorder %s23, 0
    %p256 = por %p254, %p255
    %p257 = scmp.ne.s32.totalorder %s249, %s251
    %p258 = scmp.eq.s32.totalorder %s28, 3
    %p259 = por %p257, %p258
    %p260 = scmp.ne.s32.totalorder %s251, %s252
    %p261 = scmp.eq.s32.totalorder %s28, 0
    %p262 = por %p260, %p261
    %p263 = scmp.ne.s32.totalorder %s251, %s252
    %p264 = scmp.eq.s32.totalorder %s29, 3
    %p265 = por %p263, %p264
    %p267 = scmp.ne.s32.totalorder %s252, %s266
    %p268 = scmp.eq.s32.totalorder %s29, 0
    %p269 = por %p267, %p268
    %s271 = sadd.s32 %s270, 1
    %p274 = scmp.eq.s32.totalorder %s23, 3
    %p275 = scmp.ne.s32.totalorder %s270, %s272
    %p276 = scmp.eq.s32.totalorder %s23, 0
    %p277 = por %p275, %p276
    %p278 = scmp.ne.s32.totalorder %s270, %s272
    %p279 = scmp.eq.s32.totalorder %s28, 3
    %p280 = por %p278, %p279
    %p281 = scmp.ne.s32.totalorder %s272, %s273
    %p282 = scmp.eq.s32.totalorder %s28, 0
    %p283 = por %p281, %p282
    %p284 = scmp.ne.s32.totalorder %s272, %s273
    %p285 = scmp.eq.s32.totalorder %s29, 3
    %p286 = por %p284, %p285
    %p288 = scmp.ne.s32.totalorder %s273, %s287
    %p289 = scmp.eq.s32.totalorder %s29, 0
    %p290 = por %p288, %p289
    %s292 = sadd.s32 %s291, 1
    %p295 = scmp.eq.s32.totalorder %s23, 3
    %p296 = scmp.ne.s32.totalorder %s291, %s293
    %p297 = scmp.eq.s32.totalorder %s23, 0
    %p298 = por %p296, %p297
    %p299 = scmp.ne.s32.totalorder %s291, %s293
    %p300 = scmp.eq.s32.totalorder %s28, 3
    %p301 = por %p299, %p300
    %p302 = scmp.ne.s32.totalorder %s293, %s294
    %p303 = scmp.eq.s32.totalorder %s28, 0
    %p304 = por %p302, %p303
    %p305 = scmp.ne.s32.totalorder %s293, %s294
    %p306 = scmp.eq.s32.totalorder %s29, 3
    %p307 = por %p305, %p306
    %p309 = scmp.ne.s32.totalorder %s294, %s308
    %p310 = scmp.eq.s32.totalorder %s29, 0
    %p311 = por %p309, %p310
    %s313 = sadd.s32 %s312, 1
    %p316 = scmp.eq.s32.totalorder %s23, 3
    %p317 = scmp.ne.s32.totalorder %s312, %s314
    %p318 = scmp.eq.s32.totalorder %s23, 0
    %p319 = por %p317, %p318
    %p320 = scmp.ne.s32.totalorder %s312, %s314
    %p321 = scmp.eq.s32.totalorder %s28, 3
    %p322 = por %p320, %p321
    %p323 = scmp.ne.s32.totalorder %s314, %s315
    %p324 = scmp.eq.s32.totalorder %s28, 0
    %p325 = por %p323, %p324
    %p326 = scmp.ne.s32.totalorder %s314, %s315
    %p327 = scmp.eq.s32.totalorder %s29, 3
    %p328 = por %p326, %p327
    %p330 = scmp.ne.s32.totalorder %s315, %s329
    %p331 = scmp.eq.s32.totalorder %s29, 0
    %p332 = por %p330, %p331
    %s334 = sadd.s32 %s333, 1
    %p337 = scmp.eq.s32.totalorder %s23, 3
    %p338 = scmp.ne.s32.totalorder %s333, %s335
    %p339 = scmp.eq.s32.totalorder %s23, 0
    %p340 = por %p338, %p339
    %p341 = scmp.ne.s32.totalorder %s333, %s335
    %p342 = scmp.eq.s32.totalorder %s28, 3
    %p343 = por %p341, %p342
    %p344 = scmp.ne.s32.totalorder %s335, %s336
    %p345 = scmp.eq.s32.totalorder %s28, 0
    %p346 = por %p344, %p345
    %p347 = scmp.ne.s32.totalorder %s335, %s336
    %p348 = scmp.eq.s32.totalorder %s29, 3
    %p349 = por %p347, %p348
    %p351 = scmp.ne.s32.totalorder %s336, %s350
    %p352 = scmp.eq.s32.totalorder %s29, 0
    %p353 = por %p351, %p352
    %s355 = sadd.s32 %s354, 1
    %p358 = scmp.eq.s32.totalorder %s23, 3
    %p359 = scmp.ne.s32.totalorder %s354, %s356
    %p360 = scmp.eq.s32.totalorder %s23, 0
    %p361 = por %p359, %p360
    %p362 = scmp.ne.s32.totalorder %s354, %s356
    %p363 = scmp.eq.s32.totalorder %s28, 3
    %p364 = por %p362, %p363
    %p365 = scmp.ne.s32.totalorder %s356, %s357
    %p366 = scmp.eq.s32.totalorder %s28, 0
    %p367 = por %p365, %p366
    %p368 = scmp.ne.s32.totalorder %s356, %s357
    %p369 = scmp.eq.s32.totalorder %s29, 3
    %p370 = por %p368, %p369
    %p372 = scmp.ne.s32.totalorder %s357, %s371
    %p373 = scmp.eq.s32.totalorder %s29, 0
    %p374 = por %p372, %p373
    %s376 = sadd.s32 %s375, 1
    %p379 = scmp.eq.s32.totalorder %s23, 3
    %p380 = scmp.ne.s32.totalorder %s375, %s377
    %p381 = scmp.eq.s32.totalorder %s23, 0
    %p382 = por %p380, %p381
    %p383 = scmp.ne.s32.totalorder %s375, %s377
    %p384 = scmp.eq.s32.totalorder %s28, 3
    %p385 = por %p383, %p384
    %p386 = scmp.ne.s32.totalorder %s377, %s378
    %p387 = scmp.eq.s32.totalorder %s28, 0
    %p388 = por %p386, %p387
    %p389 = scmp.ne.s32.totalorder %s377, %s378
    %p390 = scmp.eq.s32.totalorder %s29, 3
    %p391 = por %p389, %p390
    %p393 = scmp.ne.s32.totalorder %s378, %s392
    %p394 = scmp.eq.s32.totalorder %s29, 0
    %p395 = por %p393, %p394
    %s397 = sadd.s32 %s396, 1
    %p400 = scmp.eq.s32.totalorder %s23, 3
    %p401 = scmp.ne.s32.totalorder %s396, %s398
    %p402 = scmp.eq.s32.totalorder %s23, 0
    %p403 = por %p401, %p402
    %p404 = scmp.ne.s32.totalorder %s396, %s398
    %p405 = scmp.eq.s32.totalorder %s28, 3
    %p406 = por %p404, %p405
    %p407 = scmp.ne.s32.totalorder %s398, %s399
    %p408 = scmp.eq.s32.totalorder %s28, 0
    %p409 = por %p407, %p408
    %p410 = scmp.ne.s32.totalorder %s398, %s399
    %p411 = scmp.eq.s32.totalorder %s29, 3
    %p412 = por %p410, %p411
    %p414 = scmp.ne.s32.totalorder %s399, %s413
    %p415 = scmp.eq.s32.totalorder %s29, 0
    %p416 = por %p414, %p415
    %s417 = ssub.s32 %s30, %s42
    %s418 = ssub.s32 %s31, %s38
    %s419 = sor.u32 %s417, %s418
    %p420 = scmp.eq.s32.totalorder %s419, 0
    %s422 = sadd.s32 %s421, 1
    %s423 = scalar_select %p420, %s421, %s422
    %p426 = pneg %p420
    %p427 = scmp.eq.s32.totalorder %s23, 3
    %p428 = por %p426, %p427
    %p429 = scmp.ne.s32.totalorder %s421, %s424
    %p430 = scmp.eq.s32.totalorder %s23, 0
    %p431 = por %p429, %p430
    %p432 = scmp.ne.s32.totalorder %s421, %s424
    %p433 = scmp.eq.s32.totalorder %s28, 3
    %p434 = por %p432, %p433
    %p435 = scmp.ne.s32.totalorder %s424, %s425
    %p436 = scmp.eq.s32.totalorder %s28, 0
    %p437 = por %p435, %p436
    %p438 = scmp.ne.s32.totalorder %s424, %s425
    %p439 = scmp.eq.s32.totalorder %s29, 3
    %p440 = por %p438, %p439
    %p442 = scmp.ne.s32.totalorder %s425, %s441
    %p443 = scmp.eq.s32.totalorder %s29, 0
    %p444 = por %p442, %p443
    %p445 = scmp.le.s32.totalorder 1, %s23
    %p446 = scmp.lt.s32.totalorder %s23, 5
    %p447 = pnand %p445, %p446
    %p448 = pneg %p447
    // Predicated region
    $region9: #{roberta_v_pretraining_forward.5} parent=5 // pred_check
      _
    $region10: #{roberta_v_pretraining_forward.5} parent=5 // pred_check_branch
      %450 = sbr.rel (%p447) target = $region12
    $region11: #{roberta_v_pretraining_forward.5} parent=5 // pred_region
      %s451 = ssub.s32 %s23, 1
      // Predicated region
      $region13: #{roberta_v_pretraining_forward.5} parent=11 // pred_check
        %p452 = pneg %p136
      $region14: #{roberta_v_pretraining_forward.5} parent=11 // pred_check_branch
        %454 = sbr.rel (%p452) target = $region16
      $region15: #{roberta_v_pretraining_forward.5} parent=11 // pred_region
        _
      $region16: #{roberta_v_pretraining_forward.5} parent=11 // pred_fallthru
        _
      // Predicated region
      $region17: #{roberta_v_pretraining_forward.5} parent=11 // pred_check
        %p455 = pneg %p157
      $region18: #{roberta_v_pretraining_forward.5} parent=11 // pred_check_branch
        %457 = sbr.rel (%p455) target = $region20
      $region19: #{roberta_v_pretraining_forward.5} parent=11 // pred_region
        _
      $region20: #{roberta_v_pretraining_forward.5} parent=11 // pred_fallthru
        _
      // Predicated region
      $region21: #{roberta_v_pretraining_forward.5} parent=11 // pred_check
        %p458 = pneg %p178
      $region22: #{roberta_v_pretraining_forward.5} parent=11 // pred_check_branch
        %460 = sbr.rel (%p458) target = $region24
      $region23: #{roberta_v_pretraining_forward.5} parent=11 // pred_region
        _
      $region24: #{roberta_v_pretraining_forward.5} parent=11 // pred_fallthru
        _
      // Predicated region
      $region25: #{roberta_v_pretraining_forward.5} parent=11 // pred_check
        %p461 = pneg %p199
      $region26: #{roberta_v_pretraining_forward.5} parent=11 // pred_check_branch
        %463 = sbr.rel (%p461) target = $region28
      $region27: #{roberta_v_pretraining_forward.5} parent=11 // pred_region
        _
      $region28: #{roberta_v_pretraining_forward.5} parent=11 // pred_fallthru
        _
      // Predicated region
      $region29: #{roberta_v_pretraining_forward.5} parent=11 // pred_check
        %p464 = pneg %p220
      $region30: #{roberta_v_pretraining_forward.5} parent=11 // pred_check_branch
        %466 = sbr.rel (%p464) target = $region32
      $region31: #{roberta_v_pretraining_forward.5} parent=11 // pred_region
        _
      $region32: #{roberta_v_pretraining_forward.5} parent=11 // pred_fallthru
        _
      // Predicated region
      $region33: #{roberta_v_pretraining_forward.5} parent=11 // pred_check
        %p467 = pneg %p241
      $region34: #{roberta_v_pretraining_forward.5} parent=11 // pred_check_branch
        %469 = sbr.rel (%p467) target = $region36
      $region35: #{roberta_v_pretraining_forward.5} parent=11 // pred_region
        _
      $region36: #{roberta_v_pretraining_forward.5} parent=11 // pred_fallthru
        _
      // Predicated region
      $region37: #{roberta_v_pretraining_forward.5} parent=11 // pred_check
        %p470 = pneg %p262
      $region38: #{roberta_v_pretraining_forward.5} parent=11 // pred_check_branch
        %472 = sbr.rel (%p470) target = $region40
      $region39: #{roberta_v_pretraining_forward.5} parent=11 // pred_region
        _
      $region40: #{roberta_v_pretraining_forward.5} parent=11 // pred_fallthru
        _
      // Predicated region
      $region41: #{roberta_v_pretraining_forward.5} parent=11 // pred_check
        %p473 = pneg %p283
      $region42: #{roberta_v_pretraining_forward.5} parent=11 // pred_check_branch
        %475 = sbr.rel (%p473) target = $region44
      $region43: #{roberta_v_pretraining_forward.5} parent=11 // pred_region
        _
      $region44: #{roberta_v_pretraining_forward.5} parent=11 // pred_fallthru
        _
      // Predicated region
      $region45: #{roberta_v_pretraining_forward.5} parent=11 // pred_check
        %p476 = pneg %p304
      $region46: #{roberta_v_pretraining_forward.5} parent=11 // pred_check_branch
        %478 = sbr.rel (%p476) target = $region48
      $region47: #{roberta_v_pretraining_forward.5} parent=11 // pred_region
        _
      $region48: #{roberta_v_pretraining_forward.5} parent=11 // pred_fallthru
        _
      // Predicated region
      $region49: #{roberta_v_pretraining_forward.5} parent=11 // pred_check
        %p479 = pneg %p325
      $region50: #{roberta_v_pretraining_forward.5} parent=11 // pred_check_branch
        %481 = sbr.rel (%p479) target = $region52
      $region51: #{roberta_v_pretraining_forward.5} parent=11 // pred_region
        _
      $region52: #{roberta_v_pretraining_forward.5} parent=11 // pred_fallthru
        _
      // Predicated region
      $region53: #{roberta_v_pretraining_forward.5} parent=11 // pred_check
        %p482 = pneg %p346
      $region54: #{roberta_v_pretraining_forward.5} parent=11 // pred_check_branch
        %484 = sbr.rel (%p482) target = $region56
      $region55: #{roberta_v_pretraining_forward.5} parent=11 // pred_region
        _
      $region56: #{roberta_v_pretraining_forward.5} parent=11 // pred_fallthru
        _
      // Predicated region
      $region57: #{roberta_v_pretraining_forward.5} parent=11 // pred_check
        %p485 = pneg %p367
      $region58: #{roberta_v_pretraining_forward.5} parent=11 // pred_check_branch
        %487 = sbr.rel (%p485) target = $region60
      $region59: #{roberta_v_pretraining_forward.5} parent=11 // pred_region
        _
      $region60: #{roberta_v_pretraining_forward.5} parent=11 // pred_fallthru
        _
      // Predicated region
      $region61: #{roberta_v_pretraining_forward.5} parent=11 // pred_check
        %p488 = pneg %p388
      $region62: #{roberta_v_pretraining_forward.5} parent=11 // pred_check_branch
        %490 = sbr.rel (%p488) target = $region64
      $region63: #{roberta_v_pretraining_forward.5} parent=11 // pred_region
        _
      $region64: #{roberta_v_pretraining_forward.5} parent=11 // pred_fallthru
        _
      // Predicated region
      $region65: #{roberta_v_pretraining_forward.5} parent=11 // pred_check
        %p491 = pneg %p409
      $region66: #{roberta_v_pretraining_forward.5} parent=11 // pred_check_branch
        %493 = sbr.rel (%p491) target = $region68
      $region67: #{roberta_v_pretraining_forward.5} parent=11 // pred_region
        _
      $region68: #{roberta_v_pretraining_forward.5} parent=11 // pred_fallthru
        _
    $region12: #{roberta_v_pretraining_forward.5} parent=5 // pred_fallthru
      _
    %p494 = scmp.lt.s32.totalorder %s23, 4
    // Predicated region
    $region69: #{roberta_v_pretraining_forward.5} parent=5 // pred_check
      %p495 = pneg %p494
    $region70: #{roberta_v_pretraining_forward.5} parent=5 // pred_check_branch
      %497 = sbr.rel (%p495) target = $region72
    $region71: #{roberta_v_pretraining_forward.5} parent=5 // pred_region
      // Predicated region
      $region73: #{roberta_v_pretraining_forward.5} parent=71 // pred_check
        %p498 = pneg %p57
      $region74: #{roberta_v_pretraining_forward.5} parent=71 // pred_check_branch
        %500 = sbr.rel (%p498) target = $region76
      $region75: #{roberta_v_pretraining_forward.5} parent=71 // pred_region
        %p501 = scmp.lt.s32.totalorder %s30, 1
        %s502 = scalar_select %p501, %s30, 1
        %p503 = scmp.lt.s32.totalorder %s31, 1
        %s504 = scalar_select %p503, %s31, 1
        %s505 = smul.addr %s502, 2
        %s506 = sadd.s32 %s504, %s505
        %s507 = smul.addr %s506, 4
        %s508 = scalar_lea.vmem %s0, %s507
      $region76: #{roberta_v_pretraining_forward.5} parent=71 // pred_fallthru
        _
      // Predicated region
      $region77: #{roberta_v_pretraining_forward.5} parent=71 // pred_check
        %p509 = pneg %p83
      $region78: #{roberta_v_pretraining_forward.5} parent=71 // pred_check_branch
        %511 = sbr.rel (%p509) target = $region80
      $region79: #{roberta_v_pretraining_forward.5} parent=71 // pred_region
        %p512 = scmp.lt.s32.totalorder %s30, 1
        %s513 = scalar_select %p512, %s30, 1
        %s514 = smul.addr %s513, 2
        %s515 = smul.addr %s514, 4
        %s516 = scalar_lea.vmem %s1, %s515
      $region80: #{roberta_v_pretraining_forward.5} parent=71 // pred_fallthru
        _
      // Predicated region
      $region81: #{roberta_v_pretraining_forward.5} parent=71 // pred_check
        %p517 = pneg %p109
      $region82: #{roberta_v_pretraining_forward.5} parent=71 // pred_check_branch
        %519 = sbr.rel (%p517) target = $region84
      $region83: #{roberta_v_pretraining_forward.5} parent=71 // pred_region
        %p520 = scmp.lt.s32.totalorder %s30, 1
        %s521 = scalar_select %p520, %s30, 1
        %s522 = scalar_lea.vmem %s2, %s521
      $region84: #{roberta_v_pretraining_forward.5} parent=71 // pred_fallthru
        _
    $region72: #{roberta_v_pretraining_forward.5} parent=5 // pred_fallthru
      _
    %p523 = scmp.le.s32.totalorder 1, %s23
    %p524 = scmp.lt.s32.totalorder %s23, 5
    %p525 = pnand %p523, %p524
    %p526 = pneg %p525
    // Predicated region
    $region85: #{roberta_v_pretraining_forward.5} parent=5 // pred_check
      _
    $region86: #{roberta_v_pretraining_forward.5} parent=5 // pred_check_branch
      %528 = sbr.rel (%p525) target = $region88
    $region87: #{roberta_v_pretraining_forward.5} parent=5 // pred_region
      %s529 = ssub.s32 %s23, 1
      %p530 = scmp.lt.s32.totalorder %s32, 1
      %s531 = scalar_select %p530, %s32, 1
      %p532 = scmp.lt.s32.totalorder %s33, 1
      %s533 = scalar_select %p532, %s33, 1
      %s534 = smul.addr %s531, 2
      %s535 = sadd.s32 %s533, %s534
      %s536 = smul.addr %s535, 4
      %s537 = scalar_lea.vmem %s0, %s536
      %p538 = pneg %p63
      %p539 = pneg %p60
      %p540 = scmp.lt.s32.totalorder %s32, 1
      %s541 = scalar_select %p540, %s32, 1
      %s542 = smul.addr %s541, 2
      %s543 = smul.addr %s542, 4
      %s544 = scalar_lea.vmem %s1, %s543
      %p545 = pneg %p89
      %p546 = pneg %p86
      %p547 = scmp.lt.s32.totalorder %s32, 1
      %s548 = scalar_select %p547, %s32, 1
      %s549 = scalar_lea.vmem %s2, %s548
      %p550 = pneg %p115
      %p551 = pneg %p112
      %p552 = pneg %p136
      %p553 = pneg %p133
      %p554 = pneg %p157
      %p555 = pneg %p154
      %p556 = pneg %p178
      %p557 = pneg %p175
      %p558 = pneg %p199
      %p559 = pneg %p196
      %p560 = pneg %p220
      %p561 = pneg %p217
      %p562 = pneg %p241
      %p563 = pneg %p238
      %p564 = pneg %p262
      %p565 = pneg %p259
      %p566 = pneg %p283
      %p567 = pneg %p280
      %p568 = pneg %p304
      %p569 = pneg %p301
      %p570 = pneg %p325
      %p571 = pneg %p322
      %p572 = pneg %p346
      %p573 = pneg %p343
      %p574 = pneg %p367
      %p575 = pneg %p364
      %p576 = pneg %p388
      %p577 = pneg %p385
      %p578 = pneg %p409
      %p579 = pneg %p406
      %p580 = pneg %p437
      %p581 = pneg %p434
      %p582 = scmp.lt.s32.totalorder %s32, 1
      %s583 = scalar_select %p582, %s32, 1
      %p584 = scmp.lt.s32.totalorder %s33, 1
      %s585 = scalar_select %p584, %s33, 1
      %s586 = smul.addr %s583, 2
      %s587 = sadd.s32 %s585, %s586
      %s588 = smul.addr %s587, 4
      %s589 = scalar_lea.vmem %s17, %s588
      %p590 = scmp.lt.s32.totalorder %s32, 1
      %s591 = scalar_select %p590, %s32, 1
      %p592 = scmp.lt.s32.totalorder %s33, 1
      %s593 = scalar_select %p592, %s33, 1
      %s594 = smul.addr %s591, 2
      %s595 = sadd.s32 %s593, %s594
      %s596 = smul.addr %s595, 4
      %s597 = scalar_lea.vmem %s0, %s596
      %p598 = scmp.lt.s32.totalorder %s32, 1
      %s599 = scalar_select %p598, %s32, 1
      %s600 = smul.addr %s599, 2
      %s601 = smul.addr %s600, 4
      %s602 = scalar_lea.vmem %s1, %s601
      %p603 = scmp.lt.s32.totalorder %s32, 1
      %s604 = scalar_select %p603, %s32, 1
      %s605 = scalar_lea.vmem %s2, %s604
      %p606 = scmp.lt.s32.totalorder %s32, 1
      %s607 = scalar_select %p606, %s32, 1
      %p608 = scmp.lt.s32.totalorder %s33, 1
      %s609 = scalar_select %p608, %s33, 1
      %s610 = smul.addr %s607, 2
      %s611 = sadd.s32 %s609, %s610
      %s612 = smul.addr %s611, 4
      %s613 = scalar_lea.vmem %s17, %s612
      %v615 = vld [vmem:[%s597] sm:$0xf]
      %v616 = vld [vmem:[%s602] sm:$0xf]
      %v617 = vld [vmem:[%s602 + $0x4] sm:$0xf]
      %v618 = vld [vmem:[%s605] sm:$0x1]
      %v619 = vunpack.c.l.bf16 %v618
      %v620 = vld [vmem:[%s3] sm:$0xf]
      %v621 = vld [vmem:[%s3 + $0x4] sm:$0xf]
      %v622 = vld [vmem:[%s3 + $0x8] sm:$0xf]
      %v623 = vld [vmem:[%s3 + $0xc] sm:$0xf]
      %v624 = vld [vmem:[%s4] sm:$0x1]
      %v626 = vperm.slane %v624, 0
      %v632 = vunpack.c.l.b16 %v620
      %v633 = vunpack.c.l.b16 %v621
      %v634 = vunpack.c.l.b16 %v622
      %v635 = vunpack.c.l.b16 %v623
      %v636 = vpack.c.b16 %v633, %v632
      %v637 = vpack.c.b16 %v635, %v634
      %vm640 = vcmask 261120
      %v642 = vsel %vm640, %v615, 0
      %644 = vmatpush.bf16.msra.mxu0 0
      %645 = vmatpush.bf16.msra.mxu0 0
      %646 = vmatpush.bf16.msra.mxu0 0
      %647 = vmatpush.bf16.msra.mxu0 0
      %648 = vmatpush.bf16.msra.mxu0 0
      %649 = vmatpush.bf16.msra.mxu0 0
      %650 = vmatpush.bf16.msra.mxu0 %v637
      %651 = vmatpush.bf16.msra.mxu0 %v636
      %652 = vmatmul.bf16.gmra.mxu0 %v642
      %v653 = vpop.f32.mrf.mxu0
      %v654 = vadd.f32 %v626, %v653
      %v655 = vpop.f32.mrf.mxu0
      %656 = vdwg.mxu0
      %v657 = vpack.c.bf16 %v654, %v654
      %v658 = vld [vmem:[%s5] sm:$0xf]
      %v659 = vld [vmem:[%s5 + $0x4] sm:$0xf]
      %v660 = vld [vmem:[%s5 + $0x8] sm:$0xf]
      %v661 = vld [vmem:[%s5 + $0xc] sm:$0xf]
      %v662 = vld [vmem:[%s6] sm:$0x1]
      %v664 = vperm.slane %v662, 0
      %v668 = vunpack.c.l.b16 %v616
      %v669 = vunpack.c.l.b16 %v617
      %v670 = vpack.c.b16 %v669, %v668
      %v675 = vunpack.c.l.b16 %v658
      %v676 = vunpack.c.l.b16 %v659
      %v677 = vunpack.c.l.b16 %v660
      %v678 = vunpack.c.l.b16 %v661
      %v679 = vpack.c.b16 %v676, %v675
      %v680 = vpack.c.b16 %v678, %v677
      %v684 = vsel %vm640, %v670, 0
      %686 = vmatpush.bf16.msra.mxu0 0
      %687 = vmatpush.bf16.msra.mxu0 0
      %688 = vmatpush.bf16.msra.mxu0 0
      %689 = vmatpush.bf16.msra.mxu0 0
      %690 = vmatpush.bf16.msra.mxu0 0
      %691 = vmatpush.bf16.msra.mxu0 0
      %692 = vmatpush.bf16.msra.mxu0 %v680
      %693 = vmatpush.bf16.msra.mxu0 %v679
      %694 = vmatmul.bf16.gmra.mxu0 %v684
      %v695 = vpop.f32.mrf.mxu0
      %v696 = vadd.f32 %v664, %v695
      %v697 = vpop.f32.mrf.mxu0
      %v698 = vadd.f32 %v664, %v697
      %699 = vdwg.mxu0
      %v700 = vpack.c.bf16 %v696, %v696
      %v701 = vpack.c.bf16 %v698, %v698
      %v704 = vunpack.c.l.b16 %v700
      %v705 = vunpack.c.l.b16 %v701
      %v706 = vpack.c.b16 %v705, %v704
      %vm707 = vcmask 130048
      %v709 = vsel %vm707, %v657, 0
      %v712 = vsel %vm707, %v706, 0
      %714 = vmatpush.bf16.xpose.msra.mxu0 0
      %715 = vmatpush.bf16.xpose.msra.mxu0 0
      %716 = vmatpush.bf16.xpose.msra.mxu0 0
      %717 = vmatpush.bf16.xpose.msra.mxu0 0
      %718 = vmatpush.bf16.xpose.msra.mxu0 0
      %719 = vmatpush.bf16.xpose.msra.mxu0 0
      %720 = vmatpush.bf16.xpose.msra.mxu0 0
      %721 = vmatpush.bf16.xpose.msra.mxu0 %v712
      %722 = vmatmul.bf16.gmra.mxu0 %v709
      %v723 = vpop.f32.mrf.mxu0
      %v724 = vadd.f32 0.0, %v723
      %v725 = vpop.f32.mrf.mxu0
      %726 = vdwg.mxu0
      %v727 = vmul.f32 %v724, 0.25
      %v728 = vperm.slane %v619, 0
      %v729 = vadd.f32 %v727, %v728
      %v730 = vsel %vm707, %v729, -inf
      %731 = vmax.xlane.f32.xlu0 %v730
      %v732 = vpop.xlane.xlu0 %731
      %v733 = vsub.f32 %v729, %v732
      %v734 = vmul.f32 %v733, 1.442695
      %v735 = vpow.pop %v734
      %v736 = vsel %vm707, %v735, 0.0
      %737 = vadd.xlane.f32.xlu0 %v736
      %v738 = vpop.xlane.xlu0 %737
      %v739 = vrcp.pop %v738
      %v740 = vmul.f32 %v735, %v739
      %v741 = vpack.c.bf16 %v740, %v740
      %742 = vrot.lane.b32.xlu0 %v706, 96
      %v743 = vpop.permute.xlu0 %742
      %v746 = vsel %vm707, %v741, 0
      %748 = vmatpush.bf16.msra.mxu0 0
      %749 = vmatpush.bf16.msra.mxu0 0
      %750 = vmatpush.bf16.msra.mxu0 0
      %751 = vmatpush.bf16.msra.mxu0 0
      %752 = vmatpush.bf16.msra.mxu0 0
      %753 = vmatpush.bf16.msra.mxu0 0
      %754 = vmatpush.bf16.msra.mxu0 0
      %755 = vmatpush.bf16.msra.mxu0 %v743
      %756 = vmatmul.bf16.gmra.mxu0 %v746
      %v757 = vpop.f32.mrf.mxu0
      %v758 = vadd.f32 0.0, %v757
      %v759 = vpop.f32.mrf.mxu0
      %760 = vdwg.mxu0
      %v761 = vpack.c.bf16 %v758, %v758
      %v763 = vunpack.c.l.b16 %v657
      %v764 = vpack.c.b16 %v763, %v763
      %765 = vrot.lane.b32.xlu0 %v764, 112
      %v766 = vpop.permute.xlu0 %765
      %767 = vrot.lane.b32.xlu0 %v706, 112
      %v768 = vpop.permute.xlu0 %767
      %v770 = vsel %vm707, %v766, 0
      %v773 = vsel %vm707, %v768, 0
      %775 = vmatpush.bf16.xpose.msra.mxu0 0
      %776 = vmatpush.bf16.xpose.msra.mxu0 0
      %777 = vmatpush.bf16.xpose.msra.mxu0 0
      %778 = vmatpush.bf16.xpose.msra.mxu0 0
      %779 = vmatpush.bf16.xpose.msra.mxu0 0
      %780 = vmatpush.bf16.xpose.msra.mxu0 0
      %781 = vmatpush.bf16.xpose.msra.mxu0 0
      %782 = vmatpush.bf16.xpose.msra.mxu0 %v773
      %783 = vmatmul.bf16.gmra.mxu0 %v770
      %v784 = vpop.f32.mrf.mxu0
      %v785 = vadd.f32 0.0, %v784
      %v786 = vpop.f32.mrf.mxu0
      %787 = vdwg.mxu0
      %v788 = vmul.f32 %v785, 0.25
      %v789 = vadd.f32 %v788, %v728
      %v790 = vsel %vm707, %v789, -inf
      %791 = vmax.xlane.f32.xlu0 %v790
      %v792 = vpop.xlane.xlu0 %791
      %v793 = vsub.f32 %v789, %v792
      %v794 = vmul.f32 %v793, 1.442695
      %v795 = vpow.pop %v794
      %v796 = vsel %vm707, %v795, 0.0
      %797 = vadd.xlane.f32.xlu0 %v796
      %v798 = vpop.xlane.xlu0 %797
      %v799 = vrcp.pop %v798
      %v800 = vmul.f32 %v795, %v799
      %v801 = vpack.c.bf16 %v800, %v800
      %802 = vrot.lane.b32.xlu0 %v706, 80
      %v803 = vpop.permute.xlu0 %802
      %v806 = vsel %vm707, %v801, 0
      %808 = vmatpush.bf16.msra.mxu0 0
      %809 = vmatpush.bf16.msra.mxu0 0
      %810 = vmatpush.bf16.msra.mxu0 0
      %811 = vmatpush.bf16.msra.mxu0 0
      %812 = vmatpush.bf16.msra.mxu0 0
      %813 = vmatpush.bf16.msra.mxu0 0
      %814 = vmatpush.bf16.msra.mxu0 0
      %815 = vmatpush.bf16.msra.mxu0 %v803
      %816 = vmatmul.bf16.gmra.mxu0 %v806
      %v817 = vpop.f32.mrf.mxu0
      %v818 = vadd.f32 0.0, %v817
      %v819 = vpop.f32.mrf.mxu0
      %820 = vdwg.mxu0
      %v821 = vpack.c.bf16 %v818, %v818
      %v823 = vunpack.c.l.b16 %v821
      %v824 = vpack.c.b16 %v823, %v823
      %825 = vrot.lane.b32.xlu0 %v824, 16
      %v826 = vpop.permute.xlu0 %825
      %v829 = vsel %vm707, %v761, %v826
      %v830 = vld [vmem:[%s7] sm:$0xf]
      %v831 = vld [vmem:[%s7 + $0x4] sm:$0xf]
      %v832 = vld [vmem:[%s7 + $0x8] sm:$0xf]
      %v833 = vld [vmem:[%s7 + $0xc] sm:$0xf]
      %v834 = vld [vmem:[%s8] sm:$0x1]
      %v836 = vperm.slane %v834, 0
      %v842 = vunpack.c.l.b16 %v830
      %v843 = vunpack.c.l.b16 %v831
      %v844 = vunpack.c.l.b16 %v832
      %v845 = vunpack.c.l.b16 %v833
      %v846 = vpack.c.b16 %v843, %v842
      %v847 = vpack.c.b16 %v845, %v844
      %v850 = vsel %vm640, %v829, 0
      %852 = vmatpush.bf16.msra.mxu0 0
      %853 = vmatpush.bf16.msra.mxu0 0
      %854 = vmatpush.bf16.msra.mxu0 0
      %855 = vmatpush.bf16.msra.mxu0 0
      %856 = vmatpush.bf16.msra.mxu0 0
      %857 = vmatpush.bf16.msra.mxu0 0
      %858 = vmatpush.bf16.msra.mxu0 %v847
      %859 = vmatpush.bf16.msra.mxu0 %v846
      %860 = vmatmul.bf16.gmra.mxu0 %v850
      %v861 = vpop.f32.mrf.mxu0
      %v862 = vadd.f32 %v836, %v861
      %v863 = vpop.f32.mrf.mxu0
      %864 = vdwg.mxu0
      %v865 = vunpack.c.l.bf16 %v615
      %v866 = vadd.f32 %v862, %v865
      %v867 = vld [vmem:[%s9] sm:$0x1]
      %v868 = vld [vmem:[%s10] sm:$0x1]
      %v869 = vsel %vm640, %v866, 0.0
      %870 = vadd.xlane.f32.xlu0 %v869
      %v871 = vpop.xlane.xlu0 %870
      %v872 = vrcp.pop 32.0
      %v873 = vmul.f32 32.0, %v872
      %v874 = vsub.f32 1.0, %v873
      %v875 = vmul.f32 %v872, %v874
      %v876 = vadd.f32 %v872, %v875
      %vm877 = vweird.f32 %v872
      %v878 = vsel %vm877, %v872, %v876
      %v879 = vmul.f32 %v871, %v878
      %v880 = vsub.f32 %v866, %v879
      %v881 = vmul.f32 %v880, %v880
      %v882 = vsel %vm640, %v881, 0.0
      %883 = vadd.xlane.f32.xlu0 %v882
      %v884 = vpop.xlane.xlu0 %883
      %v885 = vmul.f32 %v884, %v878
      %v886 = vadd.f32 %v885, 1e-05
      %v887 = vrsqrt.pop %v886
      %v888 = vmul.f32 %v887, %v886
      %v889 = vmul.f32 %v888, %v887
      %v890 = vmul.f32 0.5, %v889
      %v891 = vsub.f32 1.5, %v890
      %v892 = vmul.f32 %v887, %v891
      %vm893 = vweird.f32 %v886
      %vm894 = vweird.f32 %v887
      %vm895 = vmor %vm893, %vm894
      %v896 = vsel %vm895, %v887, %v892
      %v897 = vmul.f32 %v880, %v896
      %v899 = vperm.slane %v867, 0
      %v901 = vmul.f32 %v897, %v899
      %v903 = vperm.slane %v868, 0
      %v905 = vadd.f32 %v901, %v903
      %v906 = vpack.c.bf16 %v905, %v905
      %v907 = vld [vmem:[%s11] sm:$0xf]
      %v908 = vld [vmem:[%s11 + $0x4] sm:$0xf]
      %v909 = vld [vmem:[%s11 + $0x8] sm:$0xf]
      %v910 = vld [vmem:[%s11 + $0xc] sm:$0xf]
      %v911 = vld [vmem:[%s12] sm:$0x1]
      %v913 = vperm.slane %v911, 0
      %v919 = vunpack.c.l.b16 %v907
      %v920 = vunpack.c.l.b16 %v908
      %v921 = vunpack.c.l.b16 %v909
      %v922 = vunpack.c.l.b16 %v910
      %v923 = vpack.c.b16 %v920, %v919
      %v924 = vpack.c.b16 %v922, %v921
      %v928 = vsel %vm640, %v906, 0
      %930 = vmatpush.bf16.msra.mxu0 0
      %931 = vmatpush.bf16.msra.mxu0 0
      %932 = vmatpush.bf16.msra.mxu0 0
      %933 = vmatpush.bf16.msra.mxu0 0
      %934 = vmatpush.bf16.msra.mxu0 0
      %935 = vmatpush.bf16.msra.mxu0 0
      %936 = vmatpush.bf16.msra.mxu0 %v924
      %937 = vmatpush.bf16.msra.mxu0 %v923
      %938 = vmatmul.bf16.gmra.mxu0 %v928
      %v939 = vpop.f32.mrf.mxu0
      %v940 = vadd.f32 %v913, %v939
      %v941 = vpop.f32.mrf.mxu0
      %942 = vdwg.mxu0
      %v943 = vmul.f32 %v940, 0.5
      %v944 = vmul.f32 %v940, 0.70710677
      %v945 = vmul.f32 %v944, %v944
      %v946 = vmin.f32 16.0, %v945
      %v947 = vmul.f32 %v946, 2.1237322e-06
      %v948 = vadd.f32 %v947, 0.00028619796
      %v949 = vmul.f32 %v946, %v948
      %v950 = vadd.f32 %v949, 0.0036580483
      %v951 = vmul.f32 %v946, %v950
      %v952 = vadd.f32 %v951, 0.05243302
      %v953 = vmul.f32 %v946, %v952
      %v954 = vadd.f32 %v953, 0.18741608
      %v955 = vmul.f32 %v946, %v954
      %v956 = vadd.f32 %v955, 1.1283791
      %v957 = vmul.f32 %v944, %v956
      %v958 = vmul.f32 %v946, 3.8918573e-05
      %v959 = vadd.f32 %v958, 0.001143296
      %v960 = vmul.f32 %v946, %v959
      %v961 = vadd.f32 %v960, 0.014752088
      %v962 = vmul.f32 %v946, %v961
      %v963 = vadd.f32 %v962, 0.112945676
      %v964 = vmul.f32 %v946, %v963
      %v965 = vadd.f32 %v964, 0.4994258
      %v966 = vmul.f32 %v946, %v965
      %v967 = vadd.f32 %v966, 1.0
      %v968 = vrcp.pop %v967
      %v969 = vmul.f32 %v967, %v968
      %v970 = vsub.f32 1.0, %v969
      %v971 = vmul.f32 %v968, %v970
      %v972 = vadd.f32 %v968, %v971
      %vm973 = vweird.f32 %v967
      %vm974 = vweird.f32 %v968
      %vm975 = vmor %vm973, %vm974
      %v976 = vsel %vm975, %v968, %v972
      %v977 = vand.u32 2147483647, %v967
      %vm978 = vcmp.eq.f32.partialorder %v977, 8.507059e+37
      %v979 = vand.u32 %v967, 2147483648
      %v980 = vor.u32 1.1754944e-38, %v979
      %v981 = vsel %vm978, %v980, %v976
      %v982 = vmul.f32 %v957, %v981
      %v983 = vmin.f32 %v982, 1.0
      %v984 = vmax.f32 %v983, -1.0
      %v985 = vadd.f32 %v984, 1.0
      %v986 = vmul.f32 %v943, %v985
      %v987 = vpack.c.bf16 %v986, %v986
      %v988 = vld [vmem:[%s13] sm:$0xf]
      %v989 = vld [vmem:[%s13 + $0x4] sm:$0xf]
      %v990 = vld [vmem:[%s13 + $0x8] sm:$0xf]
      %v991 = vld [vmem:[%s13 + $0xc] sm:$0xf]
      %v992 = vld [vmem:[%s13 + $0x10] sm:$0xf]
      %v993 = vld [vmem:[%s13 + $0x14] sm:$0xf]
      %v994 = vld [vmem:[%s13 + $0x18] sm:$0xf]
      %v995 = vld [vmem:[%s13 + $0x1c] sm:$0xf]
      %v996 = vld [vmem:[%s14] sm:$0x1]
      %v998 = vperm.slane %v996, 0
      %v1008 = vunpack.c.l.b16 %v988
      %v1009 = vunpack.c.l.b16 %v989
      %v1010 = vunpack.c.l.b16 %v990
      %v1011 = vunpack.c.l.b16 %v991
      %v1012 = vunpack.c.l.b16 %v992
      %v1013 = vunpack.c.l.b16 %v993
      %v1014 = vunpack.c.l.b16 %v994
      %v1015 = vunpack.c.l.b16 %v995
      %v1016 = vpack.c.b16 %v1009, %v1008
      %v1017 = vpack.c.b16 %v1011, %v1010
      %v1018 = vpack.c.b16 %v1013, %v1012
      %v1019 = vpack.c.b16 %v1015, %v1014
      %vm1024 = vcmask 523264
      %v1026 = vsel %vm1024, %v987, 0
      %1028 = vmatpush.bf16.msra.mxu0 0
      %1029 = vmatpush.bf16.msra.mxu0 0
      %1030 = vmatpush.bf16.msra.mxu0 0
      %1031 = vmatpush.bf16.msra.mxu0 0
      %1032 = vmatpush.bf16.msra.mxu0 %v1019
      %1033 = vmatpush.bf16.msra.mxu0 %v1018
      %1034 = vmatpush.bf16.msra.mxu0 %v1017
      %1035 = vmatpush.bf16.msra.mxu0 %v1016
      %1036 = vmatmul.bf16.gmra.mxu0 %v1026
      %v1037 = vpop.f32.mrf.mxu0
      %v1038 = vadd.f32 %v998, %v1037
      %v1039 = vpop.f32.mrf.mxu0
      %1040 = vdwg.mxu0
      %v1041 = vadd.f32 %v1038, %v905
      %v1042 = vld [vmem:[%s15] sm:$0x1]
      %v1043 = vld [vmem:[%s16] sm:$0x1]
      %v1044 = vsel %vm640, %v1041, 0.0
      %1045 = vadd.xlane.f32.xlu0 %v1044
      %v1046 = vpop.xlane.xlu0 %1045
      %v1047 = vmul.f32 %v1046, %v878
      %v1048 = vsub.f32 %v1041, %v1047
      %v1049 = vmul.f32 %v1048, %v1048
      %v1050 = vsel %vm640, %v1049, 0.0
      %1051 = vadd.xlane.f32.xlu0 %v1050
      %v1052 = vpop.xlane.xlu0 %1051
      %v1053 = vmul.f32 %v1052, %v878
      %v1054 = vadd.f32 %v1053, 1e-05
      %v1055 = vrsqrt.pop %v1054
      %v1056 = vmul.f32 %v1055, %v1054
      %v1057 = vmul.f32 %v1056, %v1055
      %v1058 = vmul.f32 0.5, %v1057
      %v1059 = vsub.f32 1.5, %v1058
      %v1060 = vmul.f32 %v1055, %v1059
      %vm1061 = vweird.f32 %v1054
      %vm1062 = vweird.f32 %v1055
      %vm1063 = vmor %vm1061, %vm1062
      %v1064 = vsel %vm1063, %v1055, %v1060
      %v1065 = vmul.f32 %v1048, %v1064
      %v1067 = vperm.slane %v1042, 0
      %v1069 = vmul.f32 %v1065, %v1067
      %v1071 = vperm.slane %v1043, 0
      %v1073 = vadd.f32 %v1069, %v1071
      %v1074 = vpack.c.bf16 %v1073, %v1073
      %vm1075 = vcmask 257024
      %1076 = vst.msk [vmem:[%s613] sm:$0xf] %vm1075, %v1074
      %p1077 = scmp.lt.s32.totalorder %s32, 1
      %s1078 = scalar_select %p1077, %s32, 1
      %p1079 = scmp.lt.s32.totalorder %s33, 1
      %s1080 = scalar_select %p1079, %s33, 1
      %s1081 = smul.addr %s1078, 2
      %s1082 = sadd.s32 %s1080, %s1081
      %s1083 = smul.addr %s1082, 4
      %s1084 = scalar_lea.vmem %s17, %s1083
      // Predicated region
      $region89: #{roberta_v_pretraining_forward.5} parent=87 // pred_check
        %p1085 = pneg %p434
      $region90: #{roberta_v_pretraining_forward.5} parent=87 // pred_check_branch
        %1087 = sbr.rel (%p1085) target = $region92
      $region91: #{roberta_v_pretraining_forward.5} parent=87 // pred_region
        _
      $region92: #{roberta_v_pretraining_forward.5} parent=87 // pred_fallthru
        _
    $region88: #{roberta_v_pretraining_forward.5} parent=5 // pred_fallthru
      _
    %p1088 = scmp.le.s32.totalorder 2, %s23
    // Predicated region
    $region93: #{roberta_v_pretraining_forward.5} parent=5 // pred_check
      %p1089 = pneg %p1088
    $region94: #{roberta_v_pretraining_forward.5} parent=5 // pred_check_branch
      %1091 = sbr.rel (%p1089) target = $region96
    $region95: #{roberta_v_pretraining_forward.5} parent=5 // pred_region
      %s1092 = ssub.s32 %s23, 2
      // Predicated region
      $region97: #{roberta_v_pretraining_forward.5} parent=95 // pred_check
        %p1093 = pneg %p440
      $region98: #{roberta_v_pretraining_forward.5} parent=95 // pred_check_branch
        %1095 = sbr.rel (%p1093) target = $region100
      $region99: #{roberta_v_pretraining_forward.5} parent=95 // pred_region
        %p1096 = scmp.lt.s32.totalorder %s34, 1
        %s1097 = scalar_select %p1096, %s34, 1
        %p1098 = scmp.lt.s32.totalorder %s35, 1
        %s1099 = scalar_select %p1098, %s35, 1
        %s1100 = smul.addr %s1097, 2
        %s1101 = sadd.s32 %s1099, %s1100
        %s1102 = smul.addr %s1101, 4
        %s1103 = scalar_lea.vmem %s17, %s1102
      $region100: #{roberta_v_pretraining_forward.5} parent=95 // pred_fallthru
        _
    $region96: #{roberta_v_pretraining_forward.5} parent=5 // pred_fallthru
      _
  $region6: #{roberta_v_pretraining_forward.5} parent=0 // loop_footer
    %s27 = sadd.s32 1, %s23
  $region7: #{roberta_v_pretraining_forward.5} parent=0 // loop_footer_branch
    %22 = sbr.rel target = $region3
  $region8: #{roberta_v_pretraining_forward.5} parent=0 // loop_exit
    _

// kernel: roberta_v_pretraining_forward.7
$region0: #{roberta_v_pretraining_forward.7}
  #allocation0 [shape = 'u32[]', space=smem, size = 0x4, offset = 0x4, fixed_abs, tag = 'smem constant byte address 0x4 - core index']
  #allocation1 [shape = 'u32[72,128]{1,0:T(1,128)}', space=vmem, size = 0x9000, scoped, tag = 'internal scratch']
  #allocation2 [shape = 'bf16[16,32]{1,0:T(8,128)(2,1)}', space=vmem, size = 0x1000, scoped, tag = 'scratch operand']
  #allocation3 [shape = 'f32[16,1]{1,0:T(8,128)}', space=vmem, size = 0x2000, scoped, tag = 'scratch operand']
  #allocation4 [shape = 'f32[16,1]{1,0:T(8,128)}', space=vmem, size = 0x2000, scoped, tag = 'scratch operand']
  #allocation5 [shape = 'f32[16,1]{1,0:T(8,128)}', space=vmem, size = 0x2000, scoped, tag = 'scratch operand']
  %s0 = inlined_call_operand.vmem [shape: bf16[32,32], index: 0, kind: input, shape index: {}]
  %s1 = inlined_call_operand.vmem [shape: s32[32,1], index: 1, kind: input, shape index: {}]
  %s2 = inlined_call_operand.vmem [shape: bf16[32,32], index: 2, kind: input, shape index: {}]
  %s3 = inlined_call_operand.vmem [shape: f32[1,32], index: 3, kind: input, shape index: {}]
  %s4 = inlined_call_operand.vmem [shape: f32[1,32], index: 4, kind: input, shape index: {}]
  %s5 = inlined_call_operand.vmem [shape: f32[1,32], index: 5, kind: input, shape index: {}]
  %s6 = inlined_call_operand.vmem [shape: bf16[32,256], index: 6, kind: input, shape index: {}]
  %s7 = inlined_call_operand.vmem [shape: f32[1,256], index: 7, kind: input, shape index: {}]
  %s8 = inlined_call_operand.vmem [shape: f32[2,8,128], index: 8, kind: output, shape index: {}]
  %s9 = sld [smem:[#allocation0]]
  $region114: #{roberta_v_pretraining_forward.7} parent=0
    _
  %s11 = ssub.s32 1, %s9
  %s12 = scalar_select 0, %s11, %s9
  $region1: #{roberta_v_pretraining_forward.7} parent=0
    #allocation6 [shape = 'u8[16384]{0}', space=vmem, size = 0x4000, scoped, tag = 'input window, operand 6']
    loop: start=0, step=1, limit=6
    $region2: #{roberta_v_pretraining_forward.7} parent=1 // loop_pre_header
      _
    $region3: #{roberta_v_pretraining_forward.7} parent=1 // loop_header
      %s14 = sphi 0, %s18
      %p15 = scmp.ge.s32.totalorder %s14, 6
      %s21 = sphi 0, %s33
      %s22 = sphi 0, %s29
      %s23 = sphi 0, %s21
      %s24 = sphi 0, %s22
      %s25 = sphi 0, %s23
      %s26 = sphi 0, %s24
      %s36 = sphi 0, %s38
      %s39 = sphi 0, %s36
      %s40 = sphi 0, %s39
      %s56 = sphi 0, %s40
      %s62 = sphi 0, %s64
      %s65 = sphi 0, %s62
      %s66 = sphi 0, %s65
      %s82 = sphi 0, %s66
      %s86 = sphi 0, %s86
      %s88 = sphi 0, %s86
      %s89 = sphi 0, %s88
      %s103 = sphi 0, %s89
      %s107 = sphi 0, %s107
      %s109 = sphi 0, %s107
      %s110 = sphi 0, %s109
      %s124 = sphi 0, %s110
      %s128 = sphi 0, %s128
      %s130 = sphi 0, %s128
      %s131 = sphi 0, %s130
      %s145 = sphi 0, %s131
      %s149 = sphi 0, %s149
      %s151 = sphi 0, %s149
      %s152 = sphi 0, %s151
      %s166 = sphi 0, %s152
      %s172 = sphi 0, %s174
      %s175 = sphi 0, %s172
      %s176 = sphi 0, %s175
      %s192 = sphi 0, %s176
      %s198 = sphi 0, %s200
      %s201 = sphi 0, %s198
      %s202 = sphi 0, %s201
      %s218 = sphi 0, %s202
      %s224 = sphi 0, %s226
      %s227 = sphi 0, %s224
      %s228 = sphi 0, %s227
      %s244 = sphi 0, %s228
    $region4: #{roberta_v_pretraining_forward.7} parent=1 // loop_header_branch
      %17 = sbr.rel (%p15) target = $region8
    $region5: #{roberta_v_pretraining_forward.7} parent=1 // loop_body
      %s19 = ssub.s32 %s14, 1
      %s20 = ssub.s32 %s14, 2
      %s27 = sadd.s32 1, %s22
      %p28 = scmp.ge.s32.totalorder %s27, 2
      %s29 = scalar_select %p28, 0, %s27
      %s30 = sadd.s32 1, %s21
      %s31 = scalar_select %p28, %s30, %s21
      %p32 = scmp.ge.s32.totalorder %s31, 2
      %s33 = scalar_select %p32, 0, %s31
      %s34 = ssub.s32 %s21, %s33
      %p35 = scmp.eq.s32.totalorder %s34, 0
      %s37 = sadd.s32 %s36, 1
      %s38 = scalar_select %p35, %s36, %s37
      %p41 = pneg %p35
      %p42 = scmp.eq.s32.totalorder %s14, 3
      %p43 = por %p41, %p42
      %p44 = scmp.ne.s32.totalorder %s36, %s39
      %p45 = scmp.eq.s32.totalorder %s14, 0
      %p46 = por %p44, %p45
      %p47 = scmp.ne.s32.totalorder %s36, %s39
      %p48 = scmp.eq.s32.totalorder %s19, 3
      %p49 = por %p47, %p48
      %p50 = scmp.ne.s32.totalorder %s39, %s40
      %p51 = scmp.eq.s32.totalorder %s19, 0
      %p52 = por %p50, %p51
      %p53 = scmp.ne.s32.totalorder %s39, %s40
      %p54 = scmp.eq.s32.totalorder %s20, 3
      %p55 = por %p53, %p54
      %p57 = scmp.ne.s32.totalorder %s40, %s56
      %p58 = scmp.eq.s32.totalorder %s20, 0
      %p59 = por %p57, %p58
      %s60 = ssub.s32 %s21, %s33
      %p61 = scmp.eq.s32.totalorder %s60, 0
      %s63 = sadd.s32 %s62, 1
      %s64 = scalar_select %p61, %s62, %s63
      %p67 = pneg %p61
      %p68 = scmp.eq.s32.totalorder %s14, 3
      %p69 = por %p67, %p68
      %p70 = scmp.ne.s32.totalorder %s62, %s65
      %p71 = scmp.eq.s32.totalorder %s14, 0
      %p72 = por %p70, %p71
      %p73 = scmp.ne.s32.totalorder %s62, %s65
      %p74 = scmp.eq.s32.totalorder %s19, 3
      %p75 = por %p73, %p74
      %p76 = scmp.ne.s32.totalorder %s65, %s66
      %p77 = scmp.eq.s32.totalorder %s19, 0
      %p78 = por %p76, %p77
      %p79 = scmp.ne.s32.totalorder %s65, %s66
      %p80 = scmp.eq.s32.totalorder %s20, 3
      %p81 = por %p79, %p80
      %p83 = scmp.ne.s32.totalorder %s66, %s82
      %p84 = scmp.eq.s32.totalorder %s20, 0
      %p85 = por %p83, %p84
      %s87 = sadd.s32 %s86, 1
      %p90 = scmp.eq.s32.totalorder %s14, 3
      %p91 = scmp.ne.s32.totalorder %s86, %s88
      %p92 = scmp.eq.s32.totalorder %s14, 0
      %p93 = por %p91, %p92
      %p94 = scmp.ne.s32.totalorder %s86, %s88
      %p95 = scmp.eq.s32.totalorder %s19, 3
      %p96 = por %p94, %p95
      %p97 = scmp.ne.s32.totalorder %s88, %s89
      %p98 = scmp.eq.s32.totalorder %s19, 0
      %p99 = por %p97, %p98
      %p100 = scmp.ne.s32.totalorder %s88, %s89
      %p101 = scmp.eq.s32.totalorder %s20, 3
      %p102 = por %p100, %p101
      %p104 = scmp.ne.s32.totalorder %s89, %s103
      %p105 = scmp.eq.s32.totalorder %s20, 0
      %p106 = por %p104, %p105
      %s108 = sadd.s32 %s107, 1
      %p111 = scmp.eq.s32.totalorder %s14, 3
      %p112 = scmp.ne.s32.totalorder %s107, %s109
      %p113 = scmp.eq.s32.totalorder %s14, 0
      %p114 = por %p112, %p113
      %p115 = scmp.ne.s32.totalorder %s107, %s109
      %p116 = scmp.eq.s32.totalorder %s19, 3
      %p117 = por %p115, %p116
      %p118 = scmp.ne.s32.totalorder %s109, %s110
      %p119 = scmp.eq.s32.totalorder %s19, 0
      %p120 = por %p118, %p119
      %p121 = scmp.ne.s32.totalorder %s109, %s110
      %p122 = scmp.eq.s32.totalorder %s20, 3
      %p123 = por %p121, %p122
      %p125 = scmp.ne.s32.totalorder %s110, %s124
      %p126 = scmp.eq.s32.totalorder %s20, 0
      %p127 = por %p125, %p126
      %s129 = sadd.s32 %s128, 1
      %p132 = scmp.eq.s32.totalorder %s14, 3
      %p133 = scmp.ne.s32.totalorder %s128, %s130
      %p134 = scmp.eq.s32.totalorder %s14, 0
      %p135 = por %p133, %p134
      %p136 = scmp.ne.s32.totalorder %s128, %s130
      %p137 = scmp.eq.s32.totalorder %s19, 3
      %p138 = por %p136, %p137
      %p139 = scmp.ne.s32.totalorder %s130, %s131
      %p140 = scmp.eq.s32.totalorder %s19, 0
      %p141 = por %p139, %p140
      %p142 = scmp.ne.s32.totalorder %s130, %s131
      %p143 = scmp.eq.s32.totalorder %s20, 3
      %p144 = por %p142, %p143
      %p146 = scmp.ne.s32.totalorder %s131, %s145
      %p147 = scmp.eq.s32.totalorder %s20, 0
      %p148 = por %p146, %p147
      %s150 = sadd.s32 %s149, 1
      %p153 = scmp.eq.s32.totalorder %s14, 3
      %p154 = scmp.ne.s32.totalorder %s149, %s151
      %p155 = scmp.eq.s32.totalorder %s14, 0
      %p156 = por %p154, %p155
      %p157 = scmp.ne.s32.totalorder %s149, %s151
      %p158 = scmp.eq.s32.totalorder %s19, 3
      %p159 = por %p157, %p158
      %p160 = scmp.ne.s32.totalorder %s151, %s152
      %p161 = scmp.eq.s32.totalorder %s19, 0
      %p162 = por %p160, %p161
      %p163 = scmp.ne.s32.totalorder %s151, %s152
      %p164 = scmp.eq.s32.totalorder %s20, 3
      %p165 = por %p163, %p164
      %p167 = scmp.ne.s32.totalorder %s152, %s166
      %p168 = scmp.eq.s32.totalorder %s20, 0
      %p169 = por %p167, %p168
      %s170 = ssub.s32 %s22, %s29
      %p171 = scmp.eq.s32.totalorder %s170, 0
      %s173 = sadd.s32 %s172, 1
      %s174 = scalar_select %p171, %s172, %s173
      %p177 = pneg %p171
      %p178 = scmp.eq.s32.totalorder %s14, 3
      %p179 = por %p177, %p178
      %p180 = scmp.ne.s32.totalorder %s172, %s175
      %p181 = scmp.eq.s32.totalorder %s14, 0
      %p182 = por %p180, %p181
      %p183 = scmp.ne.s32.totalorder %s172, %s175
      %p184 = scmp.eq.s32.totalorder %s19, 3
      %p185 = por %p183, %p184
      %p186 = scmp.ne.s32.totalorder %s175, %s176
      %p187 = scmp.eq.s32.totalorder %s19, 0
      %p188 = por %p186, %p187
      %p189 = scmp.ne.s32.totalorder %s175, %s176
      %p190 = scmp.eq.s32.totalorder %s20, 3
      %p191 = por %p189, %p190
      %p193 = scmp.ne.s32.totalorder %s176, %s192
      %p194 = scmp.eq.s32.totalorder %s20, 0
      %p195 = por %p193, %p194
      %s196 = ssub.s32 %s22, %s29
      %p197 = scmp.eq.s32.totalorder %s196, 0
      %s199 = sadd.s32 %s198, 1
      %s200 = scalar_select %p197, %s198, %s199
      %p203 = pneg %p197
      %p204 = scmp.eq.s32.totalorder %s14, 3
      %p205 = por %p203, %p204
      %p206 = scmp.ne.s32.totalorder %s198, %s201
      %p207 = scmp.eq.s32.totalorder %s14, 0
      %p208 = por %p206, %p207
      %p209 = scmp.ne.s32.totalorder %s198, %s201
      %p210 = scmp.eq.s32.totalorder %s19, 3
      %p211 = por %p209, %p210
      %p212 = scmp.ne.s32.totalorder %s201, %s202
      %p213 = scmp.eq.s32.totalorder %s19, 0
      %p214 = por %p212, %p213
      %p215 = scmp.ne.s32.totalorder %s201, %s202
      %p216 = scmp.eq.s32.totalorder %s20, 3
      %p217 = por %p215, %p216
      %p219 = scmp.ne.s32.totalorder %s202, %s218
      %p220 = scmp.eq.s32.totalorder %s20, 0
      %p221 = por %p219, %p220
      %s222 = ssub.s32 %s21, %s33
      %p223 = scmp.eq.s32.totalorder %s222, 0
      %s225 = sadd.s32 %s224, 1
      %s226 = scalar_select %p223, %s224, %s225
      %p229 = pneg %p223
      %p230 = scmp.eq.s32.totalorder %s14, 3
      %p231 = por %p229, %p230
      %p232 = scmp.ne.s32.totalorder %s224, %s227
      %p233 = scmp.eq.s32.totalorder %s14, 0
      %p234 = por %p232, %p233
      %p235 = scmp.ne.s32.totalorder %s224, %s227
      %p236 = scmp.eq.s32.totalorder %s19, 3
      %p237 = por %p235, %p236
      %p238 = scmp.ne.s32.totalorder %s227, %s228
      %p239 = scmp.eq.s32.totalorder %s19, 0
      %p240 = por %p238, %p239
      %p241 = scmp.ne.s32.totalorder %s227, %s228
      %p242 = scmp.eq.s32.totalorder %s20, 3
      %p243 = por %p241, %p242
      %p245 = scmp.ne.s32.totalorder %s228, %s244
      %p246 = scmp.eq.s32.totalorder %s20, 0
      %p247 = por %p245, %p246
      %p248 = scmp.le.s32.totalorder 1, %s14
      %p249 = scmp.lt.s32.totalorder %s14, 5
      %p250 = pnand %p248, %p249
      %p251 = pneg %p250
      // Predicated region
      $region9: #{roberta_v_pretraining_forward.7} parent=5 // pred_check
        _
      $region10: #{roberta_v_pretraining_forward.7} parent=5 // pred_check_branch
        %253 = sbr.rel (%p250) target = $region12
      $region11: #{roberta_v_pretraining_forward.7} parent=5 // pred_region
        %s254 = ssub.s32 %s14, 1
        // Predicated region
        $region13: #{roberta_v_pretraining_forward.7} parent=11 // pred_check
          %p255 = pneg %p99
        $region14: #{roberta_v_pretraining_forward.7} parent=11 // pred_check_branch
          %257 = sbr.rel (%p255) target = $region16
        $region15: #{roberta_v_pretraining_forward.7} parent=11 // pred_region
          _
        $region16: #{roberta_v_pretraining_forward.7} parent=11 // pred_fallthru
          _
        // Predicated region
        $region17: #{roberta_v_pretraining_forward.7} parent=11 // pred_check
          %p258 = pneg %p120
        $region18: #{roberta_v_pretraining_forward.7} parent=11 // pred_check_branch
          %260 = sbr.rel (%p258) target = $region20
        $region19: #{roberta_v_pretraining_forward.7} parent=11 // pred_region
          _
        $region20: #{roberta_v_pretraining_forward.7} parent=11 // pred_fallthru
          _
        // Predicated region
        $region21: #{roberta_v_pretraining_forward.7} parent=11 // pred_check
          %p261 = pneg %p141
        $region22: #{roberta_v_pretraining_forward.7} parent=11 // pred_check_branch
          %263 = sbr.rel (%p261) target = $region24
        $region23: #{roberta_v_pretraining_forward.7} parent=11 // pred_region
          _
        $region24: #{roberta_v_pretraining_forward.7} parent=11 // pred_fallthru
          _
        // Predicated region
        $region25: #{roberta_v_pretraining_forward.7} parent=11 // pred_check
          %p264 = pneg %p162
        $region26: #{roberta_v_pretraining_forward.7} parent=11 // pred_check_branch
          %266 = sbr.rel (%p264) target = $region28
        $region27: #{roberta_v_pretraining_forward.7} parent=11 // pred_region
          _
        $region28: #{roberta_v_pretraining_forward.7} parent=11 // pred_fallthru
          _
      $region12: #{roberta_v_pretraining_forward.7} parent=5 // pred_fallthru
        _
      %p267 = scmp.lt.s32.totalorder %s14, 4
      // Predicated region
      $region29: #{roberta_v_pretraining_forward.7} parent=5 // pred_check
        %p268 = pneg %p267
      $region30: #{roberta_v_pretraining_forward.7} parent=5 // pred_check_branch
        %270 = sbr.rel (%p268) target = $region32
      $region31: #{roberta_v_pretraining_forward.7} parent=5 // pred_region
        // Predicated region
        $region33: #{roberta_v_pretraining_forward.7} parent=31 // pred_check
          %p271 = pneg %p46
        $region34: #{roberta_v_pretraining_forward.7} parent=31 // pred_check_branch
          %273 = sbr.rel (%p271) target = $region36
        $region35: #{roberta_v_pretraining_forward.7} parent=31 // pred_region
          %s274 = smul.u32 2, %s21
          %p275 = scmp.lt.s32.totalorder %s274, 3
          %s276 = scalar_select %p275, %s274, 3
          %s277 = smul.addr %s276, 4
          %s278 = scalar_lea.vmem %s0, %s277
          %s279 = smul.u32 2, %s21
        $region36: #{roberta_v_pretraining_forward.7} parent=31 // pred_fallthru
          _
        // Predicated region
        $region37: #{roberta_v_pretraining_forward.7} parent=31 // pred_check
          %p280 = pneg %p72
        $region38: #{roberta_v_pretraining_forward.7} parent=31 // pred_check_branch
          %282 = sbr.rel (%p280) target = $region40
        $region39: #{roberta_v_pretraining_forward.7} parent=31 // pred_region
          %s283 = smul.u32 2, %s21
          %p284 = scmp.lt.s32.totalorder %s283, 3
          %s285 = scalar_select %p284, %s283, 3
          %s286 = smul.addr %s285, 8
          %s287 = scalar_lea.vmem %s1, %s286
          %s288 = smul.u32 2, %s21
        $region40: #{roberta_v_pretraining_forward.7} parent=31 // pred_fallthru
          _
        // Predicated region
        $region41: #{roberta_v_pretraining_forward.7} parent=31 // pred_check
          %p289 = pneg %p182
        $region42: #{roberta_v_pretraining_forward.7} parent=31 // pred_check_branch
          %291 = sbr.rel (%p289) target = $region44
        $region43: #{roberta_v_pretraining_forward.7} parent=31 // pred_region
          %s292 = sand.u32 %s172, 1
          %s293 = sand.u32 %s172, 1
          %s294 = smul.addr %s293, 16
          %s295 = scalar_lea.vmem [#allocation6], %s294
          %s296 = smul.addr %s22, 4
          %s297 = scalar_lea.vmem %s6, %s296
          // Predicated region
          $region45: #{roberta_v_pretraining_forward.7} parent=43 // pred_check
            _
          $region46: #{roberta_v_pretraining_forward.7} parent=43 // pred_check_branch
            %299 = sbr.rel (0) target = $region48
          $region47: #{roberta_v_pretraining_forward.7} parent=43 // pred_region
            // Predicated region
            $region49: #{roberta_v_pretraining_forward.7} parent=47 // pred_check
              _
            $region50: #{roberta_v_pretraining_forward.7} parent=47 // pred_check_branch
              %301 = sbr.rel target = $region52
            $region51: #{roberta_v_pretraining_forward.7} parent=47 // pred_region
              // Predicated region
              $region64: #{roberta_v_pretraining_forward.7} parent=51 // pred_check
                _
              $region65: #{roberta_v_pretraining_forward.7} parent=51 // pred_check_branch
                %323 = sbr.rel (0) target = $region67
              $region66: #{roberta_v_pretraining_forward.7} parent=51 // pred_region
                loop: start=0, step=1, limit=1
                $region68: #{roberta_v_pretraining_forward.7} parent=66 // loop_pre_header
                  _
                $region69: #{roberta_v_pretraining_forward.7} parent=66 // loop_header
                  %s325 = sphi 0, %s329
                  %p326 = scmp.ge.s32.totalorder %s325, 1
                  %s330 = sphi %s297, %s297
                  %s331 = sphi %s295, %s295
                $region70: #{roberta_v_pretraining_forward.7} parent=66 // loop_header_branch
                  %328 = sbr.rel (%p326) target = $region74
                $region71: #{roberta_v_pretraining_forward.7} parent=66 // loop_body
                  _
                $region72: #{roberta_v_pretraining_forward.7} parent=66 // loop_footer
                  %s329 = sadd.s32 1, %s325
                $region73: #{roberta_v_pretraining_forward.7} parent=66 // loop_footer_branch
                  %324 = sbr.rel target = $region69
                $region74: #{roberta_v_pretraining_forward.7} parent=66 // loop_exit
                  _
                %s333 = ssub.s32 16, 1
                loop: start=0, step=1, limit=1
                $region75: #{roberta_v_pretraining_forward.7} parent=66 // loop_pre_header
                  _
                $region76: #{roberta_v_pretraining_forward.7} parent=66 // loop_header
                  %s335 = sphi 0, %s339
                  %p336 = scmp.ge.s32.totalorder %s335, 1
                  %s340 = sphi %s297, %s297
                  %s341 = sphi %s295, %s295
                $region77: #{roberta_v_pretraining_forward.7} parent=66 // loop_header_branch
                  %338 = sbr.rel (%p336) target = $region81
                $region78: #{roberta_v_pretraining_forward.7} parent=66 // loop_body
                  %v342 = vld [vmem:[%s340] sm:%s333]
                  %343 = vst [vmem:[%s341] sm:%s333] %v342
                  %v344 = vld [vmem:[%s340 + $0x8] sm:%s333]
                  %345 = vst [vmem:[%s341 + $0x4] sm:%s333] %v344
                  %v346 = vld [vmem:[%s340 + $0x10] sm:%s333]
                  %347 = vst [vmem:[%s341 + $0x8] sm:%s333] %v346
                  %v348 = vld [vmem:[%s340 + $0x18] sm:%s333]
                  %349 = vst [vmem:[%s341 + $0xc] sm:%s333] %v348
                $region79: #{roberta_v_pretraining_forward.7} parent=66 // loop_footer
                  %s339 = sadd.s32 1, %s335
                $region80: #{roberta_v_pretraining_forward.7} parent=66 // loop_footer_branch
                  %334 = sbr.rel target = $region76
                $region81: #{roberta_v_pretraining_forward.7} parent=66 // loop_exit
                  _
              $region67: #{roberta_v_pretraining_forward.7} parent=51 // pred_fallthru
                _
            $region52: #{roberta_v_pretraining_forward.7} parent=47 // pred_fallthru
              _
            // Predicated region
            $region53: #{roberta_v_pretraining_forward.7} parent=47 // pred_check
              _
            $region54: #{roberta_v_pretraining_forward.7} parent=47 // pred_check_branch
              %303 = sbr.rel (0) target = $region56
            $region55: #{roberta_v_pretraining_forward.7} parent=47 // pred_region
              %s305 = ssub.s32 16, 1
              loop: start=0, step=1, limit=1
              $region57: #{roberta_v_pretraining_forward.7} parent=55 // loop_pre_header
                _
              $region58: #{roberta_v_pretraining_forward.7} parent=55 // loop_header
                %s307 = sphi 0, %s311
                %p308 = scmp.ge.s32.totalorder %s307, 1
                %s312 = sphi %s297, %s297
                %s313 = sphi %s295, %s295
              $region59: #{roberta_v_pretraining_forward.7} parent=55 // loop_header_branch
                %310 = sbr.rel (%p308) target = $region63
              $region60: #{roberta_v_pretraining_forward.7} parent=55 // loop_body
                %v314 = vld [vmem:[%s312] sm:%s305]
                %315 = vst [vmem:[%s313] sm:%s305] %v314
                %v316 = vld [vmem:[%s312 + $0x8] sm:%s305]
                %317 = vst [vmem:[%s313 + $0x4] sm:%s305] %v316
                %v318 = vld [vmem:[%s312 + $0x10] sm:%s305]
                %319 = vst [vmem:[%s313 + $0x8] sm:%s305] %v318
                %v320 = vld [vmem:[%s312 + $0x18] sm:%s305]
                %321 = vst [vmem:[%s313 + $0xc] sm:%s305] %v320
              $region61: #{roberta_v_pretraining_forward.7} parent=55 // loop_footer
                %s311 = sadd.s32 1, %s307
              $region62: #{roberta_v_pretraining_forward.7} parent=55 // loop_footer_branch
                %306 = sbr.rel target = $region58
              $region63: #{roberta_v_pretraining_forward.7} parent=55 // loop_exit
                _
            $region56: #{roberta_v_pretraining_forward.7} parent=47 // pred_fallthru
              _
          $region48: #{roberta_v_pretraining_forward.7} parent=43 // pred_fallthru
            _
          %350 = vnop
        $region44: #{roberta_v_pretraining_forward.7} parent=31 // pred_fallthru
          _
        // Predicated region
        $region82: #{roberta_v_pretraining_forward.7} parent=31 // pred_check
          %p351 = pneg %p208
        $region83: #{roberta_v_pretraining_forward.7} parent=31 // pred_check_branch
          %353 = sbr.rel (%p351) target = $region85
        $region84: #{roberta_v_pretraining_forward.7} parent=31 // pred_region
          %p354 = scmp.lt.s32.totalorder %s22, 1
          %s355 = scalar_select %p354, %s22, 1
          %s356 = scalar_lea.vmem %s7, %s355
        $region85: #{roberta_v_pretraining_forward.7} parent=31 // pred_fallthru
          _
      $region32: #{roberta_v_pretraining_forward.7} parent=5 // pred_fallthru
        _
      %p357 = scmp.le.s32.totalorder 1, %s14
      %p358 = scmp.lt.s32.totalorder %s14, 5
      %p359 = pnand %p357, %p358
      %p360 = pneg %p359
      // Predicated region
      $region86: #{roberta_v_pretraining_forward.7} parent=5 // pred_check
        _
      $region87: #{roberta_v_pretraining_forward.7} parent=5 // pred_check_branch
        %362 = sbr.rel (%p359) target = $region89
      $region88: #{roberta_v_pretraining_forward.7} parent=5 // pred_region
        %s363 = ssub.s32 %s14, 1
        %s364 = sand.u32 %s175, 1
        %s365 = sand.u32 %s175, 1
        %s366 = smul.addr %s365, 16
        %s367 = scalar_lea.vmem [#allocation6], %s366
        // Predicated region
        $region90: #{roberta_v_pretraining_forward.7} parent=88 // pred_check
          %p368 = pneg %p188
        $region91: #{roberta_v_pretraining_forward.7} parent=88 // pred_check_branch
          %370 = sbr.rel (%p368) target = $region93
        $region92: #{roberta_v_pretraining_forward.7} parent=88 // pred_region
          _
        $region93: #{roberta_v_pretraining_forward.7} parent=88 // pred_fallthru
          _
        %s371 = smul.u32 2, %s23
        %p372 = scmp.lt.s32.totalorder %s371, 3
        %s373 = scalar_select %p372, %s371, 3
        %s374 = smul.addr %s373, 4
        %s375 = scalar_lea.vmem %s0, %s374
        %p376 = pneg %p52
        %p377 = pneg %p49
        %s378 = smul.u32 2, %s23
        %p379 = scmp.lt.s32.totalorder %s378, 3
        %s380 = scalar_select %p379, %s378, 3
        %s381 = smul.addr %s380, 8
        %s382 = scalar_lea.vmem %s1, %s381
        %p383 = pneg %p78
        %p384 = pneg %p75
        %p385 = pneg %p99
        %p386 = pneg %p96
        %p387 = pneg %p120
        %p388 = pneg %p117
        %p389 = pneg %p141
        %p390 = pneg %p138
        %p391 = pneg %p162
        %p392 = pneg %p159
        %s393 = sand.u32 %s175, 1
        %s394 = sand.u32 %s175, 1
        %s395 = smul.addr %s394, 16
        %s396 = scalar_lea.vmem [#allocation6], %s395
        %p397 = pneg %p188
        %p398 = pneg %p185
        %p399 = scmp.lt.s32.totalorder %s24, 1
        %s400 = scalar_select %p399, %s24, 1
        %s401 = scalar_lea.vmem %s7, %s400
        %p402 = pneg %p214
        %p403 = pneg %p211
        %p404 = pneg %p240
        %p405 = pneg %p237
        %p406 = scmp.lt.s32.totalorder %s23, 1
        %s407 = scalar_select %p406, %s23, 1
        %s408 = smul.addr %s407, 8
        %s409 = scalar_lea.vmem %s8, %s408
        %s410 = smul.u32 2, %s23
        %p411 = scmp.lt.s32.totalorder %s410, 3
        %s412 = scalar_select %p411, %s410, 3
        %s413 = smul.addr %s412, 4
        %s414 = scalar_lea.vmem %s0, %s413
        %s415 = smul.u32 2, %s23
        %s416 = smul.u32 2, %s23
        %p417 = scmp.lt.s32.totalorder %s416, 3
        %s418 = scalar_select %p417, %s416, 3
        %s419 = smul.addr %s418, 8
        %s420 = scalar_lea.vmem %s1, %s419
        %s421 = smul.u32 2, %s23
        %p422 = scmp.lt.s32.totalorder %s24, 1
        %s423 = scalar_select %p422, %s24, 1
        %s424 = scalar_lea.vmem %s7, %s423
        %p425 = scmp.lt.s32.totalorder %s23, 1
        %s426 = scalar_select %p425, %s23, 1
        %s427 = smul.addr %s426, 8
        %s428 = scalar_lea.vmem %s8, %s427
        %p430 = scmp.eq.s32.totalorder %s24, 0
        // Predicated region
        $region94: #{roberta_v_pretraining_forward.7} parent=88 // pred_check
          %p431 = pneg %p430
        $region95: #{roberta_v_pretraining_forward.7} parent=88 // pred_check_branch
          %433 = sbr.rel (%p431) target = $region97
        $region96: #{roberta_v_pretraining_forward.7} parent=88 // pred_region
          %v434 = vld [vmem:[%s414] sm:$0xf]
          %v435 = vld [vmem:[%s414 + $0x4] sm:$0xf]
          %v436 = vld [vmem:[%s2] sm:$0xf]
          %v437 = vld [vmem:[%s2 + $0x4] sm:$0xf]
          %v438 = vld [vmem:[%s2 + $0x8] sm:$0xf]
          %v439 = vld [vmem:[%s2 + $0xc] sm:$0xf]
          %v440 = vld [vmem:[%s3] sm:$0x1]
          %v442 = vperm.slane %v440, 0
          %v446 = vunpack.c.l.b16 %v434
          %v447 = vunpack.c.l.b16 %v435
          %v448 = vpack.c.b16 %v447, %v446
          %v453 = vunpack.c.l.b16 %v436
          %v454 = vunpack.c.l.b16 %v437
          %v455 = vunpack.c.l.b16 %v438
          %v456 = vunpack.c.l.b16 %v439
          %v457 = vpack.c.b16 %v454, %v453
          %v458 = vpack.c.b16 %v456, %v455
          %vm461 = vcmask 261120
          %v463 = vsel %vm461, %v448, 0
          %465 = vmatpush.bf16.msra.mxu0 0
          %466 = vmatpush.bf16.msra.mxu0 0
          %467 = vmatpush.bf16.msra.mxu0 0
          %468 = vmatpush.bf16.msra.mxu0 0
          %469 = vmatpush.bf16.msra.mxu0 0
          %470 = vmatpush.bf16.msra.mxu0 0
          %471 = vmatpush.bf16.msra.mxu0 %v458
          %472 = vmatpush.bf16.msra.mxu0 %v457
          %473 = vmatmul.bf16.gmra.mxu0 %v463
          %v474 = vpop.f32.mrf.mxu0
          %v475 = vadd.f32 %v442, %v474
          %v476 = vpop.f32.mrf.mxu0
          %v477 = vadd.f32 %v442, %v476
          %478 = vdwg.mxu0
          %v479 = vmul.f32 %v475, 0.5
          %v480 = vmul.f32 %v477, 0.5
          %v481 = vmul.f32 %v475, 0.70710677
          %v482 = vmul.f32 %v477, 0.70710677
          %v483 = vmul.f32 %v481, %v481
          %v484 = vmin.f32 16.0, %v483
          %v485 = vmul.f32 %v484, 2.1237322e-06
          %v486 = vadd.f32 %v485, 0.00028619796
          %v487 = vmul.f32 %v484, %v486
          %v488 = vadd.f32 %v487, 0.0036580483
          %v489 = vmul.f32 %v484, %v488
          %v490 = vadd.f32 %v489, 0.05243302
          %v491 = vmul.f32 %v484, %v490
          %v492 = vadd.f32 %v491, 0.18741608
          %v493 = vmul.f32 %v484, %v492
          %v494 = vadd.f32 %v493, 1.1283791
          %v495 = vmul.f32 %v481, %v494
          %v496 = vmul.f32 %v484, 3.8918573e-05
          %v497 = vadd.f32 %v496, 0.001143296
          %v498 = vmul.f32 %v484, %v497
          %v499 = vadd.f32 %v498, 0.014752088
          %v500 = vmul.f32 %v484, %v499
          %v501 = vadd.f32 %v500, 0.112945676
          %v502 = vmul.f32 %v484, %v501
          %v503 = vadd.f32 %v502, 0.4994258
          %v504 = vmul.f32 %v484, %v503
          %v505 = vadd.f32 %v504, 1.0
          %v506 = vrcp.pop %v505
          %v507 = vmul.f32 %v505, %v506
          %v508 = vsub.f32 1.0, %v507
          %v509 = vmul.f32 %v506, %v508
          %v510 = vadd.f32 %v506, %v509
          %vm511 = vweird.f32 %v505
          %vm512 = vweird.f32 %v506
          %vm513 = vmor %vm511, %vm512
          %v514 = vsel %vm513, %v506, %v510
          %v515 = vand.u32 2147483647, %v505
          %vm516 = vcmp.eq.f32.partialorder %v515, 8.507059e+37
          %v517 = vand.u32 %v505, 2147483648
          %v518 = vor.u32 1.1754944e-38, %v517
          %v519 = vsel %vm516, %v518, %v514
          %v520 = vmul.f32 %v495, %v519
          %v521 = vmin.f32 %v520, 1.0
          %v522 = vmax.f32 %v521, -1.0
          %v523 = vmul.f32 %v482, %v482
          %v524 = vmin.f32 16.0, %v523
          %v525 = vmul.f32 %v524, 2.1237322e-06
          %v526 = vadd.f32 %v525, 0.00028619796
          %v527 = vmul.f32 %v524, %v526
          %v528 = vadd.f32 %v527, 0.0036580483
          %v529 = vmul.f32 %v524, %v528
          %v530 = vadd.f32 %v529, 0.05243302
          %v531 = vmul.f32 %v524, %v530
          %v532 = vadd.f32 %v531, 0.18741608
          %v533 = vmul.f32 %v524, %v532
          %v534 = vadd.f32 %v533, 1.1283791
          %v535 = vmul.f32 %v482, %v534
          %v536 = vmul.f32 %v524, 3.8918573e-05
          %v537 = vadd.f32 %v536, 0.001143296
          %v538 = vmul.f32 %v524, %v537
          %v539 = vadd.f32 %v538, 0.014752088
          %v540 = vmul.f32 %v524, %v539
          %v541 = vadd.f32 %v540, 0.112945676
          %v542 = vmul.f32 %v524, %v541
          %v543 = vadd.f32 %v542, 0.4994258
          %v544 = vmul.f32 %v524, %v543
          %v545 = vadd.f32 %v544, 1.0
          %v546 = vrcp.pop %v545
          %v547 = vmul.f32 %v545, %v546
          %v548 = vsub.f32 1.0, %v547
          %v549 = vmul.f32 %v546, %v548
          %v550 = vadd.f32 %v546, %v549
          %vm551 = vweird.f32 %v545
          %vm552 = vweird.f32 %v546
          %vm553 = vmor %vm551, %vm552
          %v554 = vsel %vm553, %v546, %v550
          %v555 = vand.u32 2147483647, %v545
          %vm556 = vcmp.eq.f32.partialorder %v555, 8.507059e+37
          %v557 = vand.u32 %v545, 2147483648
          %v558 = vor.u32 1.1754944e-38, %v557
          %v559 = vsel %vm556, %v558, %v554
          %v560 = vmul.f32 %v535, %v559
          %v561 = vmin.f32 %v560, 1.0
          %v562 = vmax.f32 %v561, -1.0
          %v563 = vadd.f32 %v522, 1.0
          %v564 = vadd.f32 %v562, 1.0
          %v565 = vmul.f32 %v479, %v563
          %v566 = vmul.f32 %v480, %v564
          %v567 = vld [vmem:[%s4] sm:$0x1]
          %v568 = vld [vmem:[%s5] sm:$0x1]
          %v569 = vsel %vm461, %v565, 0.0
          %570 = vadd.xlane.f32.xlu0 %v569
          %v571 = vpop.xlane.xlu0 %570
          %v572 = vsel %vm461, %v566, 0.0
          %573 = vadd.xlane.f32.xlu0 %v572
          %v574 = vpop.xlane.xlu0 %573
          %v575 = vrcp.pop 32.0
          %v576 = vmul.f32 32.0, %v575
          %v577 = vsub.f32 1.0, %v576
          %v578 = vmul.f32 %v575, %v577
          %v579 = vadd.f32 %v575, %v578
          %vm580 = vweird.f32 %v575
          %v581 = vsel %vm580, %v575, %v579
          %v582 = vmul.f32 %v571, %v581
          %v583 = vmul.f32 %v574, %v581
          %v584 = vsub.f32 %v565, %v582
          %v585 = vsub.f32 %v566, %v583
          %v586 = vmul.f32 %v584, %v584
          %v587 = vmul.f32 %v585, %v585
          %v588 = vsel %vm461, %v586, 0.0
          %589 = vadd.xlane.f32.xlu0 %v588
          %v590 = vpop.xlane.xlu0 %589
          %v591 = vsel %vm461, %v587, 0.0
          %592 = vadd.xlane.f32.xlu0 %v591
          %v593 = vpop.xlane.xlu0 %592
          %v594 = vmul.f32 %v590, %v581
          %v595 = vmul.f32 %v593, %v581
          %v596 = vadd.f32 %v594, 1e-05
          %v597 = vadd.f32 %v595, 1e-05
          %v598 = vrsqrt.pop %v596
          %v599 = vmul.f32 %v598, %v596
          %v600 = vmul.f32 %v599, %v598
          %v601 = vmul.f32 0.5, %v600
          %v602 = vsub.f32 1.5, %v601
          %v603 = vmul.f32 %v598, %v602
          %vm604 = vweird.f32 %v596
          %vm605 = vweird.f32 %v598
          %vm606 = vmor %vm604, %vm605
          %v607 = vsel %vm606, %v598, %v603
          %v608 = vrsqrt.pop %v597
          %v609 = vmul.f32 %v608, %v597
          %v610 = vmul.f32 %v609, %v608
          %v611 = vmul.f32 0.5, %v610
          %v612 = vsub.f32 1.5, %v611
          %v613 = vmul.f32 %v608, %v612
          %vm614 = vweird.f32 %v597
          %vm615 = vweird.f32 %v608
          %vm616 = vmor %vm614, %vm615
          %v617 = vsel %vm616, %v608, %v613
          %v618 = vmul.f32 %v584, %v607
          %v619 = vmul.f32 %v585, %v617
          %v621 = vperm.slane %v567, 0
          %v623 = vmul.f32 %v618, %v621
          %v624 = vmul.f32 %v619, %v621
          %v626 = vperm.slane %v568, 0
          %v628 = vadd.f32 %v623, %v626
          %v629 = vadd.f32 %v624, %v626
          %v630 = vpack.c.bf16 %v628, %v628
          %v631 = vpack.c.bf16 %v629, %v629
          %vm632 = vcmask 257024
          %633 = vst.msk [vmem:[#allocation2] sm:$0xf] %vm632, %v630
          %634 = vst.msk [vmem:[#allocation2 + $0x4] sm:$0xf] %vm632, %v631
          %vm635 = vcmask 7168
          %636 = vst.msk [vmem:[#allocation3] sm:$0xff] %vm635, -inf
          %637 = vst.msk [vmem:[#allocation3 + $0x8] sm:$0xff] %vm635, -inf
          %638 = vst.msk [vmem:[#allocation4] sm:$0xff] %vm635, 0.0
          %639 = vst.msk [vmem:[#allocation4 + $0x8] sm:$0xff] %vm635, 0.0
          %640 = vst.msk [vmem:[#allocation5] sm:$0xff] %vm635, 0.0
          %641 = vst.msk [vmem:[#allocation5 + $0x8] sm:$0xff] %vm635, 0.0
        $region97: #{roberta_v_pretraining_forward.7} parent=88 // pred_fallthru
          _
        %v642 = vld [vmem:[#allocation2] sm:$0xf]
        %v643 = vld [vmem:[#allocation2 + $0x4] sm:$0xf]
        %v644 = vld [vmem:[%s367] sm:$0xf]
        %v645 = vld [vmem:[%s367 + $0x4] sm:$0xf]
        %v646 = vld [vmem:[%s367 + $0x8] sm:$0xf]
        %v647 = vld [vmem:[%s367 + $0xc] sm:$0xf]
        %v648 = vld [vmem:[%s424] sm:$0x1]
        %v650 = vperm.slane %v648, 0
        %v654 = vunpack.c.l.b16 %v642
        %v655 = vunpack.c.l.b16 %v643
        %v656 = vpack.c.b16 %v655, %v654
        %v661 = vunpack.c.l.b16 %v644
        %v662 = vunpack.c.l.b16 %v645
        %v663 = vunpack.c.l.b16 %v646
        %v664 = vunpack.c.l.b16 %v647
        %v665 = vpack.c.b16 %v662, %v661
        %v666 = vpack.c.b16 %v664, %v663
        %vm669 = vcmask 261120
        %v671 = vsel %vm669, %v656, 0
        %673 = vmatpush.bf16.msra.mxu0 0
        %674 = vmatpush.bf16.msra.mxu0 0
        %675 = vmatpush.bf16.msra.mxu0 0
        %676 = vmatpush.bf16.msra.mxu0 0
        %677 = vmatpush.bf16.msra.mxu0 0
        %678 = vmatpush.bf16.msra.mxu0 0
        %679 = vmatpush.bf16.msra.mxu0 %v666
        %680 = vmatpush.bf16.msra.mxu0 %v665
        %681 = vmatmul.bf16.gmra.mxu0 %v671
        %v682 = vpop.f32.mrf.mxu0
        %v683 = vadd.f32 %v650, %v682
        %v684 = vpop.f32.mrf.mxu0
        %v685 = vadd.f32 %v650, %v684
        %686 = vdwg.mxu0
        %v687 = vld [vmem:[%s420] sm:$0xff]
        %v688 = vld [vmem:[%s420 + $0x8] sm:$0xff]
        %v689 = vlaneseq
        %v690 = vand.u32 %v689, 127
        %s691 = smul.u32 %s24, 128
        %v692 = vstv %s691
        %v693 = vadd.s32 %v690, %v692
        %v694 = vld [vmem:[#allocation5] sm:$0xff]
        %v695 = vld [vmem:[#allocation5 + $0x8] sm:$0xff]
        %696 = vset.pattern.permute.xlu0 0
        %697 = vperm.xlu0 %696, %v687
        %v698 = vpop.permute.xlu0 %697
        %699 = vset.pattern.permute.xlu0 0
        %700 = vperm.xlu0 %699, %v688
        %v701 = vpop.permute.xlu0 %700
        %vm702 = vcmp.eq.s32.totalorder %v693, %v698
        %vm703 = vcmp.eq.s32.totalorder %v693, %v701
        %v704 = vsel %vm702, %v683, 0.0
        %v705 = vsel %vm703, %v685, 0.0
        %706 = vadd.xlane.f32.xlu0 %v704
        %v707 = vpop.xlane.xlu0 %706
        %708 = vadd.xlane.f32.xlu0 %v705
        %v709 = vpop.xlane.xlu0 %708
        %v710 = vadd.f32 %v694, %v707
        %v711 = vadd.f32 %v695, %v709
        %vm712 = vcmask 7168
        %713 = vst.msk [vmem:[#allocation5] sm:$0xff] %vm712, %v710
        %714 = vst.msk [vmem:[#allocation5 + $0x8] sm:$0xff] %vm712, %v711
        %v715 = vld [vmem:[#allocation3] sm:$0xff]
        %v716 = vld [vmem:[#allocation3 + $0x8] sm:$0xff]
        %717 = vmax.xlane.f32.xlu0 %v683
        %v718 = vpop.xlane.xlu0 %717
        %719 = vmax.xlane.f32.xlu0 %v685
        %v720 = vpop.xlane.xlu0 %719
        %v721 = vmax.f32 %v715, %v718
        %v722 = vmax.f32 %v716, %v720
        %v723 = vsub.f32 %v715, %v721
        %v724 = vsub.f32 %v716, %v722
        %v725 = vmul.f32 %v723, 1.442695
        %v726 = vpow.pop %v725
        %v727 = vmul.f32 %v724, 1.442695
        %v728 = vpow.pop %v727
        %v729 = vld [vmem:[#allocation4] sm:$0xff]
        %v730 = vld [vmem:[#allocation4 + $0x8] sm:$0xff]
        %v731 = vmul.f32 %v726, %v729
        %v732 = vmul.f32 %v728, %v730
        %734 = vset.pattern.permute.xlu0 0
        %735 = vperm.xlu0 %734, %v721
        %v736 = vpop.permute.xlu0 %735
        %739 = vset.pattern.permute.xlu0 0
        %740 = vperm.xlu0 %739, %v722
        %v741 = vpop.permute.xlu0 %740
        %v743 = vsub.f32 %v683, %v736
        %v744 = vsub.f32 %v685, %v741
        %v745 = vmul.f32 %v743, 1.442695
        %v746 = vpow.pop %v745
        %v747 = vmul.f32 %v744, 1.442695
        %v748 = vpow.pop %v747
        %749 = vadd.xlane.f32.xlu0 %v746
        %v750 = vpop.xlane.xlu0 %749
        %751 = vadd.xlane.f32.xlu0 %v748
        %v752 = vpop.xlane.xlu0 %751
        %v753 = vadd.f32 %v731, %v750
        %v754 = vadd.f32 %v732, %v752
        %755 = vst.msk [vmem:[#allocation4] sm:$0xff] %vm712, %v753
        %756 = vst.msk [vmem:[#allocation4 + $0x8] sm:$0xff] %vm712, %v754
        %757 = vst.msk [vmem:[#allocation3] sm:$0xff] %vm712, %v721
        %758 = vst.msk [vmem:[#allocation3 + $0x8] sm:$0xff] %vm712, %v722
        %p759 = scmp.eq.s32.totalorder %s24, 1
        // Predicated region
        $region98: #{roberta_v_pretraining_forward.7} parent=88 // pred_check
          %p760 = pneg %p759
        $region99: #{roberta_v_pretraining_forward.7} parent=88 // pred_check_branch
          %762 = sbr.rel (%p760) target = $region101
        $region100: #{roberta_v_pretraining_forward.7} parent=88 // pred_region
          %vm763 = vcmp.ne.s32.totalorder %v687, 4294967295
          %vm764 = vcmp.ne.s32.totalorder %v688, 4294967295
          %v765 = vld [vmem:[#allocation3] sm:$0xff]
          %v766 = vld [vmem:[#allocation3 + $0x8] sm:$0xff]
          %v767 = vld [vmem:[#allocation4] sm:$0xff]
          %v768 = vld [vmem:[#allocation4 + $0x8] sm:$0xff]
          %v769 = vlog2.pop %v767
          %v770 = vmul.f32 %v769, 0.6931472
          %v771 = vlog2.pop %v768
          %v772 = vmul.f32 %v771, 0.6931472
          %v773 = vadd.f32 %v765, %v770
          %v774 = vadd.f32 %v766, %v772
          %v775 = vld [vmem:[#allocation5] sm:$0xff]
          %v776 = vld [vmem:[#allocation5 + $0x8] sm:$0xff]
          %v777 = vsub.f32 %v773, %v775
          %v778 = vsub.f32 %v774, %v776
          %v779 = vsel %vm763, %v777, 0.0
          %v780 = vsel %vm764, %v778, 0.0
          %v781 = vsel %vm712, %v779, 0.0
          %v782 = vsel %vm712, %v780, 0.0
          %v783 = vadd.f32 %v781, %v782
          %784 = vadd.xlane.f32.xlu0 %v783
          %v785 = vpop.xlane.xlu0 %784
          %v786 = vrot.slane %v785, 4
          %v787 = vadd.f32 %v785, %v786
          %v788 = vrot.slane %v787, 2
          %v789 = vadd.f32 %v787, %v788
          %v790 = vrot.slane %v789, 1
          %v791 = vadd.f32 %v789, %v790
          %s792 = vtos %v791
          %v793 = vsel %vm763, 1, 0
          %v794 = vsel %vm764, 1, 0
          %v795 = vcvt.s32.f32 %v793
          %v796 = vcvt.s32.f32 %v794
          %v797 = vsel %vm712, %v795, 0.0
          %v798 = vsel %vm712, %v796, 0.0
          %v799 = vadd.f32 %v797, %v798
          %800 = vadd.xlane.f32.xlu0 %v799
          %v801 = vpop.xlane.xlu0 %800
          %v802 = vrot.slane %v801, 4
          %v803 = vadd.f32 %v801, %v802
          %v804 = vrot.slane %v803, 2
          %v805 = vadd.f32 %v803, %v804
          %v806 = vrot.slane %v805, 1
          %v807 = vadd.f32 %v805, %v806
          %s808 = vtos %v807
          %v809 = vlaneseq
          %v810 = vshrl.u32 %v809, 7
          %vm811 = vcmp.eq.s32.totalorder %v810, 0
          %vm812 = vcmp.eq.s32.totalorder %v690, 0
          %vm813 = vmand %vm811, %vm812
          %vm814 = vcmp.eq.s32.totalorder %v690, 1
          %vm815 = vmand %vm811, %vm814
          %v816 = vstv %s808
          %v817 = vsel %vm815, %v816, 0.0
          %v818 = vstv %s792
          %v819 = vsel %vm813, %v818, %v817
          %820 = vst [vmem:[%s428] sm:$0xff] %v819
        $region101: #{roberta_v_pretraining_forward.7} parent=88 // pred_fallthru
          _
        %p821 = scmp.lt.s32.totalorder %s23, 1
        %s822 = scalar_select %p821, %s23, 1
        %s823 = smul.addr %s822, 8
        %s824 = scalar_lea.vmem %s8, %s823
        // Predicated region
        $region102: #{roberta_v_pretraining_forward.7} parent=88 // pred_check
          %p825 = pneg %p237
        $region103: #{roberta_v_pretraining_forward.7} parent=88 // pred_check_branch
          %827 = sbr.rel (%p825) target = $region105
        $region104: #{roberta_v_pretraining_forward.7} parent=88 // pred_region
          _
        $region105: #{roberta_v_pretraining_forward.7} parent=88 // pred_fallthru
          _
      $region89: #{roberta_v_pretraining_forward.7} parent=5 // pred_fallthru
        _
      %p828 = scmp.le.s32.totalorder 2, %s14
      // Predicated region
      $region106: #{roberta_v_pretraining_forward.7} parent=5 // pred_check
        %p829 = pneg %p828
      $region107: #{roberta_v_pretraining_forward.7} parent=5 // pred_check_branch
        %831 = sbr.rel (%p829) target = $region109
      $region108: #{roberta_v_pretraining_forward.7} parent=5 // pred_region
        %s832 = ssub.s32 %s14, 2
        // Predicated region
        $region110: #{roberta_v_pretraining_forward.7} parent=108 // pred_check
          %p833 = pneg %p243
        $region111: #{roberta_v_pretraining_forward.7} parent=108 // pred_check_branch
          %835 = sbr.rel (%p833) target = $region113
        $region112: #{roberta_v_pretraining_forward.7} parent=108 // pred_region
          %p836 = scmp.lt.s32.totalorder %s25, 1
          %s837 = scalar_select %p836, %s25, 1
          %s838 = smul.addr %s837, 8
          %s839 = scalar_lea.vmem %s8, %s838
        $region113: #{roberta_v_pretraining_forward.7} parent=108 // pred_fallthru
          _
      $region109: #{roberta_v_pretraining_forward.7} parent=5 // pred_fallthru
        _
    $region6: #{roberta_v_pretraining_forward.7} parent=1 // loop_footer
      %s18 = sadd.s32 1, %s14
    $region7: #{roberta_v_pretraining_forward.7} parent=1 // loop_footer_branch
      %13 = sbr.rel target = $region3
    $region8: #{roberta_v_pretraining_forward.7} parent=1 // loop_exit
      _

</llo_original>
